<compile_context>
chip_gen: v6e
topology: v6e:2x2x1
jax: 0.10.0
libtpu: 0.0.40
codegen_flags: <defaults>
</compile_context>

<pallas_src>
import functools

import jax
import jax.numpy as jnp
import numpy as np
from jax.experimental import pallas as pl
from jax.experimental.pallas import tpu as pltpu

_VMEM_LIMIT = 48 * 1024 * 1024  # < 64 MiB physical on v7x, headroom on v5e/v6e


# ----------------------------------------------------------------------------
# Kernel 1 (per utterance n): grouped complex conv over time + channel mixing,
# complex magnitude, MXU projection over frequency, log(relu(.) + eps), and
# per-(b, t) partial sums for the BatchNorm2d batch statistics.
#
#   xr_ref, xi_ref : (C, F, T)    un-padded real / imag input
#   wr_ref, wi_ref : (B, F, R*C)  conv weights, col = r*C + c
#   wpt_ref        : (P, F)       projection weight (== Linear.weight)
#   o_ref          : (B, P, T)    pre-BN features, lane-dense (T on lanes)
#   s_ref          : (2, B, T)    sum / sum-of-squares over P per (b, t)
#   win_r, win_i   : (R, C, F, T) VMEM im2col scratch (zero-padded halo)
# ----------------------------------------------------------------------------
def tvf_conv_proj_kernel(xr_ref, xi_ref, wr_ref, wi_ref, wpt_ref,
                         o_ref, s_ref, win_r, win_i, *, R, eps):
    C, Fb, T = xr_ref.shape
    B = wr_ref.shape[0]
    pad = (R - 1) // 2

    # --- im2col: materialize the R shifted (zero-padded) windows ONCE --------
    for r in range(R):
        lo = max(0, pad - r)           # first valid output frame for this tap
        hi = min(T, T + pad - r)       # one past the last valid frame
        if lo > 0:
            z = jnp.zeros((C, Fb, lo), jnp.float32)
            win_r[r, :, :, :lo] = z
            win_i[r, :, :, :lo] = z
        if hi < T:
            z = jnp.zeros((C, Fb, T - hi), jnp.float32)
            win_r[r, :, :, hi:] = z
            win_i[r, :, :, hi:] = z
        if hi > lo:
            win_r[r, :, :, lo:hi] = xr_ref[:, :, lo + r - pad:hi + r - pad]
            win_i[r, :, :, lo:hi] = xi_ref[:, :, lo + r - pad:hi + r - pad]

    wpt = wpt_ref[...]                                        # (P, F)

    # --- one spatial filter b at a time: a single live accumulator pair ------
    def b_body(b, carry):
        wrb = wr_ref[b]                                       # (F, R*C)
        wib = wi_ref[b]
        acc_r = jnp.zeros((Fb, T), jnp.float32)
        acc_i = jnp.zeros((Fb, T), jnp.float32)
        for r in range(R):                                    # short static loops
            for c in range(C):
                col = r * C + c
                xr_w = win_r[r, c]                            # (F, T)
                xi_w = win_i[r, c]
                w_r = wrb[:, col:col + 1]                     # (F, 1) lane bcast
                w_i = wib[:, col:col + 1]
                # complex conv: br = real(xr) - imag(xi); bi = real(xi) + imag(xr)
                acc_r = acc_r + w_r * xr_w - w_i * xi_w
                acc_i = acc_i + w_r * xi_w + w_i * xr_w
        babs = jnp.sqrt(acc_r * acc_r + acc_i * acc_i + eps)  # (F, T)
        # projection over F on the MXU (default precision; K=F is tiny anyway)
        projb = jnp.dot(wpt, babs, preferred_element_type=jnp.float32)  # (P, T)
        o_ref[b] = jnp.log(jnp.maximum(projb, 0.0) + eps)     # lane-dense store
        return carry

    jax.lax.fori_loop(0, B, b_body, 0)

    # --- per-(b, t) partial sums for the BatchNorm batch statistics ----------
    feat = o_ref[...]                                         # (B, P, T)
    s_ref[0] = jnp.sum(feat, axis=1)
    s_ref[1] = jnp.sum(feat * feat, axis=1)


# ----------------------------------------------------------------------------
# Kernel 2: BatchNorm2d(B) apply (batch stats folded into per-column scale/shift)
# fused with the (B*P, T) -> (T, B*P) relayout. Purely HBM-bound, T-tiled.
#   x_ref : (B*P, Tt)   scale_ref, shift_ref : (1, B*P)   o_ref : (Tt, B*P)
# ----------------------------------------------------------------------------
def bn_apply_transpose_kernel(x_ref, scale_ref, shift_ref, o_ref):
    yt = jnp.transpose(x_ref[...], (1, 0))                    # (Tt, B*P)
    o_ref[...] = yt * scale_ref[...] + shift_ref[...]         # 256-lane stores


# ----------------------------------------------------------------------------
# Wrapper
# ----------------------------------------------------------------------------
@functools.partial(jax.jit, static_argnames=("time_reception", "eps", "bn_eps"))
def time_variant_filter(xr, xi, wr, wi, wp, bn_gamma, bn_beta, *,
                        time_reception, eps=1e-5, bn_eps=1e-5):
    N, C, Fb, T = xr.shape
    Bf = wr.shape[1]
    P = wp.shape[1]
    R = time_reception
    assert R % 2 == 1, "module uses 'same' padding (R-1)//2, expects odd R"

    # Lane-dense weight layouts (tiny; re-layout is trivial in XLA).
    wr2 = jnp.transpose(wr.astype(jnp.float32), (1, 0, 2, 3)).reshape(Bf, Fb, R * C)
    wi2 = jnp.transpose(wi.astype(jnp.float32), (1, 0, 2, 3)).reshape(Bf, Fb, R * C)
    wpt = jnp.transpose(wp).astype(jnp.float32)               # (P, F)

    kernel = functools.partial(tvf_conv_proj_kernel, R=R, eps=eps)
    feat4, stats = pl.pallas_call(
        kernel,
        out_shape=(
            jax.ShapeDtypeStruct((N, Bf, P, T), jnp.float32),  # pre-BN features
            jax.ShapeDtypeStruct((N, 2, Bf, T), jnp.float32),  # BN partial sums
        ),
        grid=(N,),
        in_specs=[
            pl.BlockSpec((None, C, Fb, T), lambda n: (n, 0, 0, 0)),
            pl.BlockSpec((None, C, Fb, T), lambda n: (n, 0, 0, 0)),
            pl.BlockSpec((Bf, Fb, R * C), lambda n: (0, 0, 0)),
            pl.BlockSpec((Bf, Fb, R * C), lambda n: (0, 0, 0)),
            pl.BlockSpec((P, Fb), lambda n: (0, 0)),
        ],
        out_specs=(
            pl.BlockSpec((None, Bf, P, T), lambda n: (n, 0, 0, 0)),
            pl.BlockSpec((None, 2, Bf, T), lambda n: (n, 0, 0, 0)),
        ),
        scratch_shapes=[
            pltpu.VMEM((R, C, Fb, T), jnp.float32),            # im2col (real)
            pltpu.VMEM((R, C, Fb, T), jnp.float32),            # im2col (imag)
        ],
        compiler_params=pltpu.CompilerParams(
            dimension_semantics=("parallel",),
            vmem_limit_bytes=_VMEM_LIMIT),
    )(xr.astype(jnp.float32), xi.astype(jnp.float32), wr2, wi2, wpt)

    # Finalize BatchNorm2d(B) training-mode batch statistics from the tiny
    # per-(n, b, t) sums (biased variance, as PyTorch uses for normalization).
    m = float(N * T * P)
    s = jnp.sum(stats, axis=(0, 3))                            # (2, B)
    mean = s[0] / m
    var = jnp.maximum(s[1] / m - mean * mean, 0.0)
    scale_b = bn_gamma.astype(jnp.float32) / jnp.sqrt(var + bn_eps)
    shift_b = bn_beta.astype(jnp.float32) - mean * scale_b
    scale_col = jnp.repeat(scale_b, P).reshape(1, Bf * P)      # per output column
    shift_col = jnp.repeat(shift_b, P).reshape(1, Bf * P)

    # (N, B, P, T) -> (N, B*P, T) is a free row-major reshape in HBM.
    feat3 = feat4.reshape(N, Bf * P, T)

    Tt = 128 if (T % 128 == 0) else T                          # lane-dense tiles
    out = pl.pallas_call(
        bn_apply_transpose_kernel,
        out_shape=jax.ShapeDtypeStruct((N, T, Bf * P), jnp.float32),
        grid=(N, T // Tt),
        in_specs=[
            pl.BlockSpec((None, Bf * P, Tt), lambda n, j: (n, 0, j)),
            pl.BlockSpec((1, Bf * P), lambda n, j: (0, 0)),
            pl.BlockSpec((1, Bf * P), lambda n, j: (0, 0)),
        ],
        out_specs=pl.BlockSpec((None, Tt, Bf * P), lambda n, j: (n, j, 0)),
        compiler_params=pltpu.CompilerParams(
            dimension_semantics=("parallel", "parallel"),
            vmem_limit_bytes=_VMEM_LIMIT),
    )(feat3, scale_col, shift_col)

    return out                                                 # (N, T, B*P)


# ----------------------------------------------------------------------------
# Pure-JAX reference (same math, no Pallas) for validation
# ----------------------------------------------------------------------------
def reference(xr, xi, wr, wi, wp, bn_gamma, bn_beta, *,
              time_reception, eps=1e-5, bn_eps=1e-5):
    N, C, Fb, T = xr.shape
    Bf = wr.shape[1]
    P = wp.shape[1]
    R = time_reception
    pad = (R - 1) // 2

    def prep(x):
        x = jnp.transpose(x, (0, 2, 1, 3)).astype(jnp.float32)   # (N, F, C, T)
        return jnp.pad(x, ((0, 0), (0, 0), (0, 0), (pad, pad)))

    xrp, xip = prep(xr), prep(xi)

    acc_r = jnp.zeros((N, Fb, Bf, T), jnp.float32)
    acc_i = jnp.zeros((N, Fb, Bf, T), jnp.float32)
    for r in range(R):
        xr_s = xrp[:, :, None, :, r:r + T]          # (N, F, 1, C, T)
        xi_s = xip[:, :, None, :, r:r + T]
        wr_r = wr[None, :, :, r, :, None]           # (1, F, B, C, 1)
        wi_r = wi[None, :, :, r, :, None]
        acc_r = acc_r + jnp.sum(wr_r * xr_s - wi_r * xi_s, axis=3)
        acc_i = acc_i + jnp.sum(wr_r * xi_s + wi_r * xr_s, axis=3)
    b_abs = jnp.sqrt(acc_r ** 2 + acc_i ** 2 + eps)             # (N, F, B, T)

    feat = jnp.sum(b_abs[:, :, :, :, None] * wp[None, :, None, None, :],
                   axis=1)                                      # (N, B, T, P)
    feat = jnp.log(jnp.maximum(feat, 0.0) + eps)

    mean = jnp.mean(feat, axis=(0, 2, 3), keepdims=True)
    var = jnp.mean((feat - mean) ** 2, axis=(0, 2, 3), keepdims=True)
    f = (feat - mean) / jnp.sqrt(var + bn_eps)
    f = f * bn_gamma.reshape(1, Bf, 1, 1) + bn_beta.reshape(1, Bf, 1, 1)
    f = jnp.transpose(f, (0, 2, 1, 3))                          # (N, T, B, P)
    return f.reshape(N, T, Bf * P)


if __name__ == "__main__":
    # Small synthetic config consistent with the module:
    # num_bins=F=16, num_channels=C=4, time_reception=R=5,
    # spatial_filters=B=8, spectra_filters=P=32, batch N=2, frames T=256.
    N, C, Fb, T = 2, 4, 16, 256
    R, Bf, P = 5, 8, 32

    key = jax.random.PRNGKey(0)
    k = jax.random.split(key, 7)
    xr = jax.random.normal(k[0], (N, C, Fb, T), jnp.float32)
    xi = jax.random.normal(k[1], (N, C, Fb, T), jnp.float32)

    # Deterministic synthetic parameters (shapes from the module __init__):
    #   ComplexConv2d weight: (F*B, 1, R, C) real + imag -> stored as (F, B, R, C)
    #   Linear(F, P, bias=False) weight: (P, F) -> stored transposed as (F, P)
    #   BatchNorm2d(B): gamma / beta (perturbed from defaults)
    # The projection weight is kept positive so proj stays well away from the
    # relu/log(.+eps) ill-conditioned regime; there ANY reordered/MXU-precision
    # reimplementation diverges at log(~0), while genuine indexing/translation
    # bugs still show up as O(1) mismatches.
    w_scale = 1.0 / float(np.sqrt(R * C))
    wr = jax.random.normal(k[2], (Fb, Bf, R, C), jnp.float32) * w_scale
    wi = jax.random.normal(k[3], (Fb, Bf, R, C), jnp.float32) * w_scale
    wp = jax.random.uniform(k[4], (Fb, P), jnp.float32,
                            minval=0.1, maxval=1.0) / float(np.sqrt(Fb))
    bn_gamma = 1.0 + 0.1 * jax.random.normal(k[5], (Bf,), jnp.float32)
    bn_beta = 0.1 * jax.random.normal(k[6], (Bf,), jnp.float32)

    out = time_variant_filter(xr, xi, wr, wi, wp, bn_gamma, bn_beta,
                              time_reception=R)
    out = jax.block_until_ready(out)
    assert out.shape == (N, T, Bf * P), out.shape

    ref = reference(xr, xi, wr, wi, wp, bn_gamma, bn_beta, time_reception=R)
    ref = jax.block_until_ready(ref)
    # Tolerance covers the default-precision MXU projection (vs the f32 VPU
    # reference); translation bugs produce O(1) mismatches.
    np.testing.assert_allclose(np.asarray(out), np.asarray(ref),
                               rtol=2e-2, atol=2e-2)
    print("KERNEL_OK")
</pallas_src>

<mosaic_0001>
module attributes {stable_mosaic.version = 11 : i64} {
  func.func @bn_apply_transpose_kernel(%arg0: i32, %arg1: i32, %arg2: memref<1x256x128xf32, #tpu.memory_space<vmem>>, %arg3: memref<1x256xf32, #tpu.memory_space<vmem>>, %arg4: memref<1x256xf32, #tpu.memory_space<vmem>>, %arg5: memref<1x128x256xf32, #tpu.memory_space<vmem>>) attributes {dimension_semantics = [#tpu.dimension_semantics<parallel>, #tpu.dimension_semantics<parallel>], iteration_bounds = array<i64: 2, 2>, scalar_prefetch = 0 : i64, scratch_operands = 0 : i64, tpu.core_type = #tpu.core_type<tc>, window_params = [{transform_indices = @transform_0, window_bounds = array<i64: 1, 256, 128>}, {pipeline_mode = #tpu.pipeline_mode<synchronous>, transform_indices = @transform_1, window_bounds = array<i64: 1, 256>}, {pipeline_mode = #tpu.pipeline_mode<synchronous>, transform_indices = @transform_2, window_bounds = array<i64: 1, 256>}, {transform_indices = @transform_3, window_bounds = array<i64: 1, 128, 256>}]} {
    %c0 = arith.constant 0 : index
    %c0_0 = arith.constant 0 : index
    %c0_1 = arith.constant 0 : index
    %0 = vector.load %arg2[%c0, %c0_0, %c0_1] : memref<1x256x128xf32, #tpu.memory_space<vmem>>, vector<1x256x128xf32>
    %1 = vector.shape_cast %0 : vector<1x256x128xf32> to vector<256x128xf32>
    %2 = tpu.transpose %1, [1, 0] : vector<256x128xf32> -> vector<128x256xf32>
    %c0_2 = arith.constant 0 : index
    %c0_3 = arith.constant 0 : index
    %3 = vector.load %arg3[%c0_2, %c0_3] : memref<1x256xf32, #tpu.memory_space<vmem>>, vector<1x256xf32>
    %4 = vector.broadcast %3 : vector<1x256xf32> to vector<128x256xf32>
    %5 = arith.mulf %2, %4 : vector<128x256xf32>
    %c0_4 = arith.constant 0 : index
    %c0_5 = arith.constant 0 : index
    %6 = vector.load %arg4[%c0_4, %c0_5] : memref<1x256xf32, #tpu.memory_space<vmem>>, vector<1x256xf32>
    %7 = vector.broadcast %6 : vector<1x256xf32> to vector<128x256xf32>
    %8 = arith.addf %5, %7 : vector<128x256xf32>
    %c0_6 = arith.constant 0 : index
    %c0_7 = arith.constant 0 : index
    %c0_8 = arith.constant 0 : index
    %9 = vector.load %arg5[%c0_6, %c0_7, %c0_8] : memref<1x128x256xf32, #tpu.memory_space<vmem>>, vector<1x128x256xf32>
    %10 = vector.shape_cast %9 : vector<1x128x256xf32> to vector<128x256xf32>
    %11 = vector.shape_cast %8 : vector<128x256xf32> to vector<1x128x256xf32>
    tpu.vector_store %arg5[%c0_6, %c0_7, %c0_8], %11 {strides = array<i32>} : memref<1x128x256xf32, #tpu.memory_space<vmem>>, vector<1x128x256xf32>,
    return
  }
  func.func @transform_0(%arg0: i32, %arg1: i32) -> (i32, i32, i32) {
    %c0_i32 = arith.constant 0 : i32
    %c0_i32_0 = arith.constant 0 : i32
    return %arg0, %c0_i32, %arg1 : i32, i32, i32
  }
  func.func @transform_1(%arg0: i32, %arg1: i32) -> (i32, i32) {
    %c0_i32 = arith.constant 0 : i32
    %c0_i32_0 = arith.constant 0 : i32
    %c0_i32_1 = arith.constant 0 : i32
    return %c0_i32, %c0_i32_0 : i32, i32
  }
  func.func @transform_2(%arg0: i32, %arg1: i32) -> (i32, i32) {
    %c0_i32 = arith.constant 0 : i32
    %c0_i32_0 = arith.constant 0 : i32
    %c0_i32_1 = arith.constant 0 : i32
    return %c0_i32, %c0_i32_0 : i32, i32
  }
  func.func @transform_3(%arg0: i32, %arg1: i32) -> (i32, i32, i32) {
    %c0_i32 = arith.constant 0 : i32
    %c0_i32_0 = arith.constant 0 : i32
    return %arg0, %arg1, %c0_i32 : i32, i32, i32
  }
}

module attributes {stable_mosaic.version = 11 : i64} {
  func.func @tvf_conv_proj_kernel(%arg0: i32, %arg1: memref<1x4x16x256xf32, #tpu.memory_space<vmem>>, %arg2: memref<1x4x16x256xf32, #tpu.memory_space<vmem>>, %arg3: memref<8x16x20xf32, #tpu.memory_space<vmem>>, %arg4: memref<8x16x20xf32, #tpu.memory_space<vmem>>, %arg5: memref<32x16xf32, #tpu.memory_space<vmem>>, %arg6: memref<1x8x32x256xf32, #tpu.memory_space<vmem>>, %arg7: memref<1x2x8x256xf32, #tpu.memory_space<vmem>>, %arg8: memref<5x4x16x256xf32, #tpu.memory_space<vmem>>, %arg9: memref<5x4x16x256xf32, #tpu.memory_space<vmem>>) attributes {dimension_semantics = [#tpu.dimension_semantics<parallel>], iteration_bounds = array<i64: 2>, scalar_prefetch = 0 : i64, scratch_operands = 2 : i64, tpu.core_type = #tpu.core_type<tc>, window_params = [{transform_indices = @transform_0, window_bounds = array<i64: 1, 4, 16, 256>}, {transform_indices = @transform_1, window_bounds = array<i64: 1, 4, 16, 256>}, {pipeline_mode = #tpu.pipeline_mode<synchronous>, transform_indices = @transform_2, window_bounds = array<i64: 8, 16, 20>}, {pipeline_mode = #tpu.pipeline_mode<synchronous>, transform_indices = @transform_3, window_bounds = array<i64: 8, 16, 20>}, {pipeline_mode = #tpu.pipeline_mode<synchronous>, transform_indices = @transform_4, window_bounds = array<i64: 32, 16>}, {transform_indices = @transform_5, window_bounds = array<i64: 1, 8, 32, 256>}, {transform_indices = @transform_6, window_bounds = array<i64: 1, 2, 8, 256>}]} {
    %cst = arith.constant 0.000000e+00 : f32
    %0 = vector.broadcast %cst : f32 to vector<4x16x2xf32>
    %c0 = arith.constant 0 : index
    %c0_0 = arith.constant 0 : index
    %c0_1 = arith.constant 0 : index
    %c0_2 = arith.constant 0 : index
    %1 = vector.load %arg8[%c0, %c0_0, %c0_1, %c0_2] : memref<5x4x16x256xf32, #tpu.memory_space<vmem>>, vector<1x4x16x2xf32>
    %2 = vector.shape_cast %1 : vector<1x4x16x2xf32> to vector<4x16x2xf32>
    %3 = vector.shape_cast %0 : vector<4x16x2xf32> to vector<1x4x16x2xf32>
    tpu.vector_store %arg8[%c0, %c0_0, %c0_1, %c0_2], %3 {strides = array<i32>} : memref<5x4x16x256xf32, #tpu.memory_space<vmem>>, vector<1x4x16x2xf32>,
    %c0_3 = arith.constant 0 : index
    %c0_4 = arith.constant 0 : index
    %c0_5 = arith.constant 0 : index
    %c0_6 = arith.constant 0 : index
    %4 = vector.load %arg9[%c0_3, %c0_4, %c0_5, %c0_6] : memref<5x4x16x256xf32, #tpu.memory_space<vmem>>, vector<1x4x16x2xf32>
    %5 = vector.shape_cast %4 : vector<1x4x16x2xf32> to vector<4x16x2xf32>
    %6 = vector.shape_cast %0 : vector<4x16x2xf32> to vector<1x4x16x2xf32>
    tpu.vector_store %arg9[%c0_3, %c0_4, %c0_5, %c0_6], %6 {strides = array<i32>} : memref<5x4x16x256xf32, #tpu.memory_space<vmem>>, vector<1x4x16x2xf32>,
    %c0_7 = arith.constant 0 : index
    %c0_8 = arith.constant 0 : index
    %c0_9 = arith.constant 0 : index
    %c0_10 = arith.constant 0 : index
    %7 = vector.load %arg1[%c0_7, %c0_8, %c0_9, %c0_10] : memref<1x4x16x256xf32, #tpu.memory_space<vmem>>, vector<1x4x16x254xf32>
    %8 = vector.shape_cast %7 : vector<1x4x16x254xf32> to vector<4x16x254xf32>
    %c0_11 = arith.constant 0 : index
    %c0_12 = arith.constant 0 : index
    %c0_13 = arith.constant 0 : index
    %c2 = arith.constant 2 : index
    %9 = vector.load %arg8[%c0_11, %c0_12, %c0_13, %c2] : memref<5x4x16x256xf32, #tpu.memory_space<vmem>>, vector<1x4x16x254xf32>
    %10 = vector.shape_cast %9 : vector<1x4x16x254xf32> to vector<4x16x254xf32>
    %11 = vector.shape_cast %8 : vector<4x16x254xf32> to vector<1x4x16x254xf32>
    tpu.vector_store %arg8[%c0_11, %c0_12, %c0_13, %c2], %11 {strides = array<i32>} : memref<5x4x16x256xf32, #tpu.memory_space<vmem>>, vector<1x4x16x254xf32>,
    %c0_14 = arith.constant 0 : index
    %c0_15 = arith.constant 0 : index
    %c0_16 = arith.constant 0 : index
    %c0_17 = arith.constant 0 : index
    %12 = vector.load %arg2[%c0_14, %c0_15, %c0_16, %c0_17] : memref<1x4x16x256xf32, #tpu.memory_space<vmem>>, vector<1x4x16x254xf32>
    %13 = vector.shape_cast %12 : vector<1x4x16x254xf32> to vector<4x16x254xf32>
    %c0_18 = arith.constant 0 : index
    %c0_19 = arith.constant 0 : index
    %c0_20 = arith.constant 0 : index
    %c2_21 = arith.constant 2 : index
    %14 = vector.load %arg9[%c0_18, %c0_19, %c0_20, %c2_21] : memref<5x4x16x256xf32, #tpu.memory_space<vmem>>, vector<1x4x16x254xf32>
    %15 = vector.shape_cast %14 : vector<1x4x16x254xf32> to vector<4x16x254xf32>
    %16 = vector.shape_cast %13 : vector<4x16x254xf32> to vector<1x4x16x254xf32>
    tpu.vector_store %arg9[%c0_18, %c0_19, %c0_20, %c2_21], %16 {strides = array<i32>} : memref<5x4x16x256xf32, #tpu.memory_space<vmem>>, vector<1x4x16x254xf32>,
    %cst_22 = arith.constant 0.000000e+00 : f32
    %17 = vector.broadcast %cst_22 : f32 to vector<4x16x1xf32>
    %c1 = arith.constant 1 : index
    %c0_23 = arith.constant 0 : index
    %c0_24 = arith.constant 0 : index
    %c0_25 = arith.constant 0 : index
    %18 = vector.load %arg8[%c1, %c0_23, %c0_24, %c0_25] : memref<5x4x16x256xf32, #tpu.memory_space<vmem>>, vector<1x4x16x1xf32>
    %19 = vector.shape_cast %18 : vector<1x4x16x1xf32> to vector<4x16x1xf32>
    %20 = vector.shape_cast %17 : vector<4x16x1xf32> to vector<1x4x16x1xf32>
    tpu.vector_store %arg8[%c1, %c0_23, %c0_24, %c0_25], %20 {strides = array<i32>} : memref<5x4x16x256xf32, #tpu.memory_space<vmem>>, vector<1x4x16x1xf32>,
    %c1_26 = arith.constant 1 : index
    %c0_27 = arith.constant 0 : index
    %c0_28 = arith.constant 0 : index
    %c0_29 = arith.constant 0 : index
    %21 = vector.load %arg9[%c1_26, %c0_27, %c0_28, %c0_29] : memref<5x4x16x256xf32, #tpu.memory_space<vmem>>, vector<1x4x16x1xf32>
    %22 = vector.shape_cast %21 : vector<1x4x16x1xf32> to vector<4x16x1xf32>
    %23 = vector.shape_cast %17 : vector<4x16x1xf32> to vector<1x4x16x1xf32>
    tpu.vector_store %arg9[%c1_26, %c0_27, %c0_28, %c0_29], %23 {strides = array<i32>} : memref<5x4x16x256xf32, #tpu.memory_space<vmem>>, vector<1x4x16x1xf32>,
    %c0_30 = arith.constant 0 : index
    %c0_31 = arith.constant 0 : index
    %c0_32 = arith.constant 0 : index
    %c0_33 = arith.constant 0 : index
    %24 = vector.load %arg1[%c0_30, %c0_31, %c0_32, %c0_33] : memref<1x4x16x256xf32, #tpu.memory_space<vmem>>, vector<1x4x16x255xf32>
    %25 = vector.shape_cast %24 : vector<1x4x16x255xf32> to vector<4x16x255xf32>
    %c1_34 = arith.constant 1 : index
    %c0_35 = arith.constant 0 : index
    %c0_36 = arith.constant 0 : index
    %c1_37 = arith.constant 1 : index
    %26 = vector.load %arg8[%c1_34, %c0_35, %c0_36, %c1_37] : memref<5x4x16x256xf32, #tpu.memory_space<vmem>>, vector<1x4x16x255xf32>
    %27 = vector.shape_cast %26 : vector<1x4x16x255xf32> to vector<4x16x255xf32>
    %28 = vector.shape_cast %25 : vector<4x16x255xf32> to vector<1x4x16x255xf32>
    tpu.vector_store %arg8[%c1_34, %c0_35, %c0_36, %c1_37], %28 {strides = array<i32>} : memref<5x4x16x256xf32, #tpu.memory_space<vmem>>, vector<1x4x16x255xf32>,
    %c0_38 = arith.constant 0 : index
    %c0_39 = arith.constant 0 : index
    %c0_40 = arith.constant 0 : index
    %c0_41 = arith.constant 0 : index
    %29 = vector.load %arg2[%c0_38, %c0_39, %c0_40, %c0_41] : memref<1x4x16x256xf32, #tpu.memory_space<vmem>>, vector<1x4x16x255xf32>
    %30 = vector.shape_cast %29 : vector<1x4x16x255xf32> to vector<4x16x255xf32>
    %c1_42 = arith.constant 1 : index
    %c0_43 = arith.constant 0 : index
    %c0_44 = arith.constant 0 : index
    %c1_45 = arith.constant 1 : index
    %31 = vector.load %arg9[%c1_42, %c0_43, %c0_44, %c1_45] : memref<5x4x16x256xf32, #tpu.memory_space<vmem>>, vector<1x4x16x255xf32>
    %32 = vector.shape_cast %31 : vector<1x4x16x255xf32> to vector<4x16x255xf32>
    %33 = vector.shape_cast %30 : vector<4x16x255xf32> to vector<1x4x16x255xf32>
    tpu.vector_store %arg9[%c1_42, %c0_43, %c0_44, %c1_45], %33 {strides = array<i32>} : memref<5x4x16x256xf32, #tpu.memory_space<vmem>>, vector<1x4x16x255xf32>,
    %c0_46 = arith.constant 0 : index
    %c0_47 = arith.constant 0 : index
    %c0_48 = arith.constant 0 : index
    %c0_49 = arith.constant 0 : index
    %34 = vector.load %arg1[%c0_46, %c0_47, %c0_48, %c0_49] : memref<1x4x16x256xf32, #tpu.memory_space<vmem>>, vector<1x4x16x256xf32>
    %35 = vector.shape_cast %34 : vector<1x4x16x256xf32> to vector<4x16x256xf32>
    %c2_50 = arith.constant 2 : index
    %c0_51 = arith.constant 0 : index
    %c0_52 = arith.constant 0 : index
    %c0_53 = arith.constant 0 : index
    %36 = vector.load %arg8[%c2_50, %c0_51, %c0_52, %c0_53] : memref<5x4x16x256xf32, #tpu.memory_space<vmem>>, vector<1x4x16x256xf32>
    %37 = vector.shape_cast %36 : vector<1x4x16x256xf32> to vector<4x16x256xf32>
    %38 = vector.shape_cast %35 : vector<4x16x256xf32> to vector<1x4x16x256xf32>
    tpu.vector_store %arg8[%c2_50, %c0_51, %c0_52, %c0_53], %38 {strides = array<i32>} : memref<5x4x16x256xf32, #tpu.memory_space<vmem>>, vector<1x4x16x256xf32>,
    %c0_54 = arith.constant 0 : index
    %c0_55 = arith.constant 0 : index
    %c0_56 = arith.constant 0 : index
    %c0_57 = arith.constant 0 : index
    %39 = vector.load %arg2[%c0_54, %c0_55, %c0_56, %c0_57] : memref<1x4x16x256xf32, #tpu.memory_space<vmem>>, vector<1x4x16x256xf32>
    %40 = vector.shape_cast %39 : vector<1x4x16x256xf32> to vector<4x16x256xf32>
    %c2_58 = arith.constant 2 : index
    %c0_59 = arith.constant 0 : index
    %c0_60 = arith.constant 0 : index
    %c0_61 = arith.constant 0 : index
    %41 = vector.load %arg9[%c2_58, %c0_59, %c0_60, %c0_61] : memref<5x4x16x256xf32, #tpu.memory_space<vmem>>, vector<1x4x16x256xf32>
    %42 = vector.shape_cast %41 : vector<1x4x16x256xf32> to vector<4x16x256xf32>
    %43 = vector.shape_cast %40 : vector<4x16x256xf32> to vector<1x4x16x256xf32>
    tpu.vector_store %arg9[%c2_58, %c0_59, %c0_60, %c0_61], %43 {strides = array<i32>} : memref<5x4x16x256xf32, #tpu.memory_space<vmem>>, vector<1x4x16x256xf32>,
    %cst_62 = arith.constant 0.000000e+00 : f32
    %44 = vector.broadcast %cst_62 : f32 to vector<4x16x1xf32>
    %c3 = arith.constant 3 : index
    %c0_63 = arith.constant 0 : index
    %c0_64 = arith.constant 0 : index
    %c255 = arith.constant 255 : index
    %45 = vector.load %arg8[%c3, %c0_63, %c0_64, %c255] : memref<5x4x16x256xf32, #tpu.memory_space<vmem>>, vector<1x4x16x1xf32>
    %46 = vector.shape_cast %45 : vector<1x4x16x1xf32> to vector<4x16x1xf32>
    %47 = vector.shape_cast %44 : vector<4x16x1xf32> to vector<1x4x16x1xf32>
    tpu.vector_store %arg8[%c3, %c0_63, %c0_64, %c255], %47 {strides = array<i32>} : memref<5x4x16x256xf32, #tpu.memory_space<vmem>>, vector<1x4x16x1xf32>,
    %c3_65 = arith.constant 3 : index
    %c0_66 = arith.constant 0 : index
    %c0_67 = arith.constant 0 : index
    %c255_68 = arith.constant 255 : index
    %48 = vector.load %arg9[%c3_65, %c0_66, %c0_67, %c255_68] : memref<5x4x16x256xf32, #tpu.memory_space<vmem>>, vector<1x4x16x1xf32>
    %49 = vector.shape_cast %48 : vector<1x4x16x1xf32> to vector<4x16x1xf32>
    %50 = vector.shape_cast %44 : vector<4x16x1xf32> to vector<1x4x16x1xf32>
    tpu.vector_store %arg9[%c3_65, %c0_66, %c0_67, %c255_68], %50 {strides = array<i32>} : memref<5x4x16x256xf32, #tpu.memory_space<vmem>>, vector<1x4x16x1xf32>,
    %c0_69 = arith.constant 0 : index
    %c0_70 = arith.constant 0 : index
    %c0_71 = arith.constant 0 : index
    %c1_72 = arith.constant 1 : index
    %51 = vector.load %arg1[%c0_69, %c0_70, %c0_71, %c1_72] : memref<1x4x16x256xf32, #tpu.memory_space<vmem>>, vector<1x4x16x255xf32>
    %52 = vector.shape_cast %51 : vector<1x4x16x255xf32> to vector<4x16x255xf32>
    %c3_73 = arith.constant 3 : index
    %c0_74 = arith.constant 0 : index
    %c0_75 = arith.constant 0 : index
    %c0_76 = arith.constant 0 : index
    %53 = vector.load %arg8[%c3_73, %c0_74, %c0_75, %c0_76] : memref<5x4x16x256xf32, #tpu.memory_space<vmem>>, vector<1x4x16x255xf32>
    %54 = vector.shape_cast %53 : vector<1x4x16x255xf32> to vector<4x16x255xf32>
    %55 = vector.shape_cast %52 : vector<4x16x255xf32> to vector<1x4x16x255xf32>
    tpu.vector_store %arg8[%c3_73, %c0_74, %c0_75, %c0_76], %55 {strides = array<i32>} : memref<5x4x16x256xf32, #tpu.memory_space<vmem>>, vector<1x4x16x255xf32>,
    %c0_77 = arith.constant 0 : index
    %c0_78 = arith.constant 0 : index
    %c0_79 = arith.constant 0 : index
    %c1_80 = arith.constant 1 : index
    %56 = vector.load %arg2[%c0_77, %c0_78, %c0_79, %c1_80] : memref<1x4x16x256xf32, #tpu.memory_space<vmem>>, vector<1x4x16x255xf32>
    %57 = vector.shape_cast %56 : vector<1x4x16x255xf32> to vector<4x16x255xf32>
    %c3_81 = arith.constant 3 : index
    %c0_82 = arith.constant 0 : index
    %c0_83 = arith.constant 0 : index
    %c0_84 = arith.constant 0 : index
    %58 = vector.load %arg9[%c3_81, %c0_82, %c0_83, %c0_84] : memref<5x4x16x256xf32, #tpu.memory_space<vmem>>, vector<1x4x16x255xf32>
    %59 = vector.shape_cast %58 : vector<1x4x16x255xf32> to vector<4x16x255xf32>
    %60 = vector.shape_cast %57 : vector<4x16x255xf32> to vector<1x4x16x255xf32>
    tpu.vector_store %arg9[%c3_81, %c0_82, %c0_83, %c0_84], %60 {strides = array<i32>} : memref<5x4x16x256xf32, #tpu.memory_space<vmem>>, vector<1x4x16x255xf32>,
    %cst_85 = arith.constant 0.000000e+00 : f32
    %61 = vector.broadcast %cst_85 : f32 to vector<4x16x2xf32>
    %c4 = arith.constant 4 : index
    %c0_86 = arith.constant 0 : index
    %c0_87 = arith.constant 0 : index
    %c254 = arith.constant 254 : index
    %62 = vector.load %arg8[%c4, %c0_86, %c0_87, %c254] : memref<5x4x16x256xf32, #tpu.memory_space<vmem>>, vector<1x4x16x2xf32>
    %63 = vector.shape_cast %62 : vector<1x4x16x2xf32> to vector<4x16x2xf32>
    %64 = vector.shape_cast %61 : vector<4x16x2xf32> to vector<1x4x16x2xf32>
    tpu.vector_store %arg8[%c4, %c0_86, %c0_87, %c254], %64 {strides = array<i32>} : memref<5x4x16x256xf32, #tpu.memory_space<vmem>>, vector<1x4x16x2xf32>,
    %c4_88 = arith.constant 4 : index
    %c0_89 = arith.constant 0 : index
    %c0_90 = arith.constant 0 : index
    %c254_91 = arith.constant 254 : index
    %65 = vector.load %arg9[%c4_88, %c0_89, %c0_90, %c254_91] : memref<5x4x16x256xf32, #tpu.memory_space<vmem>>, vector<1x4x16x2xf32>
    %66 = vector.shape_cast %65 : vector<1x4x16x2xf32> to vector<4x16x2xf32>
    %67 = vector.shape_cast %61 : vector<4x16x2xf32> to vector<1x4x16x2xf32>
    tpu.vector_store %arg9[%c4_88, %c0_89, %c0_90, %c254_91], %67 {strides = array<i32>} : memref<5x4x16x256xf32, #tpu.memory_space<vmem>>, vector<1x4x16x2xf32>,
    %c0_92 = arith.constant 0 : index
    %c0_93 = arith.constant 0 : index
    %c0_94 = arith.constant 0 : index
    %c2_95 = arith.constant 2 : index
    %68 = vector.load %arg1[%c0_92, %c0_93, %c0_94, %c2_95] : memref<1x4x16x256xf32, #tpu.memory_space<vmem>>, vector<1x4x16x254xf32>
    %69 = vector.shape_cast %68 : vector<1x4x16x254xf32> to vector<4x16x254xf32>
    %c4_96 = arith.constant 4 : index
    %c0_97 = arith.constant 0 : index
    %c0_98 = arith.constant 0 : index
    %c0_99 = arith.constant 0 : index
    %70 = vector.load %arg8[%c4_96, %c0_97, %c0_98, %c0_99] : memref<5x4x16x256xf32, #tpu.memory_space<vmem>>, vector<1x4x16x254xf32>
    %71 = vector.shape_cast %70 : vector<1x4x16x254xf32> to vector<4x16x254xf32>
    %72 = vector.shape_cast %69 : vector<4x16x254xf32> to vector<1x4x16x254xf32>
    tpu.vector_store %arg8[%c4_96, %c0_97, %c0_98, %c0_99], %72 {strides = array<i32>} : memref<5x4x16x256xf32, #tpu.memory_space<vmem>>, vector<1x4x16x254xf32>,
    %c0_100 = arith.constant 0 : index
    %c0_101 = arith.constant 0 : index
    %c0_102 = arith.constant 0 : index
    %c2_103 = arith.constant 2 : index
    %73 = vector.load %arg2[%c0_100, %c0_101, %c0_102, %c2_103] : memref<1x4x16x256xf32, #tpu.memory_space<vmem>>, vector<1x4x16x254xf32>
    %74 = vector.shape_cast %73 : vector<1x4x16x254xf32> to vector<4x16x254xf32>
    %c4_104 = arith.constant 4 : index
    %c0_105 = arith.constant 0 : index
    %c0_106 = arith.constant 0 : index
    %c0_107 = arith.constant 0 : index
    %75 = vector.load %arg9[%c4_104, %c0_105, %c0_106, %c0_107] : memref<5x4x16x256xf32, #tpu.memory_space<vmem>>, vector<1x4x16x254xf32>
    %76 = vector.shape_cast %75 : vector<1x4x16x254xf32> to vector<4x16x254xf32>
    %77 = vector.shape_cast %74 : vector<4x16x254xf32> to vector<1x4x16x254xf32>
    tpu.vector_store %arg9[%c4_104, %c0_105, %c0_106, %c0_107], %77 {strides = array<i32>} : memref<5x4x16x256xf32, #tpu.memory_space<vmem>>, vector<1x4x16x254xf32>,
    %c0_108 = arith.constant 0 : index
    %c0_109 = arith.constant 0 : index
    %78 = vector.load %arg5[%c0_108, %c0_109] : memref<32x16xf32, #tpu.memory_space<vmem>>, vector<32x16xf32>
    %c0_i32 = arith.constant 0 : i32
    %c8_i32 = arith.constant 8 : i32
    %79 = arith.addi %c0_i32, %c8_i32 : i32
    %c1_i32 = arith.constant 1 : i32
    scf.for %arg10 = %c0_i32 to %79 step %c1_i32  : i32 {
      %91 = arith.index_cast %arg10 : i32 to index
      %c0_125 = arith.constant 0 : index
      %c0_126 = arith.constant 0 : index
      %92 = vector.load %arg3[%91, %c0_125, %c0_126] : memref<8x16x20xf32, #tpu.memory_space<vmem>>, vector<1x16x20xf32>
      %93 = vector.shape_cast %92 : vector<1x16x20xf32> to vector<16x20xf32>
      %94 = arith.index_cast %arg10 : i32 to index
      %c0_127 = arith.constant 0 : index
      %c0_128 = arith.constant 0 : index
      %95 = vector.load %arg4[%94, %c0_127, %c0_128] : memref<8x16x20xf32, #tpu.memory_space<vmem>>, vector<1x16x20xf32>
      %96 = vector.shape_cast %95 : vector<1x16x20xf32> to vector<16x20xf32>
      %cst_129 = arith.constant 0.000000e+00 : f32
      %97 = vector.broadcast %cst_129 : f32 to vector<16x256xf32>
      %cst_130 = arith.constant 0.000000e+00 : f32
      %98 = vector.broadcast %cst_130 : f32 to vector<16x256xf32>
      %c0_131 = arith.constant 0 : index
      %c0_132 = arith.constant 0 : index
      %c0_133 = arith.constant 0 : index
      %c0_134 = arith.constant 0 : index
      %99 = vector.load %arg8[%c0_131, %c0_132, %c0_133, %c0_134] : memref<5x4x16x256xf32, #tpu.memory_space<vmem>>, vector<1x1x16x256xf32>
      %100 = vector.shape_cast %99 : vector<1x1x16x256xf32> to vector<16x256xf32>
      %c0_135 = arith.constant 0 : index
      %c0_136 = arith.constant 0 : index
      %c0_137 = arith.constant 0 : index
      %c0_138 = arith.constant 0 : index
      %101 = vector.load %arg9[%c0_135, %c0_136, %c0_137, %c0_138] : memref<5x4x16x256xf32, #tpu.memory_space<vmem>>, vector<1x1x16x256xf32>
      %102 = vector.shape_cast %101 : vector<1x1x16x256xf32> to vector<16x256xf32>
      %103 = vector.extract_strided_slice %93 {offsets = [0, 0], sizes = [16, 1], strides = [1, 1]} : vector<16x20xf32> to vector<16x1xf32>
      %104 = vector.extract_strided_slice %96 {offsets = [0, 0], sizes = [16, 1], strides = [1, 1]} : vector<16x20xf32> to vector<16x1xf32>
      %105 = vector.broadcast %103 : vector<16x1xf32> to vector<16x256xf32>
      %106 = arith.mulf %105, %100 : vector<16x256xf32>
      %107 = arith.addf %97, %106 : vector<16x256xf32>
      %108 = vector.broadcast %104 : vector<16x1xf32> to vector<16x256xf32>
      %109 = arith.mulf %108, %102 : vector<16x256xf32>
      %110 = arith.subf %107, %109 : vector<16x256xf32>
      %111 = vector.broadcast %103 : vector<16x1xf32> to vector<16x256xf32>
      %112 = arith.mulf %111, %102 : vector<16x256xf32>
      %113 = arith.addf %98, %112 : vector<16x256xf32>
      %114 = vector.broadcast %104 : vector<16x1xf32> to vector<16x256xf32>
      %115 = arith.mulf %114, %100 : vector<16x256xf32>
      %116 = arith.addf %113, %115 : vector<16x256xf32>
      %c0_139 = arith.constant 0 : index
      %c1_140 = arith.constant 1 : index
      %c0_141 = arith.constant 0 : index
      %c0_142 = arith.constant 0 : index
      %117 = vector.load %arg8[%c0_139, %c1_140, %c0_141, %c0_142] : memref<5x4x16x256xf32, #tpu.memory_space<vmem>>, vector<1x1x16x256xf32>
      %118 = vector.shape_cast %117 : vector<1x1x16x256xf32> to vector<16x256xf32>
      %c0_143 = arith.constant 0 : index
      %c1_144 = arith.constant 1 : index
      %c0_145 = arith.constant 0 : index
      %c0_146 = arith.constant 0 : index
      %119 = vector.load %arg9[%c0_143, %c1_144, %c0_145, %c0_146] : memref<5x4x16x256xf32, #tpu.memory_space<vmem>>, vector<1x1x16x256xf32>
      %120 = vector.shape_cast %119 : vector<1x1x16x256xf32> to vector<16x256xf32>
      %121 = vector.extract_strided_slice %93 {offsets = [0, 1], sizes = [16, 1], strides = [1, 1]} : vector<16x20xf32> to vector<16x1xf32>
      %122 = vector.extract_strided_slice %96 {offsets = [0, 1], sizes = [16, 1], strides = [1, 1]} : vector<16x20xf32> to vector<16x1xf32>
      %123 = vector.broadcast %121 : vector<16x1xf32> to vector<16x256xf32>
      %124 = arith.mulf %123, %118 : vector<16x256xf32>
      %125 = arith.addf %110, %124 : vector<16x256xf32>
      %126 = vector.broadcast %122 : vector<16x1xf32> to vector<16x256xf32>
      %127 = arith.mulf %126, %120 : vector<16x256xf32>
      %128 = arith.subf %125, %127 : vector<16x256xf32>
      %129 = vector.broadcast %121 : vector<16x1xf32> to vector<16x256xf32>
      %130 = arith.mulf %129, %120 : vector<16x256xf32>
      %131 = arith.addf %116, %130 : vector<16x256xf32>
      %132 = vector.broadcast %122 : vector<16x1xf32> to vector<16x256xf32>
      %133 = arith.mulf %132, %118 : vector<16x256xf32>
      %134 = arith.addf %131, %133 : vector<16x256xf32>
      %c0_147 = arith.constant 0 : index
      %c2_148 = arith.constant 2 : index
      %c0_149 = arith.constant 0 : index
      %c0_150 = arith.constant 0 : index
      %135 = vector.load %arg8[%c0_147, %c2_148, %c0_149, %c0_150] : memref<5x4x16x256xf32, #tpu.memory_space<vmem>>, vector<1x1x16x256xf32>
      %136 = vector.shape_cast %135 : vector<1x1x16x256xf32> to vector<16x256xf32>
      %c0_151 = arith.constant 0 : index
      %c2_152 = arith.constant 2 : index
      %c0_153 = arith.constant 0 : index
      %c0_154 = arith.constant 0 : index
      %137 = vector.load %arg9[%c0_151, %c2_152, %c0_153, %c0_154] : memref<5x4x16x256xf32, #tpu.memory_space<vmem>>, vector<1x1x16x256xf32>
      %138 = vector.shape_cast %137 : vector<1x1x16x256xf32> to vector<16x256xf32>
      %139 = vector.extract_strided_slice %93 {offsets = [0, 2], sizes = [16, 1], strides = [1, 1]} : vector<16x20xf32> to vector<16x1xf32>
      %140 = vector.extract_strided_slice %96 {offsets = [0, 2], sizes = [16, 1], strides = [1, 1]} : vector<16x20xf32> to vector<16x1xf32>
      %141 = vector.broadcast %139 : vector<16x1xf32> to vector<16x256xf32>
      %142 = arith.mulf %141, %136 : vector<16x256xf32>
      %143 = arith.addf %128, %142 : vector<16x256xf32>
      %144 = vector.broadcast %140 : vector<16x1xf32> to vector<16x256xf32>
      %145 = arith.mulf %144, %138 : vector<16x256xf32>
      %146 = arith.subf %143, %145 : vector<16x256xf32>
      %147 = vector.broadcast %139 : vector<16x1xf32> to vector<16x256xf32>
      %148 = arith.mulf %147, %138 : vector<16x256xf32>
      %149 = arith.addf %134, %148 : vector<16x256xf32>
      %150 = vector.broadcast %140 : vector<16x1xf32> to vector<16x256xf32>
      %151 = arith.mulf %150, %136 : vector<16x256xf32>
      %152 = arith.addf %149, %151 : vector<16x256xf32>
      %c0_155 = arith.constant 0 : index
      %c3_156 = arith.constant 3 : index
      %c0_157 = arith.constant 0 : index
      %c0_158 = arith.constant 0 : index
      %153 = vector.load %arg8[%c0_155, %c3_156, %c0_157, %c0_158] : memref<5x4x16x256xf32, #tpu.memory_space<vmem>>, vector<1x1x16x256xf32>
      %154 = vector.shape_cast %153 : vector<1x1x16x256xf32> to vector<16x256xf32>
      %c0_159 = arith.constant 0 : index
      %c3_160 = arith.constant 3 : index
      %c0_161 = arith.constant 0 : index
      %c0_162 = arith.constant 0 : index
      %155 = vector.load %arg9[%c0_159, %c3_160, %c0_161, %c0_162] : memref<5x4x16x256xf32, #tpu.memory_space<vmem>>, vector<1x1x16x256xf32>
      %156 = vector.shape_cast %155 : vector<1x1x16x256xf32> to vector<16x256xf32>
      %157 = vector.extract_strided_slice %93 {offsets = [0, 3], sizes = [16, 1], strides = [1, 1]} : vector<16x20xf32> to vector<16x1xf32>
      %158 = vector.extract_strided_slice %96 {offsets = [0, 3], sizes = [16, 1], strides = [1, 1]} : vector<16x20xf32> to vector<16x1xf32>
      %159 = vector.broadcast %157 : vector<16x1xf32> to vector<16x256xf32>
      %160 = arith.mulf %159, %154 : vector<16x256xf32>
      %161 = arith.addf %146, %160 : vector<16x256xf32>
      %162 = vector.broadcast %158 : vector<16x1xf32> to vector<16x256xf32>
      %163 = arith.mulf %162, %156 : vector<16x256xf32>
      %164 = arith.subf %161, %163 : vector<16x256xf32>
      %165 = vector.broadcast %157 : vector<16x1xf32> to vector<16x256xf32>
      %166 = arith.mulf %165, %156 : vector<16x256xf32>
      %167 = arith.addf %152, %166 : vector<16x256xf32>
      %168 = vector.broadcast %158 : vector<16x1xf32> to vector<16x256xf32>
      %169 = arith.mulf %168, %154 : vector<16x256xf32>
      %170 = arith.addf %167, %169 : vector<16x256xf32>
      %c1_163 = arith.constant 1 : index
      %c0_164 = arith.constant 0 : index
      %c0_165 = arith.constant 0 : index
      %c0_166 = arith.constant 0 : index
      %171 = vector.load %arg8[%c1_163, %c0_164, %c0_165, %c0_166] : memref<5x4x16x256xf32, #tpu.memory_space<vmem>>, vector<1x1x16x256xf32>
      %172 = vector.shape_cast %171 : vector<1x1x16x256xf32> to vector<16x256xf32>
      %c1_167 = arith.constant 1 : index
      %c0_168 = arith.constant 0 : index
      %c0_169 = arith.constant 0 : index
      %c0_170 = arith.constant 0 : index
      %173 = vector.load %arg9[%c1_167, %c0_168, %c0_169, %c0_170] : memref<5x4x16x256xf32, #tpu.memory_space<vmem>>, vector<1x1x16x256xf32>
      %174 = vector.shape_cast %173 : vector<1x1x16x256xf32> to vector<16x256xf32>
      %175 = vector.extract_strided_slice %93 {offsets = [0, 4], sizes = [16, 1], strides = [1, 1]} : vector<16x20xf32> to vector<16x1xf32>
      %176 = vector.extract_strided_slice %96 {offsets = [0, 4], sizes = [16, 1], strides = [1, 1]} : vector<16x20xf32> to vector<16x1xf32>
      %177 = vector.broadcast %175 : vector<16x1xf32> to vector<16x256xf32>
      %178 = arith.mulf %177, %172 : vector<16x256xf32>
      %179 = arith.addf %164, %178 : vector<16x256xf32>
      %180 = vector.broadcast %176 : vector<16x1xf32> to vector<16x256xf32>
      %181 = arith.mulf %180, %174 : vector<16x256xf32>
      %182 = arith.subf %179, %181 : vector<16x256xf32>
      %183 = vector.broadcast %175 : vector<16x1xf32> to vector<16x256xf32>
      %184 = arith.mulf %183, %174 : vector<16x256xf32>
      %185 = arith.addf %170, %184 : vector<16x256xf32>
      %186 = vector.broadcast %176 : vector<16x1xf32> to vector<16x256xf32>
      %187 = arith.mulf %186, %172 : vector<16x256xf32>
      %188 = arith.addf %185, %187 : vector<16x256xf32>
      %c1_171 = arith.constant 1 : index
      %c1_172 = arith.constant 1 : index
      %c0_173 = arith.constant 0 : index
      %c0_174 = arith.constant 0 : index
      %189 = vector.load %arg8[%c1_171, %c1_172, %c0_173, %c0_174] : memref<5x4x16x256xf32, #tpu.memory_space<vmem>>, vector<1x1x16x256xf32>
      %190 = vector.shape_cast %189 : vector<1x1x16x256xf32> to vector<16x256xf32>
      %c1_175 = arith.constant 1 : index
      %c1_176 = arith.constant 1 : index
      %c0_177 = arith.constant 0 : index
      %c0_178 = arith.constant 0 : index
      %191 = vector.load %arg9[%c1_175, %c1_176, %c0_177, %c0_178] : memref<5x4x16x256xf32, #tpu.memory_space<vmem>>, vector<1x1x16x256xf32>
      %192 = vector.shape_cast %191 : vector<1x1x16x256xf32> to vector<16x256xf32>
      %193 = vector.extract_strided_slice %93 {offsets = [0, 5], sizes = [16, 1], strides = [1, 1]} : vector<16x20xf32> to vector<16x1xf32>
      %194 = vector.extract_strided_slice %96 {offsets = [0, 5], sizes = [16, 1], strides = [1, 1]} : vector<16x20xf32> to vector<16x1xf32>
      %195 = vector.broadcast %193 : vector<16x1xf32> to vector<16x256xf32>
      %196 = arith.mulf %195, %190 : vector<16x256xf32>
      %197 = arith.addf %182, %196 : vector<16x256xf32>
      %198 = vector.broadcast %194 : vector<16x1xf32> to vector<16x256xf32>
      %199 = arith.mulf %198, %192 : vector<16x256xf32>
      %200 = arith.subf %197, %199 : vector<16x256xf32>
      %201 = vector.broadcast %193 : vector<16x1xf32> to vector<16x256xf32>
      %202 = arith.mulf %201, %192 : vector<16x256xf32>
      %203 = arith.addf %188, %202 : vector<16x256xf32>
      %204 = vector.broadcast %194 : vector<16x1xf32> to vector<16x256xf32>
      %205 = arith.mulf %204, %190 : vector<16x256xf32>
      %206 = arith.addf %203, %205 : vector<16x256xf32>
      %c1_179 = arith.constant 1 : index
      %c2_180 = arith.constant 2 : index
      %c0_181 = arith.constant 0 : index
      %c0_182 = arith.constant 0 : index
      %207 = vector.load %arg8[%c1_179, %c2_180, %c0_181, %c0_182] : memref<5x4x16x256xf32, #tpu.memory_space<vmem>>, vector<1x1x16x256xf32>
      %208 = vector.shape_cast %207 : vector<1x1x16x256xf32> to vector<16x256xf32>
      %c1_183 = arith.constant 1 : index
      %c2_184 = arith.constant 2 : index
      %c0_185 = arith.constant 0 : index
      %c0_186 = arith.constant 0 : index
      %209 = vector.load %arg9[%c1_183, %c2_184, %c0_185, %c0_186] : memref<5x4x16x256xf32, #tpu.memory_space<vmem>>, vector<1x1x16x256xf32>
      %210 = vector.shape_cast %209 : vector<1x1x16x256xf32> to vector<16x256xf32>
      %211 = vector.extract_strided_slice %93 {offsets = [0, 6], sizes = [16, 1], strides = [1, 1]} : vector<16x20xf32> to vector<16x1xf32>
      %212 = vector.extract_strided_slice %96 {offsets = [0, 6], sizes = [16, 1], strides = [1, 1]} : vector<16x20xf32> to vector<16x1xf32>
      %213 = vector.broadcast %211 : vector<16x1xf32> to vector<16x256xf32>
      %214 = arith.mulf %213, %208 : vector<16x256xf32>
      %215 = arith.addf %200, %214 : vector<16x256xf32>
      %216 = vector.broadcast %212 : vector<16x1xf32> to vector<16x256xf32>
      %217 = arith.mulf %216, %210 : vector<16x256xf32>
      %218 = arith.subf %215, %217 : vector<16x256xf32>
      %219 = vector.broadcast %211 : vector<16x1xf32> to vector<16x256xf32>
      %220 = arith.mulf %219, %210 : vector<16x256xf32>
      %221 = arith.addf %206, %220 : vector<16x256xf32>
      %222 = vector.broadcast %212 : vector<16x1xf32> to vector<16x256xf32>
      %223 = arith.mulf %222, %208 : vector<16x256xf32>
      %224 = arith.addf %221, %223 : vector<16x256xf32>
      %c1_187 = arith.constant 1 : index
      %c3_188 = arith.constant 3 : index
      %c0_189 = arith.constant 0 : index
      %c0_190 = arith.constant 0 : index
      %225 = vector.load %arg8[%c1_187, %c3_188, %c0_189, %c0_190] : memref<5x4x16x256xf32, #tpu.memory_space<vmem>>, vector<1x1x16x256xf32>
      %226 = vector.shape_cast %225 : vector<1x1x16x256xf32> to vector<16x256xf32>
      %c1_191 = arith.constant 1 : index
      %c3_192 = arith.constant 3 : index
      %c0_193 = arith.constant 0 : index
      %c0_194 = arith.constant 0 : index
      %227 = vector.load %arg9[%c1_191, %c3_192, %c0_193, %c0_194] : memref<5x4x16x256xf32, #tpu.memory_space<vmem>>, vector<1x1x16x256xf32>
      %228 = vector.shape_cast %227 : vector<1x1x16x256xf32> to vector<16x256xf32>
      %229 = vector.extract_strided_slice %93 {offsets = [0, 7], sizes = [16, 1], strides = [1, 1]} : vector<16x20xf32> to vector<16x1xf32>
      %230 = vector.extract_strided_slice %96 {offsets = [0, 7], sizes = [16, 1], strides = [1, 1]} : vector<16x20xf32> to vector<16x1xf32>
      %231 = vector.broadcast %229 : vector<16x1xf32> to vector<16x256xf32>
      %232 = arith.mulf %231, %226 : vector<16x256xf32>
      %233 = arith.addf %218, %232 : vector<16x256xf32>
      %234 = vector.broadcast %230 : vector<16x1xf32> to vector<16x256xf32>
      %235 = arith.mulf %234, %228 : vector<16x256xf32>
      %236 = arith.subf %233, %235 : vector<16x256xf32>
      %237 = vector.broadcast %229 : vector<16x1xf32> to vector<16x256xf32>
      %238 = arith.mulf %237, %228 : vector<16x256xf32>
      %239 = arith.addf %224, %238 : vector<16x256xf32>
      %240 = vector.broadcast %230 : vector<16x1xf32> to vector<16x256xf32>
      %241 = arith.mulf %240, %226 : vector<16x256xf32>
      %242 = arith.addf %239, %241 : vector<16x256xf32>
      %c2_195 = arith.constant 2 : index
      %c0_196 = arith.constant 0 : index
      %c0_197 = arith.constant 0 : index
      %c0_198 = arith.constant 0 : index
      %243 = vector.load %arg8[%c2_195, %c0_196, %c0_197, %c0_198] : memref<5x4x16x256xf32, #tpu.memory_space<vmem>>, vector<1x1x16x256xf32>
      %244 = vector.shape_cast %243 : vector<1x1x16x256xf32> to vector<16x256xf32>
      %c2_199 = arith.constant 2 : index
      %c0_200 = arith.constant 0 : index
      %c0_201 = arith.constant 0 : index
      %c0_202 = arith.constant 0 : index
      %245 = vector.load %arg9[%c2_199, %c0_200, %c0_201, %c0_202] : memref<5x4x16x256xf32, #tpu.memory_space<vmem>>, vector<1x1x16x256xf32>
      %246 = vector.shape_cast %245 : vector<1x1x16x256xf32> to vector<16x256xf32>
      %247 = vector.extract_strided_slice %93 {offsets = [0, 8], sizes = [16, 1], strides = [1, 1]} : vector<16x20xf32> to vector<16x1xf32>
      %248 = vector.extract_strided_slice %96 {offsets = [0, 8], sizes = [16, 1], strides = [1, 1]} : vector<16x20xf32> to vector<16x1xf32>
      %249 = vector.broadcast %247 : vector<16x1xf32> to vector<16x256xf32>
      %250 = arith.mulf %249, %244 : vector<16x256xf32>
      %251 = arith.addf %236, %250 : vector<16x256xf32>
      %252 = vector.broadcast %248 : vector<16x1xf32> to vector<16x256xf32>
      %253 = arith.mulf %252, %246 : vector<16x256xf32>
      %254 = arith.subf %251, %253 : vector<16x256xf32>
      %255 = vector.broadcast %247 : vector<16x1xf32> to vector<16x256xf32>
      %256 = arith.mulf %255, %246 : vector<16x256xf32>
      %257 = arith.addf %242, %256 : vector<16x256xf32>
      %258 = vector.broadcast %248 : vector<16x1xf32> to vector<16x256xf32>
      %259 = arith.mulf %258, %244 : vector<16x256xf32>
      %260 = arith.addf %257, %259 : vector<16x256xf32>
      %c2_203 = arith.constant 2 : index
      %c1_204 = arith.constant 1 : index
      %c0_205 = arith.constant 0 : index
      %c0_206 = arith.constant 0 : index
      %261 = vector.load %arg8[%c2_203, %c1_204, %c0_205, %c0_206] : memref<5x4x16x256xf32, #tpu.memory_space<vmem>>, vector<1x1x16x256xf32>
      %262 = vector.shape_cast %261 : vector<1x1x16x256xf32> to vector<16x256xf32>
      %c2_207 = arith.constant 2 : index
      %c1_208 = arith.constant 1 : index
      %c0_209 = arith.constant 0 : index
      %c0_210 = arith.constant 0 : index
      %263 = vector.load %arg9[%c2_207, %c1_208, %c0_209, %c0_210] : memref<5x4x16x256xf32, #tpu.memory_space<vmem>>, vector<1x1x16x256xf32>
      %264 = vector.shape_cast %263 : vector<1x1x16x256xf32> to vector<16x256xf32>
      %265 = vector.extract_strided_slice %93 {offsets = [0, 9], sizes = [16, 1], strides = [1, 1]} : vector<16x20xf32> to vector<16x1xf32>
      %266 = vector.extract_strided_slice %96 {offsets = [0, 9], sizes = [16, 1], strides = [1, 1]} : vector<16x20xf32> to vector<16x1xf32>
      %267 = vector.broadcast %265 : vector<16x1xf32> to vector<16x256xf32>
      %268 = arith.mulf %267, %262 : vector<16x256xf32>
      %269 = arith.addf %254, %268 : vector<16x256xf32>
      %270 = vector.broadcast %266 : vector<16x1xf32> to vector<16x256xf32>
      %271 = arith.mulf %270, %264 : vector<16x256xf32>
      %272 = arith.subf %269, %271 : vector<16x256xf32>
      %273 = vector.broadcast %265 : vector<16x1xf32> to vector<16x256xf32>
      %274 = arith.mulf %273, %264 : vector<16x256xf32>
      %275 = arith.addf %260, %274 : vector<16x256xf32>
      %276 = vector.broadcast %266 : vector<16x1xf32> to vector<16x256xf32>
      %277 = arith.mulf %276, %262 : vector<16x256xf32>
      %278 = arith.addf %275, %277 : vector<16x256xf32>
      %c2_211 = arith.constant 2 : index
      %c2_212 = arith.constant 2 : index
      %c0_213 = arith.constant 0 : index
      %c0_214 = arith.constant 0 : index
      %279 = vector.load %arg8[%c2_211, %c2_212, %c0_213, %c0_214] : memref<5x4x16x256xf32, #tpu.memory_space<vmem>>, vector<1x1x16x256xf32>
      %280 = vector.shape_cast %279 : vector<1x1x16x256xf32> to vector<16x256xf32>
      %c2_215 = arith.constant 2 : index
      %c2_216 = arith.constant 2 : index
      %c0_217 = arith.constant 0 : index
      %c0_218 = arith.constant 0 : index
      %281 = vector.load %arg9[%c2_215, %c2_216, %c0_217, %c0_218] : memref<5x4x16x256xf32, #tpu.memory_space<vmem>>, vector<1x1x16x256xf32>
      %282 = vector.shape_cast %281 : vector<1x1x16x256xf32> to vector<16x256xf32>
      %283 = vector.extract_strided_slice %93 {offsets = [0, 10], sizes = [16, 1], strides = [1, 1]} : vector<16x20xf32> to vector<16x1xf32>
      %284 = vector.extract_strided_slice %96 {offsets = [0, 10], sizes = [16, 1], strides = [1, 1]} : vector<16x20xf32> to vector<16x1xf32>
      %285 = vector.broadcast %283 : vector<16x1xf32> to vector<16x256xf32>
      %286 = arith.mulf %285, %280 : vector<16x256xf32>
      %287 = arith.addf %272, %286 : vector<16x256xf32>
      %288 = vector.broadcast %284 : vector<16x1xf32> to vector<16x256xf32>
      %289 = arith.mulf %288, %282 : vector<16x256xf32>
      %290 = arith.subf %287, %289 : vector<16x256xf32>
      %291 = vector.broadcast %283 : vector<16x1xf32> to vector<16x256xf32>
      %292 = arith.mulf %291, %282 : vector<16x256xf32>
      %293 = arith.addf %278, %292 : vector<16x256xf32>
      %294 = vector.broadcast %284 : vector<16x1xf32> to vector<16x256xf32>
      %295 = arith.mulf %294, %280 : vector<16x256xf32>
      %296 = arith.addf %293, %295 : vector<16x256xf32>
      %c2_219 = arith.constant 2 : index
      %c3_220 = arith.constant 3 : index
      %c0_221 = arith.constant 0 : index
      %c0_222 = arith.constant 0 : index
      %297 = vector.load %arg8[%c2_219, %c3_220, %c0_221, %c0_222] : memref<5x4x16x256xf32, #tpu.memory_space<vmem>>, vector<1x1x16x256xf32>
      %298 = vector.shape_cast %297 : vector<1x1x16x256xf32> to vector<16x256xf32>
      %c2_223 = arith.constant 2 : index
      %c3_224 = arith.constant 3 : index
      %c0_225 = arith.constant 0 : index
      %c0_226 = arith.constant 0 : index
      %299 = vector.load %arg9[%c2_223, %c3_224, %c0_225, %c0_226] : memref<5x4x16x256xf32, #tpu.memory_space<vmem>>, vector<1x1x16x256xf32>
      %300 = vector.shape_cast %299 : vector<1x1x16x256xf32> to vector<16x256xf32>
      %301 = vector.extract_strided_slice %93 {offsets = [0, 11], sizes = [16, 1], strides = [1, 1]} : vector<16x20xf32> to vector<16x1xf32>
      %302 = vector.extract_strided_slice %96 {offsets = [0, 11], sizes = [16, 1], strides = [1, 1]} : vector<16x20xf32> to vector<16x1xf32>
      %303 = vector.broadcast %301 : vector<16x1xf32> to vector<16x256xf32>
      %304 = arith.mulf %303, %298 : vector<16x256xf32>
      %305 = arith.addf %290, %304 : vector<16x256xf32>
      %306 = vector.broadcast %302 : vector<16x1xf32> to vector<16x256xf32>
      %307 = arith.mulf %306, %300 : vector<16x256xf32>
      %308 = arith.subf %305, %307 : vector<16x256xf32>
      %309 = vector.broadcast %301 : vector<16x1xf32> to vector<16x256xf32>
      %310 = arith.mulf %309, %300 : vector<16x256xf32>
      %311 = arith.addf %296, %310 : vector<16x256xf32>
      %312 = vector.broadcast %302 : vector<16x1xf32> to vector<16x256xf32>
      %313 = arith.mulf %312, %298 : vector<16x256xf32>
      %314 = arith.addf %311, %313 : vector<16x256xf32>
      %c3_227 = arith.constant 3 : index
      %c0_228 = arith.constant 0 : index
      %c0_229 = arith.constant 0 : index
      %c0_230 = arith.constant 0 : index
      %315 = vector.load %arg8[%c3_227, %c0_228, %c0_229, %c0_230] : memref<5x4x16x256xf32, #tpu.memory_space<vmem>>, vector<1x1x16x256xf32>
      %316 = vector.shape_cast %315 : vector<1x1x16x256xf32> to vector<16x256xf32>
      %c3_231 = arith.constant 3 : index
      %c0_232 = arith.constant 0 : index
      %c0_233 = arith.constant 0 : index
      %c0_234 = arith.constant 0 : index
      %317 = vector.load %arg9[%c3_231, %c0_232, %c0_233, %c0_234] : memref<5x4x16x256xf32, #tpu.memory_space<vmem>>, vector<1x1x16x256xf32>
      %318 = vector.shape_cast %317 : vector<1x1x16x256xf32> to vector<16x256xf32>
      %319 = vector.extract_strided_slice %93 {offsets = [0, 12], sizes = [16, 1], strides = [1, 1]} : vector<16x20xf32> to vector<16x1xf32>
      %320 = vector.extract_strided_slice %96 {offsets = [0, 12], sizes = [16, 1], strides = [1, 1]} : vector<16x20xf32> to vector<16x1xf32>
      %321 = vector.broadcast %319 : vector<16x1xf32> to vector<16x256xf32>
      %322 = arith.mulf %321, %316 : vector<16x256xf32>
      %323 = arith.addf %308, %322 : vector<16x256xf32>
      %324 = vector.broadcast %320 : vector<16x1xf32> to vector<16x256xf32>
      %325 = arith.mulf %324, %318 : vector<16x256xf32>
      %326 = arith.subf %323, %325 : vector<16x256xf32>
      %327 = vector.broadcast %319 : vector<16x1xf32> to vector<16x256xf32>
      %328 = arith.mulf %327, %318 : vector<16x256xf32>
      %329 = arith.addf %314, %328 : vector<16x256xf32>
      %330 = vector.broadcast %320 : vector<16x1xf32> to vector<16x256xf32>
      %331 = arith.mulf %330, %316 : vector<16x256xf32>
      %332 = arith.addf %329, %331 : vector<16x256xf32>
      %c3_235 = arith.constant 3 : index
      %c1_236 = arith.constant 1 : index
      %c0_237 = arith.constant 0 : index
      %c0_238 = arith.constant 0 : index
      %333 = vector.load %arg8[%c3_235, %c1_236, %c0_237, %c0_238] : memref<5x4x16x256xf32, #tpu.memory_space<vmem>>, vector<1x1x16x256xf32>
      %334 = vector.shape_cast %333 : vector<1x1x16x256xf32> to vector<16x256xf32>
      %c3_239 = arith.constant 3 : index
      %c1_240 = arith.constant 1 : index
      %c0_241 = arith.constant 0 : index
      %c0_242 = arith.constant 0 : index
      %335 = vector.load %arg9[%c3_239, %c1_240, %c0_241, %c0_242] : memref<5x4x16x256xf32, #tpu.memory_space<vmem>>, vector<1x1x16x256xf32>
      %336 = vector.shape_cast %335 : vector<1x1x16x256xf32> to vector<16x256xf32>
      %337 = vector.extract_strided_slice %93 {offsets = [0, 13], sizes = [16, 1], strides = [1, 1]} : vector<16x20xf32> to vector<16x1xf32>
      %338 = vector.extract_strided_slice %96 {offsets = [0, 13], sizes = [16, 1], strides = [1, 1]} : vector<16x20xf32> to vector<16x1xf32>
      %339 = vector.broadcast %337 : vector<16x1xf32> to vector<16x256xf32>
      %340 = arith.mulf %339, %334 : vector<16x256xf32>
      %341 = arith.addf %326, %340 : vector<16x256xf32>
      %342 = vector.broadcast %338 : vector<16x1xf32> to vector<16x256xf32>
      %343 = arith.mulf %342, %336 : vector<16x256xf32>
      %344 = arith.subf %341, %343 : vector<16x256xf32>
      %345 = vector.broadcast %337 : vector<16x1xf32> to vector<16x256xf32>
      %346 = arith.mulf %345, %336 : vector<16x256xf32>
      %347 = arith.addf %332, %346 : vector<16x256xf32>
      %348 = vector.broadcast %338 : vector<16x1xf32> to vector<16x256xf32>
      %349 = arith.mulf %348, %334 : vector<16x256xf32>
      %350 = arith.addf %347, %349 : vector<16x256xf32>
      %c3_243 = arith.constant 3 : index
      %c2_244 = arith.constant 2 : index
      %c0_245 = arith.constant 0 : index
      %c0_246 = arith.constant 0 : index
      %351 = vector.load %arg8[%c3_243, %c2_244, %c0_245, %c0_246] : memref<5x4x16x256xf32, #tpu.memory_space<vmem>>, vector<1x1x16x256xf32>
      %352 = vector.shape_cast %351 : vector<1x1x16x256xf32> to vector<16x256xf32>
      %c3_247 = arith.constant 3 : index
      %c2_248 = arith.constant 2 : index
      %c0_249 = arith.constant 0 : index
      %c0_250 = arith.constant 0 : index
      %353 = vector.load %arg9[%c3_247, %c2_248, %c0_249, %c0_250] : memref<5x4x16x256xf32, #tpu.memory_space<vmem>>, vector<1x1x16x256xf32>
      %354 = vector.shape_cast %353 : vector<1x1x16x256xf32> to vector<16x256xf32>
      %355 = vector.extract_strided_slice %93 {offsets = [0, 14], sizes = [16, 1], strides = [1, 1]} : vector<16x20xf32> to vector<16x1xf32>
      %356 = vector.extract_strided_slice %96 {offsets = [0, 14], sizes = [16, 1], strides = [1, 1]} : vector<16x20xf32> to vector<16x1xf32>
      %357 = vector.broadcast %355 : vector<16x1xf32> to vector<16x256xf32>
      %358 = arith.mulf %357, %352 : vector<16x256xf32>
      %359 = arith.addf %344, %358 : vector<16x256xf32>
      %360 = vector.broadcast %356 : vector<16x1xf32> to vector<16x256xf32>
      %361 = arith.mulf %360, %354 : vector<16x256xf32>
      %362 = arith.subf %359, %361 : vector<16x256xf32>
      %363 = vector.broadcast %355 : vector<16x1xf32> to vector<16x256xf32>
      %364 = arith.mulf %363, %354 : vector<16x256xf32>
      %365 = arith.addf %350, %364 : vector<16x256xf32>
      %366 = vector.broadcast %356 : vector<16x1xf32> to vector<16x256xf32>
      %367 = arith.mulf %366, %352 : vector<16x256xf32>
      %368 = arith.addf %365, %367 : vector<16x256xf32>
      %c3_251 = arith.constant 3 : index
      %c3_252 = arith.constant 3 : index
      %c0_253 = arith.constant 0 : index
      %c0_254 = arith.constant 0 : index
      %369 = vector.load %arg8[%c3_251, %c3_252, %c0_253, %c0_254] : memref<5x4x16x256xf32, #tpu.memory_space<vmem>>, vector<1x1x16x256xf32>
      %370 = vector.shape_cast %369 : vector<1x1x16x256xf32> to vector<16x256xf32>
      %c3_255 = arith.constant 3 : index
      %c3_256 = arith.constant 3 : index
      %c0_257 = arith.constant 0 : index
      %c0_258 = arith.constant 0 : index
      %371 = vector.load %arg9[%c3_255, %c3_256, %c0_257, %c0_258] : memref<5x4x16x256xf32, #tpu.memory_space<vmem>>, vector<1x1x16x256xf32>
      %372 = vector.shape_cast %371 : vector<1x1x16x256xf32> to vector<16x256xf32>
      %373 = vector.extract_strided_slice %93 {offsets = [0, 15], sizes = [16, 1], strides = [1, 1]} : vector<16x20xf32> to vector<16x1xf32>
      %374 = vector.extract_strided_slice %96 {offsets = [0, 15], sizes = [16, 1], strides = [1, 1]} : vector<16x20xf32> to vector<16x1xf32>
      %375 = vector.broadcast %373 : vector<16x1xf32> to vector<16x256xf32>
      %376 = arith.mulf %375, %370 : vector<16x256xf32>
      %377 = arith.addf %362, %376 : vector<16x256xf32>
      %378 = vector.broadcast %374 : vector<16x1xf32> to vector<16x256xf32>
      %379 = arith.mulf %378, %372 : vector<16x256xf32>
      %380 = arith.subf %377, %379 : vector<16x256xf32>
      %381 = vector.broadcast %373 : vector<16x1xf32> to vector<16x256xf32>
      %382 = arith.mulf %381, %372 : vector<16x256xf32>
      %383 = arith.addf %368, %382 : vector<16x256xf32>
      %384 = vector.broadcast %374 : vector<16x1xf32> to vector<16x256xf32>
      %385 = arith.mulf %384, %370 : vector<16x256xf32>
      %386 = arith.addf %383, %385 : vector<16x256xf32>
      %c4_259 = arith.constant 4 : index
      %c0_260 = arith.constant 0 : index
      %c0_261 = arith.constant 0 : index
      %c0_262 = arith.constant 0 : index
      %387 = vector.load %arg8[%c4_259, %c0_260, %c0_261, %c0_262] : memref<5x4x16x256xf32, #tpu.memory_space<vmem>>, vector<1x1x16x256xf32>
      %388 = vector.shape_cast %387 : vector<1x1x16x256xf32> to vector<16x256xf32>
      %c4_263 = arith.constant 4 : index
      %c0_264 = arith.constant 0 : index
      %c0_265 = arith.constant 0 : index
      %c0_266 = arith.constant 0 : index
      %389 = vector.load %arg9[%c4_263, %c0_264, %c0_265, %c0_266] : memref<5x4x16x256xf32, #tpu.memory_space<vmem>>, vector<1x1x16x256xf32>
      %390 = vector.shape_cast %389 : vector<1x1x16x256xf32> to vector<16x256xf32>
      %391 = vector.extract_strided_slice %93 {offsets = [0, 16], sizes = [16, 1], strides = [1, 1]} : vector<16x20xf32> to vector<16x1xf32>
      %392 = vector.extract_strided_slice %96 {offsets = [0, 16], sizes = [16, 1], strides = [1, 1]} : vector<16x20xf32> to vector<16x1xf32>
      %393 = vector.broadcast %391 : vector<16x1xf32> to vector<16x256xf32>
      %394 = arith.mulf %393, %388 : vector<16x256xf32>
      %395 = arith.addf %380, %394 : vector<16x256xf32>
      %396 = vector.broadcast %392 : vector<16x1xf32> to vector<16x256xf32>
      %397 = arith.mulf %396, %390 : vector<16x256xf32>
      %398 = arith.subf %395, %397 : vector<16x256xf32>
      %399 = vector.broadcast %391 : vector<16x1xf32> to vector<16x256xf32>
      %400 = arith.mulf %399, %390 : vector<16x256xf32>
      %401 = arith.addf %386, %400 : vector<16x256xf32>
      %402 = vector.broadcast %392 : vector<16x1xf32> to vector<16x256xf32>
      %403 = arith.mulf %402, %388 : vector<16x256xf32>
      %404 = arith.addf %401, %403 : vector<16x256xf32>
      %c4_267 = arith.constant 4 : index
      %c1_268 = arith.constant 1 : index
      %c0_269 = arith.constant 0 : index
      %c0_270 = arith.constant 0 : index
      %405 = vector.load %arg8[%c4_267, %c1_268, %c0_269, %c0_270] : memref<5x4x16x256xf32, #tpu.memory_space<vmem>>, vector<1x1x16x256xf32>
      %406 = vector.shape_cast %405 : vector<1x1x16x256xf32> to vector<16x256xf32>
      %c4_271 = arith.constant 4 : index
      %c1_272 = arith.constant 1 : index
      %c0_273 = arith.constant 0 : index
      %c0_274 = arith.constant 0 : index
      %407 = vector.load %arg9[%c4_271, %c1_272, %c0_273, %c0_274] : memref<5x4x16x256xf32, #tpu.memory_space<vmem>>, vector<1x1x16x256xf32>
      %408 = vector.shape_cast %407 : vector<1x1x16x256xf32> to vector<16x256xf32>
      %409 = vector.extract_strided_slice %93 {offsets = [0, 17], sizes = [16, 1], strides = [1, 1]} : vector<16x20xf32> to vector<16x1xf32>
      %410 = vector.extract_strided_slice %96 {offsets = [0, 17], sizes = [16, 1], strides = [1, 1]} : vector<16x20xf32> to vector<16x1xf32>
      %411 = vector.broadcast %409 : vector<16x1xf32> to vector<16x256xf32>
      %412 = arith.mulf %411, %406 : vector<16x256xf32>
      %413 = arith.addf %398, %412 : vector<16x256xf32>
      %414 = vector.broadcast %410 : vector<16x1xf32> to vector<16x256xf32>
      %415 = arith.mulf %414, %408 : vector<16x256xf32>
      %416 = arith.subf %413, %415 : vector<16x256xf32>
      %417 = vector.broadcast %409 : vector<16x1xf32> to vector<16x256xf32>
      %418 = arith.mulf %417, %408 : vector<16x256xf32>
      %419 = arith.addf %404, %418 : vector<16x256xf32>
      %420 = vector.broadcast %410 : vector<16x1xf32> to vector<16x256xf32>
      %421 = arith.mulf %420, %406 : vector<16x256xf32>
      %422 = arith.addf %419, %421 : vector<16x256xf32>
      %c4_275 = arith.constant 4 : index
      %c2_276 = arith.constant 2 : index
      %c0_277 = arith.constant 0 : index
      %c0_278 = arith.constant 0 : index
      %423 = vector.load %arg8[%c4_275, %c2_276, %c0_277, %c0_278] : memref<5x4x16x256xf32, #tpu.memory_space<vmem>>, vector<1x1x16x256xf32>
      %424 = vector.shape_cast %423 : vector<1x1x16x256xf32> to vector<16x256xf32>
      %c4_279 = arith.constant 4 : index
      %c2_280 = arith.constant 2 : index
      %c0_281 = arith.constant 0 : index
      %c0_282 = arith.constant 0 : index
      %425 = vector.load %arg9[%c4_279, %c2_280, %c0_281, %c0_282] : memref<5x4x16x256xf32, #tpu.memory_space<vmem>>, vector<1x1x16x256xf32>
      %426 = vector.shape_cast %425 : vector<1x1x16x256xf32> to vector<16x256xf32>
      %427 = vector.extract_strided_slice %93 {offsets = [0, 18], sizes = [16, 1], strides = [1, 1]} : vector<16x20xf32> to vector<16x1xf32>
      %428 = vector.extract_strided_slice %96 {offsets = [0, 18], sizes = [16, 1], strides = [1, 1]} : vector<16x20xf32> to vector<16x1xf32>
      %429 = vector.broadcast %427 : vector<16x1xf32> to vector<16x256xf32>
      %430 = arith.mulf %429, %424 : vector<16x256xf32>
      %431 = arith.addf %416, %430 : vector<16x256xf32>
      %432 = vector.broadcast %428 : vector<16x1xf32> to vector<16x256xf32>
      %433 = arith.mulf %432, %426 : vector<16x256xf32>
      %434 = arith.subf %431, %433 : vector<16x256xf32>
      %435 = vector.broadcast %427 : vector<16x1xf32> to vector<16x256xf32>
      %436 = arith.mulf %435, %426 : vector<16x256xf32>
      %437 = arith.addf %422, %436 : vector<16x256xf32>
      %438 = vector.broadcast %428 : vector<16x1xf32> to vector<16x256xf32>
      %439 = arith.mulf %438, %424 : vector<16x256xf32>
      %440 = arith.addf %437, %439 : vector<16x256xf32>
      %c4_283 = arith.constant 4 : index
      %c3_284 = arith.constant 3 : index
      %c0_285 = arith.constant 0 : index
      %c0_286 = arith.constant 0 : index
      %441 = vector.load %arg8[%c4_283, %c3_284, %c0_285, %c0_286] : memref<5x4x16x256xf32, #tpu.memory_space<vmem>>, vector<1x1x16x256xf32>
      %442 = vector.shape_cast %441 : vector<1x1x16x256xf32> to vector<16x256xf32>
      %c4_287 = arith.constant 4 : index
      %c3_288 = arith.constant 3 : index
      %c0_289 = arith.constant 0 : index
      %c0_290 = arith.constant 0 : index
      %443 = vector.load %arg9[%c4_287, %c3_288, %c0_289, %c0_290] : memref<5x4x16x256xf32, #tpu.memory_space<vmem>>, vector<1x1x16x256xf32>
      %444 = vector.shape_cast %443 : vector<1x1x16x256xf32> to vector<16x256xf32>
      %445 = vector.extract_strided_slice %93 {offsets = [0, 19], sizes = [16, 1], strides = [1, 1]} : vector<16x20xf32> to vector<16x1xf32>
      %446 = vector.extract_strided_slice %96 {offsets = [0, 19], sizes = [16, 1], strides = [1, 1]} : vector<16x20xf32> to vector<16x1xf32>
      %447 = vector.broadcast %445 : vector<16x1xf32> to vector<16x256xf32>
      %448 = arith.mulf %447, %442 : vector<16x256xf32>
      %449 = arith.addf %434, %448 : vector<16x256xf32>
      %450 = vector.broadcast %446 : vector<16x1xf32> to vector<16x256xf32>
      %451 = arith.mulf %450, %444 : vector<16x256xf32>
      %452 = arith.subf %449, %451 : vector<16x256xf32>
      %453 = vector.broadcast %445 : vector<16x1xf32> to vector<16x256xf32>
      %454 = arith.mulf %453, %444 : vector<16x256xf32>
      %455 = arith.addf %440, %454 : vector<16x256xf32>
      %456 = vector.broadcast %446 : vector<16x1xf32> to vector<16x256xf32>
      %457 = arith.mulf %456, %442 : vector<16x256xf32>
      %458 = arith.addf %455, %457 : vector<16x256xf32>
      %459 = arith.mulf %452, %452 : vector<16x256xf32>
      %460 = arith.mulf %458, %458 : vector<16x256xf32>
      %461 = arith.addf %459, %460 : vector<16x256xf32>
      %cst_291 = arith.constant 9.99999974E-6 : f32
      %462 = vector.broadcast %cst_291 : f32 to vector<16x256xf32>
      %463 = arith.addf %461, %462 : vector<16x256xf32>
      %464 = math.sqrt %463 : vector<16x256xf32>
      %cst_292 = arith.constant dense<0.000000e+00> : vector<32x256xf32>
      %465 = tpu.matmul %78, %464, %cst_292 {dimension_numbers = #tpu.dot_dimension_numbers<[1], [0], [0], [1], [0, 0, 1, 1], [], []>} : vector<32x16xf32>, vector<16x256xf32>, vector<32x256xf32> -> vector<32x256xf32>
      %cst_293 = arith.constant 0.000000e+00 : f32
      %466 = vector.broadcast %cst_293 : f32 to vector<32x256xf32>
      %467 = arith.maximumf %465, %466 : vector<32x256xf32>
      %cst_294 = arith.constant 9.99999974E-6 : f32
      %468 = vector.broadcast %cst_294 : f32 to vector<32x256xf32>
      %469 = arith.addf %467, %468 : vector<32x256xf32>
      %470 = math.log %469 : vector<32x256xf32>
      %c0_295 = arith.constant 0 : index
      %471 = arith.index_cast %arg10 : i32 to index
      %c0_296 = arith.constant 0 : index
      %c0_297 = arith.constant 0 : index
      %472 = vector.load %arg6[%c0_295, %471, %c0_296, %c0_297] : memref<1x8x32x256xf32, #tpu.memory_space<vmem>>, vector<1x1x32x256xf32>
      %473 = vector.shape_cast %472 : vector<1x1x32x256xf32> to vector<32x256xf32>
      %474 = vector.shape_cast %470 : vector<32x256xf32> to vector<1x1x32x256xf32>
      tpu.vector_store %arg6[%c0_295, %471, %c0_296, %c0_297], %474 {strides = array<i32>} : memref<1x8x32x256xf32, #tpu.memory_space<vmem>>, vector<1x1x32x256xf32>,
    }
    %c8_i32_110 = arith.constant 8 : i32
    %c0_111 = arith.constant 0 : index
    %c0_112 = arith.constant 0 : index
    %c0_113 = arith.constant 0 : index
    %c0_114 = arith.constant 0 : index
    %80 = vector.load %arg6[%c0_111, %c0_112, %c0_113, %c0_114] : memref<1x8x32x256xf32, #tpu.memory_space<vmem>>, vector<1x8x32x256xf32>
    %81 = vector.shape_cast %80 : vector<1x8x32x256xf32> to vector<8x32x256xf32>
    %cst_115 = arith.constant dense<0.000000e+00> : vector<8x256xf32>
    %82 = vector.multi_reduction <add>, %81, %cst_115 [1] : vector<8x32x256xf32> to vector<8x256xf32>
    %c0_116 = arith.constant 0 : index
    %c0_117 = arith.constant 0 : index
    %c0_118 = arith.constant 0 : index
    %c0_119 = arith.constant 0 : index
    %83 = vector.load %arg7[%c0_116, %c0_117, %c0_118, %c0_119] : memref<1x2x8x256xf32, #tpu.memory_space<vmem>>, vector<1x1x8x256xf32>
    %84 = vector.shape_cast %83 : vector<1x1x8x256xf32> to vector<8x256xf32>
    %85 = vector.shape_cast %82 : vector<8x256xf32> to vector<1x1x8x256xf32>
    tpu.vector_store %arg7[%c0_116, %c0_117, %c0_118, %c0_119], %85 {strides = array<i32>} : memref<1x2x8x256xf32, #tpu.memory_space<vmem>>, vector<1x1x8x256xf32>,
    %86 = arith.mulf %81, %81 : vector<8x32x256xf32>
    %cst_120 = arith.constant dense<0.000000e+00> : vector<8x256xf32>
    %87 = vector.multi_reduction <add>, %86, %cst_120 [1] : vector<8x32x256xf32> to vector<8x256xf32>
    %c0_121 = arith.constant 0 : index
    %c1_122 = arith.constant 1 : index
    %c0_123 = arith.constant 0 : index
    %c0_124 = arith.constant 0 : index
    %88 = vector.load %arg7[%c0_121, %c1_122, %c0_123, %c0_124] : memref<1x2x8x256xf32, #tpu.memory_space<vmem>>, vector<1x1x8x256xf32>
    %89 = vector.shape_cast %88 : vector<1x1x8x256xf32> to vector<8x256xf32>
    %90 = vector.shape_cast %87 : vector<8x256xf32> to vector<1x1x8x256xf32>
    tpu.vector_store %arg7[%c0_121, %c1_122, %c0_123, %c0_124], %90 {strides = array<i32>} : memref<1x2x8x256xf32, #tpu.memory_space<vmem>>, vector<1x1x8x256xf32>,
    return
  }
  func.func @transform_0(%arg0: i32) -> (i32, i32, i32, i32) {
    %c0_i32 = arith.constant 0 : i32
    %c0_i32_0 = arith.constant 0 : i32
    %c0_i32_1 = arith.constant 0 : i32
    %c0_i32_2 = arith.constant 0 : i32
    return %arg0, %c0_i32, %c0_i32_0, %c0_i32_1 : i32, i32, i32, i32
  }
  func.func @transform_1(%arg0: i32) -> (i32, i32, i32, i32) {
    %c0_i32 = arith.constant 0 : i32
    %c0_i32_0 = arith.constant 0 : i32
    %c0_i32_1 = arith.constant 0 : i32
    %c0_i32_2 = arith.constant 0 : i32
    return %arg0, %c0_i32, %c0_i32_0, %c0_i32_1 : i32, i32, i32, i32
  }
  func.func @transform_2(%arg0: i32) -> (i32, i32, i32) {
    %c0_i32 = arith.constant 0 : i32
    %c0_i32_0 = arith.constant 0 : i32
    %c0_i32_1 = arith.constant 0 : i32
    %c0_i32_2 = arith.constant 0 : i32
    return %c0_i32, %c0_i32_0, %c0_i32_1 : i32, i32, i32
  }
  func.func @transform_3(%arg0: i32) -> (i32, i32, i32) {
    %c0_i32 = arith.constant 0 : i32
    %c0_i32_0 = arith.constant 0 : i32
    %c0_i32_1 = arith.constant 0 : i32
    %c0_i32_2 = arith.constant 0 : i32
    return %c0_i32, %c0_i32_0, %c0_i32_1 : i32, i32, i32
  }
  func.func @transform_4(%arg0: i32) -> (i32, i32) {
    %c0_i32 = arith.constant 0 : i32
    %c0_i32_0 = arith.constant 0 : i32
    %c0_i32_1 = arith.constant 0 : i32
    return %c0_i32, %c0_i32_0 : i32, i32
  }
  func.func @transform_5(%arg0: i32) -> (i32, i32, i32, i32) {
    %c0_i32 = arith.constant 0 : i32
    %c0_i32_0 = arith.constant 0 : i32
    %c0_i32_1 = arith.constant 0 : i32
    %c0_i32_2 = arith.constant 0 : i32
    return %arg0, %c0_i32, %c0_i32_0, %c0_i32_1 : i32, i32, i32, i32
  }
  func.func @transform_6(%arg0: i32) -> (i32, i32, i32, i32) {
    %c0_i32 = arith.constant 0 : i32
    %c0_i32_0 = arith.constant 0 : i32
    %c0_i32_1 = arith.constant 0 : i32
    %c0_i32_2 = arith.constant 0 : i32
    return %arg0, %c0_i32, %c0_i32_0, %c0_i32_1 : i32, i32, i32, i32
  }
}

</mosaic_0001>

<llo_original>
// kernel: time_variant_filter.3
$region0: #{time_variant_filter.3}
  #allocation0 [shape = 'u32[]', space=smem, size = 0x4, offset = 0x4, fixed_abs, tag = 'smem constant byte address 0x4 - core index']
  #allocation1 [shape = 'u32[144,128]{1,0:T(1,128)}', space=vmem, size = 0x12000, scoped, tag = 'internal scratch']
  %s0 = inlined_call_operand.vmem [shape: f32[2,256,256], index: 0, kind: input, shape index: {}]
  %s1 = inlined_call_operand.vmem [shape: f32[1,256], index: 1, kind: input, shape index: {}]
  %s2 = inlined_call_operand.vmem [shape: f32[1,256], index: 2, kind: input, shape index: {}]
  %s3 = inlined_call_operand.hbm [shape: f32[2,256,256], index: 3, kind: output, shape index: {}]
  %s4 = sld [smem:[#allocation0]]
  $region83: #{time_variant_filter.3} parent=0
    _
  %s6 = ssub.s32 1, %s4
  %s7 = scalar_select 0, %s6, %s4
  $region1: #{time_variant_filter.3} parent=0
    #allocation2 [shape = 'u8[262144]{0}', space=vmem, size = 0x40000, scoped, tag = 'input window, operand 0']
    #allocation3 [shape = 'u8[262144]{0}', space=vmem, size = 0x40000, scoped, tag = 'output window, operand 0']
    #allocation4 [shape = 's32[2]{0}', space=sflag, size = 0x8, scoped, tag = 'scoped memory for time_variant_filter.3']
    %8 = vsyncpa [#allocation4], 0
    %s9 = scalar_lea.sflag [#allocation4], 1
    %10 = vsyncpa %s9, 0
    loop: start=0, step=1, limit=6
    $region2: #{time_variant_filter.3} parent=1 // loop_pre_header
      _
    $region3: #{time_variant_filter.3} parent=1 // loop_header
      %s12 = sphi 0, %s16
      %p13 = scmp.ge.s32.totalorder %s12, 6
      %s19 = sphi 0, %s31
      %s20 = sphi 0, %s27
      %s21 = sphi 0, %s19
      %s22 = sphi 0, %s20
      %s23 = sphi 0, %s21
      %s24 = sphi 0, %s22
      %s36 = sphi 0, %s38
      %s39 = sphi 0, %s36
      %s40 = sphi 0, %s39
      %s56 = sphi 0, %s40
      %s60 = sphi 0, %s60
      %s62 = sphi 0, %s60
      %s63 = sphi 0, %s62
      %s77 = sphi 0, %s63
      %s81 = sphi 0, %s81
      %s83 = sphi 0, %s81
      %s84 = sphi 0, %s83
      %s98 = sphi 0, %s84
      %s106 = sphi 0, %s108
      %s109 = sphi 0, %s106
      %s110 = sphi 0, %s109
      %s126 = sphi 0, %s110
    $region4: #{time_variant_filter.3} parent=1 // loop_header_branch
      %15 = sbr.rel (%p13) target = $region8
    $region5: #{time_variant_filter.3} parent=1 // loop_body
      %s17 = ssub.s32 %s12, 1
      %s18 = ssub.s32 %s12, 2
      %s25 = sadd.s32 1, %s20
      %p26 = scmp.ge.s32.totalorder %s25, 2
      %s27 = scalar_select %p26, 0, %s25
      %s28 = sadd.s32 1, %s19
      %s29 = scalar_select %p26, %s28, %s19
      %p30 = scmp.ge.s32.totalorder %s29, 2
      %s31 = scalar_select %p30, 0, %s29
      %s32 = ssub.s32 %s19, %s31
      %s33 = ssub.s32 %s20, %s27
      %s34 = sor.u32 %s32, %s33
      %p35 = scmp.eq.s32.totalorder %s34, 0
      %s37 = sadd.s32 %s36, 1
      %s38 = scalar_select %p35, %s36, %s37
      %p41 = pneg %p35
      %p42 = scmp.eq.s32.totalorder %s12, 3
      %p43 = por %p41, %p42
      %p44 = scmp.ne.s32.totalorder %s36, %s39
      %p45 = scmp.eq.s32.totalorder %s12, 0
      %p46 = por %p44, %p45
      %p47 = scmp.ne.s32.totalorder %s36, %s39
      %p48 = scmp.eq.s32.totalorder %s17, 3
      %p49 = por %p47, %p48
      %p50 = scmp.ne.s32.totalorder %s39, %s40
      %p51 = scmp.eq.s32.totalorder %s17, 0
      %p52 = por %p50, %p51
      %p53 = scmp.ne.s32.totalorder %s39, %s40
      %p54 = scmp.eq.s32.totalorder %s18, 3
      %p55 = por %p53, %p54
      %p57 = scmp.ne.s32.totalorder %s40, %s56
      %p58 = scmp.eq.s32.totalorder %s18, 0
      %p59 = por %p57, %p58
      %s61 = sadd.s32 %s60, 1
      %p64 = scmp.eq.s32.totalorder %s12, 3
      %p65 = scmp.ne.s32.totalorder %s60, %s62
      %p66 = scmp.eq.s32.totalorder %s12, 0
      %p67 = por %p65, %p66
      %p68 = scmp.ne.s32.totalorder %s60, %s62
      %p69 = scmp.eq.s32.totalorder %s17, 3
      %p70 = por %p68, %p69
      %p71 = scmp.ne.s32.totalorder %s62, %s63
      %p72 = scmp.eq.s32.totalorder %s17, 0
      %p73 = por %p71, %p72
      %p74 = scmp.ne.s32.totalorder %s62, %s63
      %p75 = scmp.eq.s32.totalorder %s18, 3
      %p76 = por %p74, %p75
      %p78 = scmp.ne.s32.totalorder %s63, %s77
      %p79 = scmp.eq.s32.totalorder %s18, 0
      %p80 = por %p78, %p79
      %s82 = sadd.s32 %s81, 1
      %p85 = scmp.eq.s32.totalorder %s12, 3
      %p86 = scmp.ne.s32.totalorder %s81, %s83
      %p87 = scmp.eq.s32.totalorder %s12, 0
      %p88 = por %p86, %p87
      %p89 = scmp.ne.s32.totalorder %s81, %s83
      %p90 = scmp.eq.s32.totalorder %s17, 3
      %p91 = por %p89, %p90
      %p92 = scmp.ne.s32.totalorder %s83, %s84
      %p93 = scmp.eq.s32.totalorder %s17, 0
      %p94 = por %p92, %p93
      %p95 = scmp.ne.s32.totalorder %s83, %s84
      %p96 = scmp.eq.s32.totalorder %s18, 3
      %p97 = por %p95, %p96
      %p99 = scmp.ne.s32.totalorder %s84, %s98
      %p100 = scmp.eq.s32.totalorder %s18, 0
      %p101 = por %p99, %p100
      %s102 = ssub.s32 %s19, %s31
      %s103 = ssub.s32 %s20, %s27
      %s104 = sor.u32 %s102, %s103
      %p105 = scmp.eq.s32.totalorder %s104, 0
      %s107 = sadd.s32 %s106, 1
      %s108 = scalar_select %p105, %s106, %s107
      %p111 = pneg %p105
      %p112 = scmp.eq.s32.totalorder %s12, 3
      %p113 = por %p111, %p112
      %p114 = scmp.ne.s32.totalorder %s106, %s109
      %p115 = scmp.eq.s32.totalorder %s12, 0
      %p116 = por %p114, %p115
      %p117 = scmp.ne.s32.totalorder %s106, %s109
      %p118 = scmp.eq.s32.totalorder %s17, 3
      %p119 = por %p117, %p118
      %p120 = scmp.ne.s32.totalorder %s109, %s110
      %p121 = scmp.eq.s32.totalorder %s17, 0
      %p122 = por %p120, %p121
      %p123 = scmp.ne.s32.totalorder %s109, %s110
      %p124 = scmp.eq.s32.totalorder %s18, 3
      %p125 = por %p123, %p124
      %p127 = scmp.ne.s32.totalorder %s110, %s126
      %p128 = scmp.eq.s32.totalorder %s18, 0
      %p129 = por %p127, %p128
      %p130 = scmp.le.s32.totalorder 1, %s12
      %p131 = scmp.lt.s32.totalorder %s12, 5
      %p132 = pnand %p130, %p131
      %p133 = pneg %p132
      // Predicated region
      $region9: #{time_variant_filter.3} parent=5 // pred_check
        _
      $region10: #{time_variant_filter.3} parent=5 // pred_check_branch
        %135 = sbr.rel (%p132) target = $region12
      $region11: #{time_variant_filter.3} parent=5 // pred_region
        %s136 = ssub.s32 %s12, 1
        // Predicated region
        $region13: #{time_variant_filter.3} parent=11 // pred_check
          %p137 = pneg %p73
        $region14: #{time_variant_filter.3} parent=11 // pred_check_branch
          %139 = sbr.rel (%p137) target = $region16
        $region15: #{time_variant_filter.3} parent=11 // pred_region
          _
        $region16: #{time_variant_filter.3} parent=11 // pred_fallthru
          _
        // Predicated region
        $region17: #{time_variant_filter.3} parent=11 // pred_check
          %p140 = pneg %p94
        $region18: #{time_variant_filter.3} parent=11 // pred_check_branch
          %142 = sbr.rel (%p140) target = $region20
        $region19: #{time_variant_filter.3} parent=11 // pred_region
          _
        $region20: #{time_variant_filter.3} parent=11 // pred_fallthru
          _
      $region12: #{time_variant_filter.3} parent=5 // pred_fallthru
        _
      %p143 = scmp.lt.s32.totalorder %s12, 4
      // Predicated region
      $region21: #{time_variant_filter.3} parent=5 // pred_check
        %p144 = pneg %p143
      $region22: #{time_variant_filter.3} parent=5 // pred_check_branch
        %146 = sbr.rel (%p144) target = $region24
      $region23: #{time_variant_filter.3} parent=5 // pred_region
        // Predicated region
        $region25: #{time_variant_filter.3} parent=23 // pred_check
          %p147 = pneg %p46
        $region26: #{time_variant_filter.3} parent=23 // pred_check_branch
          %149 = sbr.rel (%p147) target = $region28
        $region27: #{time_variant_filter.3} parent=23 // pred_region
          %s150 = sand.u32 %s36, 1
          %s151 = sand.u32 %s36, 1
          %s152 = smul.addr %s151, 256
          %s153 = scalar_lea.vmem [#allocation2], %s152
          %s154 = smul.addr %s19, 64
          %s155 = sadd.s32 %s20, %s154
          %s156 = smul.addr %s155, 8
          %s157 = scalar_lea.vmem %s0, %s156
          // Predicated region
          $region29: #{time_variant_filter.3} parent=27 // pred_check
            _
          $region30: #{time_variant_filter.3} parent=27 // pred_check_branch
            %159 = sbr.rel (0) target = $region32
          $region31: #{time_variant_filter.3} parent=27 // pred_region
            // Predicated region
            $region33: #{time_variant_filter.3} parent=31 // pred_check
              _
            $region34: #{time_variant_filter.3} parent=31 // pred_check_branch
              %161 = sbr.rel (0) target = $region36
            $region35: #{time_variant_filter.3} parent=31 // pred_region
              // Predicated region
              $region48: #{time_variant_filter.3} parent=35 // pred_check
                _
              $region49: #{time_variant_filter.3} parent=35 // pred_check_branch
                %239 = sbr.rel (0) target = $region51
              $region50: #{time_variant_filter.3} parent=35 // pred_region
                loop: start=0, step=1, limit=1
                $region52: #{time_variant_filter.3} parent=50 // loop_pre_header
                  _
                $region53: #{time_variant_filter.3} parent=50 // loop_header
                  %s241 = sphi 0, %s245
                  %p242 = scmp.ge.s32.totalorder %s241, 1
                  %s246 = sphi %s157, %s157
                  %s247 = sphi %s153, %s153
                $region54: #{time_variant_filter.3} parent=50 // loop_header_branch
                  %244 = sbr.rel (%p242) target = $region58
                $region55: #{time_variant_filter.3} parent=50 // loop_body
                  %v248 = vld [vmem:[%s246] sm:$0xff]
                  %249 = vst [vmem:[%s247] sm:$0xff] %v248
                  %v250 = vld [vmem:[%s246 + $0x10] sm:$0xff]
                  %251 = vst [vmem:[%s247 + $0x8] sm:$0xff] %v250
                  %v252 = vld [vmem:[%s246 + $0x20] sm:$0xff]
                  %253 = vst [vmem:[%s247 + $0x10] sm:$0xff] %v252
                  %v254 = vld [vmem:[%s246 + $0x30] sm:$0xff]
                  %255 = vst [vmem:[%s247 + $0x18] sm:$0xff] %v254
                  %v256 = vld [vmem:[%s246 + $0x40] sm:$0xff]
                  %257 = vst [vmem:[%s247 + $0x20] sm:$0xff] %v256
                  %v258 = vld [vmem:[%s246 + $0x50] sm:$0xff]
                  %259 = vst [vmem:[%s247 + $0x28] sm:$0xff] %v258
                  %v260 = vld [vmem:[%s246 + $0x60] sm:$0xff]
                  %261 = vst [vmem:[%s247 + $0x30] sm:$0xff] %v260
                  %v262 = vld [vmem:[%s246 + $0x70] sm:$0xff]
                  %263 = vst [vmem:[%s247 + $0x38] sm:$0xff] %v262
                  %v264 = vld [vmem:[%s246 + $0x80] sm:$0xff]
                  %265 = vst [vmem:[%s247 + $0x40] sm:$0xff] %v264
                  %v266 = vld [vmem:[%s246 + $0x90] sm:$0xff]
                  %267 = vst [vmem:[%s247 + $0x48] sm:$0xff] %v266
                  %v268 = vld [vmem:[%s246 + $0xa0] sm:$0xff]
                  %269 = vst [vmem:[%s247 + $0x50] sm:$0xff] %v268
                  %v270 = vld [vmem:[%s246 + $0xb0] sm:$0xff]
                  %271 = vst [vmem:[%s247 + $0x58] sm:$0xff] %v270
                  %v272 = vld [vmem:[%s246 + $0xc0] sm:$0xff]
                  %273 = vst [vmem:[%s247 + $0x60] sm:$0xff] %v272
                  %v274 = vld [vmem:[%s246 + $0xd0] sm:$0xff]
                  %275 = vst [vmem:[%s247 + $0x68] sm:$0xff] %v274
                  %v276 = vld [vmem:[%s246 + $0xe0] sm:$0xff]
                  %277 = vst [vmem:[%s247 + $0x70] sm:$0xff] %v276
                  %v278 = vld [vmem:[%s246 + $0xf0] sm:$0xff]
                  %279 = vst [vmem:[%s247 + $0x78] sm:$0xff] %v278
                  %v280 = vld [vmem:[%s246 + $0x100] sm:$0xff]
                  %281 = vst [vmem:[%s247 + $0x80] sm:$0xff] %v280
                  %v282 = vld [vmem:[%s246 + $0x110] sm:$0xff]
                  %283 = vst [vmem:[%s247 + $0x88] sm:$0xff] %v282
                  %v284 = vld [vmem:[%s246 + $0x120] sm:$0xff]
                  %285 = vst [vmem:[%s247 + $0x90] sm:$0xff] %v284
                  %v286 = vld [vmem:[%s246 + $0x130] sm:$0xff]
                  %287 = vst [vmem:[%s247 + $0x98] sm:$0xff] %v286
                  %v288 = vld [vmem:[%s246 + $0x140] sm:$0xff]
                  %289 = vst [vmem:[%s247 + $0xa0] sm:$0xff] %v288
                  %v290 = vld [vmem:[%s246 + $0x150] sm:$0xff]
                  %291 = vst [vmem:[%s247 + $0xa8] sm:$0xff] %v290
                  %v292 = vld [vmem:[%s246 + $0x160] sm:$0xff]
                  %293 = vst [vmem:[%s247 + $0xb0] sm:$0xff] %v292
                  %v294 = vld [vmem:[%s246 + $0x170] sm:$0xff]
                  %295 = vst [vmem:[%s247 + $0xb8] sm:$0xff] %v294
                  %v296 = vld [vmem:[%s246 + $0x180] sm:$0xff]
                  %297 = vst [vmem:[%s247 + $0xc0] sm:$0xff] %v296
                  %v298 = vld [vmem:[%s246 + $0x190] sm:$0xff]
                  %299 = vst [vmem:[%s247 + $0xc8] sm:$0xff] %v298
                  %v300 = vld [vmem:[%s246 + $0x1a0] sm:$0xff]
                  %301 = vst [vmem:[%s247 + $0xd0] sm:$0xff] %v300
                  %v302 = vld [vmem:[%s246 + $0x1b0] sm:$0xff]
                  %303 = vst [vmem:[%s247 + $0xd8] sm:$0xff] %v302
                  %v304 = vld [vmem:[%s246 + $0x1c0] sm:$0xff]
                  %305 = vst [vmem:[%s247 + $0xe0] sm:$0xff] %v304
                  %v306 = vld [vmem:[%s246 + $0x1d0] sm:$0xff]
                  %307 = vst [vmem:[%s247 + $0xe8] sm:$0xff] %v306
                  %v308 = vld [vmem:[%s246 + $0x1e0] sm:$0xff]
                  %309 = vst [vmem:[%s247 + $0xf0] sm:$0xff] %v308
                  %v310 = vld [vmem:[%s246 + $0x1f0] sm:$0xff]
                  %311 = vst [vmem:[%s247 + $0xf8] sm:$0xff] %v310
                $region56: #{time_variant_filter.3} parent=50 // loop_footer
                  %s245 = sadd.s32 1, %s241
                $region57: #{time_variant_filter.3} parent=50 // loop_footer_branch
                  %240 = sbr.rel target = $region53
                $region58: #{time_variant_filter.3} parent=50 // loop_exit
                  _
              $region51: #{time_variant_filter.3} parent=35 // pred_fallthru
                _
              // Predicated region
              $region59: #{time_variant_filter.3} parent=35 // pred_check
                _
              $region60: #{time_variant_filter.3} parent=35 // pred_check_branch
                %313 = sbr.rel target = $region62
              $region61: #{time_variant_filter.3} parent=35 // pred_region
                _
              $region62: #{time_variant_filter.3} parent=35 // pred_fallthru
                _
            $region36: #{time_variant_filter.3} parent=31 // pred_fallthru
              _
            // Predicated region
            $region37: #{time_variant_filter.3} parent=31 // pred_check
              _
            $region38: #{time_variant_filter.3} parent=31 // pred_check_branch
              %163 = sbr.rel target = $region40
            $region39: #{time_variant_filter.3} parent=31 // pred_region
              %s165 = ssub.s32 256, 1
              loop: start=0, step=1, limit=1
              $region41: #{time_variant_filter.3} parent=39 // loop_pre_header
                _
              $region42: #{time_variant_filter.3} parent=39 // loop_header
                %s167 = sphi 0, %s171
                %p168 = scmp.ge.s32.totalorder %s167, 1
                %s172 = sphi %s157, %s157
                %s173 = sphi %s153, %s153
              $region43: #{time_variant_filter.3} parent=39 // loop_header_branch
                %170 = sbr.rel (%p168) target = $region47
              $region44: #{time_variant_filter.3} parent=39 // loop_body
                %v174 = vld [vmem:[%s172] sm:%s165]
                %175 = vst [vmem:[%s173] sm:%s165] %v174
                %v176 = vld [vmem:[%s172 + $0x10] sm:%s165]
                %177 = vst [vmem:[%s173 + $0x8] sm:%s165] %v176
                %v178 = vld [vmem:[%s172 + $0x20] sm:%s165]
                %179 = vst [vmem:[%s173 + $0x10] sm:%s165] %v178
                %v180 = vld [vmem:[%s172 + $0x30] sm:%s165]
                %181 = vst [vmem:[%s173 + $0x18] sm:%s165] %v180
                %v182 = vld [vmem:[%s172 + $0x40] sm:%s165]
                %183 = vst [vmem:[%s173 + $0x20] sm:%s165] %v182
                %v184 = vld [vmem:[%s172 + $0x50] sm:%s165]
                %185 = vst [vmem:[%s173 + $0x28] sm:%s165] %v184
                %v186 = vld [vmem:[%s172 + $0x60] sm:%s165]
                %187 = vst [vmem:[%s173 + $0x30] sm:%s165] %v186
                %v188 = vld [vmem:[%s172 + $0x70] sm:%s165]
                %189 = vst [vmem:[%s173 + $0x38] sm:%s165] %v188
                %v190 = vld [vmem:[%s172 + $0x80] sm:%s165]
                %191 = vst [vmem:[%s173 + $0x40] sm:%s165] %v190
                %v192 = vld [vmem:[%s172 + $0x90] sm:%s165]
                %193 = vst [vmem:[%s173 + $0x48] sm:%s165] %v192
                %v194 = vld [vmem:[%s172 + $0xa0] sm:%s165]
                %195 = vst [vmem:[%s173 + $0x50] sm:%s165] %v194
                %v196 = vld [vmem:[%s172 + $0xb0] sm:%s165]
                %197 = vst [vmem:[%s173 + $0x58] sm:%s165] %v196
                %v198 = vld [vmem:[%s172 + $0xc0] sm:%s165]
                %199 = vst [vmem:[%s173 + $0x60] sm:%s165] %v198
                %v200 = vld [vmem:[%s172 + $0xd0] sm:%s165]
                %201 = vst [vmem:[%s173 + $0x68] sm:%s165] %v200
                %v202 = vld [vmem:[%s172 + $0xe0] sm:%s165]
                %203 = vst [vmem:[%s173 + $0x70] sm:%s165] %v202
                %v204 = vld [vmem:[%s172 + $0xf0] sm:%s165]
                %205 = vst [vmem:[%s173 + $0x78] sm:%s165] %v204
                %v206 = vld [vmem:[%s172 + $0x100] sm:%s165]
                %207 = vst [vmem:[%s173 + $0x80] sm:%s165] %v206
                %v208 = vld [vmem:[%s172 + $0x110] sm:%s165]
                %209 = vst [vmem:[%s173 + $0x88] sm:%s165] %v208
                %v210 = vld [vmem:[%s172 + $0x120] sm:%s165]
                %211 = vst [vmem:[%s173 + $0x90] sm:%s165] %v210
                %v212 = vld [vmem:[%s172 + $0x130] sm:%s165]
                %213 = vst [vmem:[%s173 + $0x98] sm:%s165] %v212
                %v214 = vld [vmem:[%s172 + $0x140] sm:%s165]
                %215 = vst [vmem:[%s173 + $0xa0] sm:%s165] %v214
                %v216 = vld [vmem:[%s172 + $0x150] sm:%s165]
                %217 = vst [vmem:[%s173 + $0xa8] sm:%s165] %v216
                %v218 = vld [vmem:[%s172 + $0x160] sm:%s165]
                %219 = vst [vmem:[%s173 + $0xb0] sm:%s165] %v218
                %v220 = vld [vmem:[%s172 + $0x170] sm:%s165]
                %221 = vst [vmem:[%s173 + $0xb8] sm:%s165] %v220
                %v222 = vld [vmem:[%s172 + $0x180] sm:%s165]
                %223 = vst [vmem:[%s173 + $0xc0] sm:%s165] %v222
                %v224 = vld [vmem:[%s172 + $0x190] sm:%s165]
                %225 = vst [vmem:[%s173 + $0xc8] sm:%s165] %v224
                %v226 = vld [vmem:[%s172 + $0x1a0] sm:%s165]
                %227 = vst [vmem:[%s173 + $0xd0] sm:%s165] %v226
                %v228 = vld [vmem:[%s172 + $0x1b0] sm:%s165]
                %229 = vst [vmem:[%s173 + $0xd8] sm:%s165] %v228
                %v230 = vld [vmem:[%s172 + $0x1c0] sm:%s165]
                %231 = vst [vmem:[%s173 + $0xe0] sm:%s165] %v230
                %v232 = vld [vmem:[%s172 + $0x1d0] sm:%s165]
                %233 = vst [vmem:[%s173 + $0xe8] sm:%s165] %v232
                %v234 = vld [vmem:[%s172 + $0x1e0] sm:%s165]
                %235 = vst [vmem:[%s173 + $0xf0] sm:%s165] %v234
                %v236 = vld [vmem:[%s172 + $0x1f0] sm:%s165]
                %237 = vst [vmem:[%s173 + $0xf8] sm:%s165] %v236
              $region45: #{time_variant_filter.3} parent=39 // loop_footer
                %s171 = sadd.s32 1, %s167
              $region46: #{time_variant_filter.3} parent=39 // loop_footer_branch
                %166 = sbr.rel target = $region42
              $region47: #{time_variant_filter.3} parent=39 // loop_exit
                _
            $region40: #{time_variant_filter.3} parent=31 // pred_fallthru
              _
          $region32: #{time_variant_filter.3} parent=27 // pred_fallthru
            _
          %314 = vnop
        $region28: #{time_variant_filter.3} parent=23 // pred_fallthru
          _
      $region24: #{time_variant_filter.3} parent=5 // pred_fallthru
        _
      %p315 = scmp.le.s32.totalorder 1, %s12
      %p316 = scmp.lt.s32.totalorder %s12, 5
      %p317 = pnand %p315, %p316
      %p318 = pneg %p317
      // Predicated region
      $region63: #{time_variant_filter.3} parent=5 // pred_check
        _
      $region64: #{time_variant_filter.3} parent=5 // pred_check_branch
        %320 = sbr.rel (%p317) target = $region66
      $region65: #{time_variant_filter.3} parent=5 // pred_region
        %s321 = ssub.s32 %s12, 1
        %s322 = sand.u32 %s39, 1
        %s323 = sand.u32 %s39, 1
        %s324 = smul.addr %s323, 256
        %s325 = scalar_lea.vmem [#allocation2], %s324
        // Predicated region
        $region67: #{time_variant_filter.3} parent=65 // pred_check
          %p326 = pneg %p52
        $region68: #{time_variant_filter.3} parent=65 // pred_check_branch
          %328 = sbr.rel (%p326) target = $region70
        $region69: #{time_variant_filter.3} parent=65 // pred_region
          _
        $region70: #{time_variant_filter.3} parent=65 // pred_fallthru
          _
        %s329 = sand.u32 %s39, 1
        %s330 = sand.u32 %s39, 1
        %s331 = smul.addr %s330, 256
        %s332 = scalar_lea.vmem [#allocation2], %s331
        %p333 = pneg %p52
        %p334 = pneg %p49
        %p335 = pneg %p73
        %p336 = pneg %p70
        %p337 = pneg %p94
        %p338 = pneg %p91
        %p339 = pneg %p122
        %p340 = pneg %p119
        %s341 = sand.u32 %s109, 1
        %s342 = scalar_lea.sflag [#allocation4], %s341
        %s343 = sand.u32 %s109, 1
        %s344 = smul.addr %s343, 256
        %s345 = scalar_lea.vmem [#allocation3], %s344
        %s346 = smul.u32 16, %s22
        %v347 = vld [vmem:[%s325] sm:$0xff]
        %v348 = vld [vmem:[%s325 + $0x8] sm:$0xff]
        %v349 = vld [vmem:[%s325 + $0x10] sm:$0xff]
        %v350 = vld [vmem:[%s325 + $0x18] sm:$0xff]
        %v351 = vld [vmem:[%s325 + $0x20] sm:$0xff]
        %v352 = vld [vmem:[%s325 + $0x28] sm:$0xff]
        %v353 = vld [vmem:[%s325 + $0x30] sm:$0xff]
        %v354 = vld [vmem:[%s325 + $0x38] sm:$0xff]
        %v355 = vld [vmem:[%s325 + $0x40] sm:$0xff]
        %v356 = vld [vmem:[%s325 + $0x48] sm:$0xff]
        %v357 = vld [vmem:[%s325 + $0x50] sm:$0xff]
        %v358 = vld [vmem:[%s325 + $0x58] sm:$0xff]
        %v359 = vld [vmem:[%s325 + $0x60] sm:$0xff]
        %v360 = vld [vmem:[%s325 + $0x68] sm:$0xff]
        %v361 = vld [vmem:[%s325 + $0x70] sm:$0xff]
        %v362 = vld [vmem:[%s325 + $0x78] sm:$0xff]
        %v363 = vld [vmem:[%s325 + $0x80] sm:$0xff]
        %v364 = vld [vmem:[%s325 + $0x88] sm:$0xff]
        %v365 = vld [vmem:[%s325 + $0x90] sm:$0xff]
        %v366 = vld [vmem:[%s325 + $0x98] sm:$0xff]
        %v367 = vld [vmem:[%s325 + $0xa0] sm:$0xff]
        %v368 = vld [vmem:[%s325 + $0xa8] sm:$0xff]
        %v369 = vld [vmem:[%s325 + $0xb0] sm:$0xff]
        %v370 = vld [vmem:[%s325 + $0xb8] sm:$0xff]
        %v371 = vld [vmem:[%s325 + $0xc0] sm:$0xff]
        %v372 = vld [vmem:[%s325 + $0xc8] sm:$0xff]
        %v373 = vld [vmem:[%s325 + $0xd0] sm:$0xff]
        %v374 = vld [vmem:[%s325 + $0xd8] sm:$0xff]
        %v375 = vld [vmem:[%s325 + $0xe0] sm:$0xff]
        %v376 = vld [vmem:[%s325 + $0xe8] sm:$0xff]
        %v377 = vld [vmem:[%s325 + $0xf0] sm:$0xff]
        %v378 = vld [vmem:[%s325 + $0xf8] sm:$0xff]
        %379 = vxpose.xlu0.b32.start [1/16] %v347, 128
        %380 = vxpose.xlu0.b32.cont [2/16] %v348, 128
        %381 = vxpose.xlu0.b32.cont [3/16] %v349, 128
        %382 = vxpose.xlu0.b32.cont [4/16] %v350, 128
        %383 = vxpose.xlu0.b32.cont [5/16] %v351, 128
        %384 = vxpose.xlu0.b32.cont [6/16] %v352, 128
        %385 = vxpose.xlu0.b32.cont [7/16] %v353, 128
        %386 = vxpose.xlu0.b32.cont [8/16] %v354, 128
        %387 = vxpose.xlu0.b32.cont [9/16] %v355, 128
        %388 = vxpose.xlu0.b32.cont [10/16] %v356, 128
        %389 = vxpose.xlu0.b32.cont [11/16] %v357, 128
        %390 = vxpose.xlu0.b32.cont [12/16] %v358, 128
        %391 = vxpose.xlu0.b32.cont [13/16] %v359, 128
        %392 = vxpose.xlu0.b32.cont [14/16] %v360, 128
        %393 = vxpose.xlu0.b32.cont [15/16] %v361, 128
        %394 = vxpose.xlu0.b32.end [16/16] %v362, 128
        %v395 = vpop.trf.xlu0
        %v396 = vpop.trf.xlu0
        %v397 = vpop.trf.xlu0
        %v398 = vpop.trf.xlu0
        %v399 = vpop.trf.xlu0
        %v400 = vpop.trf.xlu0
        %v401 = vpop.trf.xlu0
        %v402 = vpop.trf.xlu0
        %v403 = vpop.trf.xlu0
        %v404 = vpop.trf.xlu0
        %v405 = vpop.trf.xlu0
        %v406 = vpop.trf.xlu0
        %v407 = vpop.trf.xlu0
        %v408 = vpop.trf.xlu0
        %v409 = vpop.trf.xlu0
        %v410 = vpop.trf.xlu0
        %411 = vxpose.xlu0.b32.start [1/16] %v363, 128
        %412 = vxpose.xlu0.b32.cont [2/16] %v364, 128
        %413 = vxpose.xlu0.b32.cont [3/16] %v365, 128
        %414 = vxpose.xlu0.b32.cont [4/16] %v366, 128
        %415 = vxpose.xlu0.b32.cont [5/16] %v367, 128
        %416 = vxpose.xlu0.b32.cont [6/16] %v368, 128
        %417 = vxpose.xlu0.b32.cont [7/16] %v369, 128
        %418 = vxpose.xlu0.b32.cont [8/16] %v370, 128
        %419 = vxpose.xlu0.b32.cont [9/16] %v371, 128
        %420 = vxpose.xlu0.b32.cont [10/16] %v372, 128
        %421 = vxpose.xlu0.b32.cont [11/16] %v373, 128
        %422 = vxpose.xlu0.b32.cont [12/16] %v374, 128
        %423 = vxpose.xlu0.b32.cont [13/16] %v375, 128
        %424 = vxpose.xlu0.b32.cont [14/16] %v376, 128
        %425 = vxpose.xlu0.b32.cont [15/16] %v377, 128
        %426 = vxpose.xlu0.b32.end [16/16] %v378, 128
        %v427 = vpop.trf.xlu0
        %v428 = vpop.trf.xlu0
        %v429 = vpop.trf.xlu0
        %v430 = vpop.trf.xlu0
        %v431 = vpop.trf.xlu0
        %v432 = vpop.trf.xlu0
        %v433 = vpop.trf.xlu0
        %v434 = vpop.trf.xlu0
        %v435 = vpop.trf.xlu0
        %v436 = vpop.trf.xlu0
        %v437 = vpop.trf.xlu0
        %v438 = vpop.trf.xlu0
        %v439 = vpop.trf.xlu0
        %v440 = vpop.trf.xlu0
        %v441 = vpop.trf.xlu0
        %v442 = vpop.trf.xlu0
        %v443 = vld [vmem:[%s1] sm:$0x3]
        %v445 = vlaneseq
        %v446 = vshrl.u32 %v445, 7
        %v447 = vsub.s32 0, %v446
        %v448 = vrot.slane %v443, %v447
        %v449 = vlaneseq
        %v450 = vshrl.u32 %v449, 7
        %v451 = vsub.s32 1, %v450
        %v452 = vrot.slane %v443, %v451
        %v455 = vmul.f32 %v395, %v448
        %v456 = vmul.f32 %v427, %v452
        %v457 = vmul.f32 %v396, %v448
        %v458 = vmul.f32 %v428, %v452
        %v459 = vmul.f32 %v397, %v448
        %v460 = vmul.f32 %v429, %v452
        %v461 = vmul.f32 %v398, %v448
        %v462 = vmul.f32 %v430, %v452
        %v463 = vmul.f32 %v399, %v448
        %v464 = vmul.f32 %v431, %v452
        %v465 = vmul.f32 %v400, %v448
        %v466 = vmul.f32 %v432, %v452
        %v467 = vmul.f32 %v401, %v448
        %v468 = vmul.f32 %v433, %v452
        %v469 = vmul.f32 %v402, %v448
        %v470 = vmul.f32 %v434, %v452
        %v471 = vmul.f32 %v403, %v448
        %v472 = vmul.f32 %v435, %v452
        %v473 = vmul.f32 %v404, %v448
        %v474 = vmul.f32 %v436, %v452
        %v475 = vmul.f32 %v405, %v448
        %v476 = vmul.f32 %v437, %v452
        %v477 = vmul.f32 %v406, %v448
        %v478 = vmul.f32 %v438, %v452
        %v479 = vmul.f32 %v407, %v448
        %v480 = vmul.f32 %v439, %v452
        %v481 = vmul.f32 %v408, %v448
        %v482 = vmul.f32 %v440, %v452
        %v483 = vmul.f32 %v409, %v448
        %v484 = vmul.f32 %v441, %v452
        %v485 = vmul.f32 %v410, %v448
        %v486 = vmul.f32 %v442, %v452
        %v487 = vld [vmem:[%s2] sm:$0x3]
        %v489 = vlaneseq
        %v490 = vshrl.u32 %v489, 7
        %v491 = vsub.s32 0, %v490
        %v492 = vrot.slane %v487, %v491
        %v493 = vlaneseq
        %v494 = vshrl.u32 %v493, 7
        %v495 = vsub.s32 1, %v494
        %v496 = vrot.slane %v487, %v495
        %v499 = vadd.f32 %v455, %v492
        %v500 = vadd.f32 %v456, %v496
        %v501 = vadd.f32 %v457, %v492
        %v502 = vadd.f32 %v458, %v496
        %v503 = vadd.f32 %v459, %v492
        %v504 = vadd.f32 %v460, %v496
        %v505 = vadd.f32 %v461, %v492
        %v506 = vadd.f32 %v462, %v496
        %v507 = vadd.f32 %v463, %v492
        %v508 = vadd.f32 %v464, %v496
        %v509 = vadd.f32 %v465, %v492
        %v510 = vadd.f32 %v466, %v496
        %v511 = vadd.f32 %v467, %v492
        %v512 = vadd.f32 %v468, %v496
        %v513 = vadd.f32 %v469, %v492
        %v514 = vadd.f32 %v470, %v496
        %v515 = vadd.f32 %v471, %v492
        %v516 = vadd.f32 %v472, %v496
        %v517 = vadd.f32 %v473, %v492
        %v518 = vadd.f32 %v474, %v496
        %v519 = vadd.f32 %v475, %v492
        %v520 = vadd.f32 %v476, %v496
        %v521 = vadd.f32 %v477, %v492
        %v522 = vadd.f32 %v478, %v496
        %v523 = vadd.f32 %v479, %v492
        %v524 = vadd.f32 %v480, %v496
        %v525 = vadd.f32 %v481, %v492
        %v526 = vadd.f32 %v482, %v496
        %v527 = vadd.f32 %v483, %v492
        %v528 = vadd.f32 %v484, %v496
        %v529 = vadd.f32 %v485, %v492
        %v530 = vadd.f32 %v486, %v496
        %531 = vst [vmem:[%s345] sm:$0xff] %v499
        %532 = vst [vmem:[%s345 + $0x8] sm:$0xff] %v500
        %533 = vst [vmem:[%s345 + $0x10] sm:$0xff] %v501
        %534 = vst [vmem:[%s345 + $0x18] sm:$0xff] %v502
        %535 = vst [vmem:[%s345 + $0x20] sm:$0xff] %v503
        %536 = vst [vmem:[%s345 + $0x28] sm:$0xff] %v504
        %537 = vst [vmem:[%s345 + $0x30] sm:$0xff] %v505
        %538 = vst [vmem:[%s345 + $0x38] sm:$0xff] %v506
        %539 = vst [vmem:[%s345 + $0x40] sm:$0xff] %v507
        %540 = vst [vmem:[%s345 + $0x48] sm:$0xff] %v508
        %541 = vst [vmem:[%s345 + $0x50] sm:$0xff] %v509
        %542 = vst [vmem:[%s345 + $0x58] sm:$0xff] %v510
        %543 = vst [vmem:[%s345 + $0x60] sm:$0xff] %v511
        %544 = vst [vmem:[%s345 + $0x68] sm:$0xff] %v512
        %545 = vst [vmem:[%s345 + $0x70] sm:$0xff] %v513
        %546 = vst [vmem:[%s345 + $0x78] sm:$0xff] %v514
        %547 = vst [vmem:[%s345 + $0x80] sm:$0xff] %v515
        %548 = vst [vmem:[%s345 + $0x88] sm:$0xff] %v516
        %549 = vst [vmem:[%s345 + $0x90] sm:$0xff] %v517
        %550 = vst [vmem:[%s345 + $0x98] sm:$0xff] %v518
        %551 = vst [vmem:[%s345 + $0xa0] sm:$0xff] %v519
        %552 = vst [vmem:[%s345 + $0xa8] sm:$0xff] %v520
        %553 = vst [vmem:[%s345 + $0xb0] sm:$0xff] %v521
        %554 = vst [vmem:[%s345 + $0xb8] sm:$0xff] %v522
        %555 = vst [vmem:[%s345 + $0xc0] sm:$0xff] %v523
        %556 = vst [vmem:[%s345 + $0xc8] sm:$0xff] %v524
        %557 = vst [vmem:[%s345 + $0xd0] sm:$0xff] %v525
        %558 = vst [vmem:[%s345 + $0xd8] sm:$0xff] %v526
        %559 = vst [vmem:[%s345 + $0xe0] sm:$0xff] %v527
        %560 = vst [vmem:[%s345 + $0xe8] sm:$0xff] %v528
        %561 = vst [vmem:[%s345 + $0xf0] sm:$0xff] %v529
        %562 = vst [vmem:[%s345 + $0xf8] sm:$0xff] %v530
        %s563 = sand.u32 %s109, 1
        %s564 = scalar_lea.sflag [#allocation4], %s563
        %s565 = sand.u32 %s109, 1
        %s566 = smul.addr %s565, 256
        %s567 = scalar_lea.vmem [#allocation3], %s566
        // Predicated region
        $region71: #{time_variant_filter.3} parent=65 // pred_check
          %p568 = pneg %p119
        $region72: #{time_variant_filter.3} parent=65 // pred_check_branch
          %570 = sbr.rel (%p568) target = $region74
        $region73: #{time_variant_filter.3} parent=65 // pred_region
          %s571 = smul.u32 16, %s22
          %s573 = ssub.s32 4096, 4096
          %574 = vsyncadd %s564, %s573
          %s575 = smul.addr %s571, 2
          %s576 = smul.addr %s21, 64
          %s577 = sadd.s32 %s575, %s576
          %s578 = smul.addr %s577, 128
          %s579 = scalar_lea.hbm %s3, %s578
          %s580 = sshll.u32 %s567, 4
          %s581 = int_to_ptr.vmem [resolvable:$true] %s580
          %586 = dma.vmem_to_hbm [thread:$0]  %s581, 4096, %s579, %s564, 256, 256, 16
        $region74: #{time_variant_filter.3} parent=65 // pred_fallthru
          _
      $region66: #{time_variant_filter.3} parent=5 // pred_fallthru
        _
      %p587 = scmp.le.s32.totalorder 2, %s12
      // Predicated region
      $region75: #{time_variant_filter.3} parent=5 // pred_check
        %p588 = pneg %p587
      $region76: #{time_variant_filter.3} parent=5 // pred_check_branch
        %590 = sbr.rel (%p588) target = $region78
      $region77: #{time_variant_filter.3} parent=5 // pred_region
        %s591 = ssub.s32 %s12, 2
        // Predicated region
        $region79: #{time_variant_filter.3} parent=77 // pred_check
          %p592 = pneg %p125
        $region80: #{time_variant_filter.3} parent=77 // pred_check_branch
          %594 = sbr.rel (%p592) target = $region82
        $region81: #{time_variant_filter.3} parent=77 // pred_region
          %s595 = sand.u32 %s110, 1
          %s596 = scalar_lea.sflag [#allocation4], %s595
          %s597 = sand.u32 %s110, 1
          %s598 = smul.addr %s597, 256
          %s599 = scalar_lea.vmem [#allocation3], %s598
          %600 = dma.done %s596, 4096
        $region82: #{time_variant_filter.3} parent=77 // pred_fallthru
          _
      $region78: #{time_variant_filter.3} parent=5 // pred_fallthru
        _
    $region6: #{time_variant_filter.3} parent=1 // loop_footer
      %s16 = sadd.s32 1, %s12
    $region7: #{time_variant_filter.3} parent=1 // loop_footer_branch
      %11 = sbr.rel target = $region3
    $region8: #{time_variant_filter.3} parent=1 // loop_exit
      _
    %601 = vsyncpa [#allocation4], 1
    %s602 = scalar_lea.sflag [#allocation4], 1
    %603 = vsyncpa %s602, 1

// kernel: time_variant_filter.2
$region0: #{time_variant_filter.2}
  #allocation0 [shape = 'u32[]', space=smem, size = 0x4, offset = 0x4, fixed_abs, tag = 'smem constant byte address 0x4 - core index']
  #allocation1 [shape = 'u32[144,128]{1,0:T(1,128)}', space=vmem, size = 0x12000, scoped, tag = 'internal scratch']
  #allocation2 [shape = 'f32[5,4,16,256]{3,2,1,0:T(8,128)}', space=vmem, size = 0x50000, scoped, tag = 'scratch operand']
  #allocation3 [shape = 'f32[5,4,16,256]{3,2,1,0:T(8,128)}', space=vmem, size = 0x50000, scoped, tag = 'scratch operand']
  %s0 = inlined_call_operand.vmem [shape: f32[2,4,16,256], index: 0, kind: input, shape index: {}]
  %s1 = inlined_call_operand.vmem [shape: f32[2,4,16,256], index: 1, kind: input, shape index: {}]
  %s2 = inlined_call_operand.vmem [shape: f32[8,16,20], index: 2, kind: input, shape index: {}]
  %s3 = inlined_call_operand.vmem [shape: f32[8,16,20], index: 3, kind: input, shape index: {}]
  %s4 = inlined_call_operand.vmem [shape: f32[32,16], index: 4, kind: input, shape index: {}]
  %s5 = inlined_call_operand.vmem [shape: f32[2,8,32,256], index: 5, kind: output, shape index: {0}]
  %s6 = inlined_call_operand.vmem [shape: f32[2,2,8,256], index: 6, kind: output, shape index: {1}]
  %7 = xla_tuple %s5, %s6
  %s8 = sld [smem:[#allocation0]]
  $region68: #{time_variant_filter.2} parent=0
    _
  %s10 = ssub.s32 1, %s8
  %s11 = scalar_select 0, %s10, %s8
  loop: start=0, step=1, limit=4
  $region2: #{time_variant_filter.2} parent=0 // loop_pre_header
    _
  $region3: #{time_variant_filter.2} parent=0 // loop_header
    %s13 = sphi 0, %s17
    %p14 = scmp.ge.s32.totalorder %s13, 4
    %s23 = sphi 0, %s25
    %s26 = sphi 0, %s23
    %s27 = sphi 0, %s26
    %s43 = sphi 0, %s27
    %s49 = sphi 0, %s51
    %s52 = sphi 0, %s49
    %s53 = sphi 0, %s52
    %s69 = sphi 0, %s53
    %s73 = sphi 0, %s73
    %s75 = sphi 0, %s73
    %s76 = sphi 0, %s75
    %s90 = sphi 0, %s76
    %s94 = sphi 0, %s94
    %s96 = sphi 0, %s94
    %s97 = sphi 0, %s96
    %s111 = sphi 0, %s97
    %s115 = sphi 0, %s115
    %s117 = sphi 0, %s115
    %s118 = sphi 0, %s117
    %s132 = sphi 0, %s118
    %s138 = sphi 0, %s140
    %s141 = sphi 0, %s138
    %s142 = sphi 0, %s141
    %s158 = sphi 0, %s142
    %s164 = sphi 0, %s166
    %s167 = sphi 0, %s164
    %s168 = sphi 0, %s167
    %s184 = sphi 0, %s168
  $region4: #{time_variant_filter.2} parent=0 // loop_header_branch
    %16 = sbr.rel (%p14) target = $region8
  $region5: #{time_variant_filter.2} parent=0 // loop_body
    %s18 = ssub.s32 %s13, 1
    %s19 = ssub.s32 %s13, 2
    %s20 = sadd.s32 %s13, 1
    %s21 = ssub.s32 %s13, %s20
    %p22 = scmp.eq.s32.totalorder %s21, 0
    %s24 = sadd.s32 %s23, 1
    %s25 = scalar_select %p22, %s23, %s24
    %p28 = pneg %p22
    %p29 = scmp.eq.s32.totalorder %s13, 1
    %p30 = por %p28, %p29
    %p31 = scmp.ne.s32.totalorder %s23, %s26
    %p32 = scmp.eq.s32.totalorder %s13, 0
    %p33 = por %p31, %p32
    %p34 = scmp.ne.s32.totalorder %s23, %s26
    %p35 = scmp.eq.s32.totalorder %s18, 1
    %p36 = por %p34, %p35
    %p37 = scmp.ne.s32.totalorder %s26, %s27
    %p38 = scmp.eq.s32.totalorder %s18, 0
    %p39 = por %p37, %p38
    %p40 = scmp.ne.s32.totalorder %s26, %s27
    %p41 = scmp.eq.s32.totalorder %s19, 1
    %p42 = por %p40, %p41
    %p44 = scmp.ne.s32.totalorder %s27, %s43
    %p45 = scmp.eq.s32.totalorder %s19, 0
    %p46 = por %p44, %p45
    %s47 = ssub.s32 %s13, %s20
    %p48 = scmp.eq.s32.totalorder %s47, 0
    %s50 = sadd.s32 %s49, 1
    %s51 = scalar_select %p48, %s49, %s50
    %p54 = pneg %p48
    %p55 = scmp.eq.s32.totalorder %s13, 1
    %p56 = por %p54, %p55
    %p57 = scmp.ne.s32.totalorder %s49, %s52
    %p58 = scmp.eq.s32.totalorder %s13, 0
    %p59 = por %p57, %p58
    %p60 = scmp.ne.s32.totalorder %s49, %s52
    %p61 = scmp.eq.s32.totalorder %s18, 1
    %p62 = por %p60, %p61
    %p63 = scmp.ne.s32.totalorder %s52, %s53
    %p64 = scmp.eq.s32.totalorder %s18, 0
    %p65 = por %p63, %p64
    %p66 = scmp.ne.s32.totalorder %s52, %s53
    %p67 = scmp.eq.s32.totalorder %s19, 1
    %p68 = por %p66, %p67
    %p70 = scmp.ne.s32.totalorder %s53, %s69
    %p71 = scmp.eq.s32.totalorder %s19, 0
    %p72 = por %p70, %p71
    %s74 = sadd.s32 %s73, 1
    %p77 = scmp.eq.s32.totalorder %s13, 1
    %p78 = scmp.ne.s32.totalorder %s73, %s75
    %p79 = scmp.eq.s32.totalorder %s13, 0
    %p80 = por %p78, %p79
    %p81 = scmp.ne.s32.totalorder %s73, %s75
    %p82 = scmp.eq.s32.totalorder %s18, 1
    %p83 = por %p81, %p82
    %p84 = scmp.ne.s32.totalorder %s75, %s76
    %p85 = scmp.eq.s32.totalorder %s18, 0
    %p86 = por %p84, %p85
    %p87 = scmp.ne.s32.totalorder %s75, %s76
    %p88 = scmp.eq.s32.totalorder %s19, 1
    %p89 = por %p87, %p88
    %p91 = scmp.ne.s32.totalorder %s76, %s90
    %p92 = scmp.eq.s32.totalorder %s19, 0
    %p93 = por %p91, %p92
    %s95 = sadd.s32 %s94, 1
    %p98 = scmp.eq.s32.totalorder %s13, 1
    %p99 = scmp.ne.s32.totalorder %s94, %s96
    %p100 = scmp.eq.s32.totalorder %s13, 0
    %p101 = por %p99, %p100
    %p102 = scmp.ne.s32.totalorder %s94, %s96
    %p103 = scmp.eq.s32.totalorder %s18, 1
    %p104 = por %p102, %p103
    %p105 = scmp.ne.s32.totalorder %s96, %s97
    %p106 = scmp.eq.s32.totalorder %s18, 0
    %p107 = por %p105, %p106
    %p108 = scmp.ne.s32.totalorder %s96, %s97
    %p109 = scmp.eq.s32.totalorder %s19, 1
    %p110 = por %p108, %p109
    %p112 = scmp.ne.s32.totalorder %s97, %s111
    %p113 = scmp.eq.s32.totalorder %s19, 0
    %p114 = por %p112, %p113
    %s116 = sadd.s32 %s115, 1
    %p119 = scmp.eq.s32.totalorder %s13, 1
    %p120 = scmp.ne.s32.totalorder %s115, %s117
    %p121 = scmp.eq.s32.totalorder %s13, 0
    %p122 = por %p120, %p121
    %p123 = scmp.ne.s32.totalorder %s115, %s117
    %p124 = scmp.eq.s32.totalorder %s18, 1
    %p125 = por %p123, %p124
    %p126 = scmp.ne.s32.totalorder %s117, %s118
    %p127 = scmp.eq.s32.totalorder %s18, 0
    %p128 = por %p126, %p127
    %p129 = scmp.ne.s32.totalorder %s117, %s118
    %p130 = scmp.eq.s32.totalorder %s19, 1
    %p131 = por %p129, %p130
    %p133 = scmp.ne.s32.totalorder %s118, %s132
    %p134 = scmp.eq.s32.totalorder %s19, 0
    %p135 = por %p133, %p134
    %s136 = ssub.s32 %s13, %s20
    %p137 = scmp.eq.s32.totalorder %s136, 0
    %s139 = sadd.s32 %s138, 1
    %s140 = scalar_select %p137, %s138, %s139
    %p143 = pneg %p137
    %p144 = scmp.eq.s32.totalorder %s13, 1
    %p145 = por %p143, %p144
    %p146 = scmp.ne.s32.totalorder %s138, %s141
    %p147 = scmp.eq.s32.totalorder %s13, 0
    %p148 = por %p146, %p147
    %p149 = scmp.ne.s32.totalorder %s138, %s141
    %p150 = scmp.eq.s32.totalorder %s18, 1
    %p151 = por %p149, %p150
    %p152 = scmp.ne.s32.totalorder %s141, %s142
    %p153 = scmp.eq.s32.totalorder %s18, 0
    %p154 = por %p152, %p153
    %p155 = scmp.ne.s32.totalorder %s141, %s142
    %p156 = scmp.eq.s32.totalorder %s19, 1
    %p157 = por %p155, %p156
    %p159 = scmp.ne.s32.totalorder %s142, %s158
    %p160 = scmp.eq.s32.totalorder %s19, 0
    %p161 = por %p159, %p160
    %s162 = ssub.s32 %s13, %s20
    %p163 = scmp.eq.s32.totalorder %s162, 0
    %s165 = sadd.s32 %s164, 1
    %s166 = scalar_select %p163, %s164, %s165
    %p169 = pneg %p163
    %p170 = scmp.eq.s32.totalorder %s13, 1
    %p171 = por %p169, %p170
    %p172 = scmp.ne.s32.totalorder %s164, %s167
    %p173 = scmp.eq.s32.totalorder %s13, 0
    %p174 = por %p172, %p173
    %p175 = scmp.ne.s32.totalorder %s164, %s167
    %p176 = scmp.eq.s32.totalorder %s18, 1
    %p177 = por %p175, %p176
    %p178 = scmp.ne.s32.totalorder %s167, %s168
    %p179 = scmp.eq.s32.totalorder %s18, 0
    %p180 = por %p178, %p179
    %p181 = scmp.ne.s32.totalorder %s167, %s168
    %p182 = scmp.eq.s32.totalorder %s19, 1
    %p183 = por %p181, %p182
    %p185 = scmp.ne.s32.totalorder %s168, %s184
    %p186 = scmp.eq.s32.totalorder %s19, 0
    %p187 = por %p185, %p186
    %p188 = scmp.le.s32.totalorder 1, %s13
    %p189 = scmp.lt.s32.totalorder %s13, 3
    %p190 = pnand %p188, %p189
    %p191 = pneg %p190
    // Predicated region
    $region9: #{time_variant_filter.2} parent=5 // pred_check
      _
    $region10: #{time_variant_filter.2} parent=5 // pred_check_branch
      %193 = sbr.rel (%p190) target = $region12
    $region11: #{time_variant_filter.2} parent=5 // pred_region
      %s194 = ssub.s32 %s13, 1
      // Predicated region
      $region13: #{time_variant_filter.2} parent=11 // pred_check
        %p195 = pneg %p86
      $region14: #{time_variant_filter.2} parent=11 // pred_check_branch
        %197 = sbr.rel (%p195) target = $region16
      $region15: #{time_variant_filter.2} parent=11 // pred_region
        _
      $region16: #{time_variant_filter.2} parent=11 // pred_fallthru
        _
      // Predicated region
      $region17: #{time_variant_filter.2} parent=11 // pred_check
        %p198 = pneg %p107
      $region18: #{time_variant_filter.2} parent=11 // pred_check_branch
        %200 = sbr.rel (%p198) target = $region20
      $region19: #{time_variant_filter.2} parent=11 // pred_region
        _
      $region20: #{time_variant_filter.2} parent=11 // pred_fallthru
        _
      // Predicated region
      $region21: #{time_variant_filter.2} parent=11 // pred_check
        %p201 = pneg %p128
      $region22: #{time_variant_filter.2} parent=11 // pred_check_branch
        %203 = sbr.rel (%p201) target = $region24
      $region23: #{time_variant_filter.2} parent=11 // pred_region
        _
      $region24: #{time_variant_filter.2} parent=11 // pred_fallthru
        _
    $region12: #{time_variant_filter.2} parent=5 // pred_fallthru
      _
    %p204 = scmp.lt.s32.totalorder %s13, 2
    // Predicated region
    $region25: #{time_variant_filter.2} parent=5 // pred_check
      %p205 = pneg %p204
    $region26: #{time_variant_filter.2} parent=5 // pred_check_branch
      %207 = sbr.rel (%p205) target = $region28
    $region27: #{time_variant_filter.2} parent=5 // pred_region
      // Predicated region
      $region29: #{time_variant_filter.2} parent=27 // pred_check
        %p208 = pneg %p33
      $region30: #{time_variant_filter.2} parent=27 // pred_check_branch
        %210 = sbr.rel (%p208) target = $region32
      $region31: #{time_variant_filter.2} parent=27 // pred_region
        %p211 = scmp.lt.s32.totalorder %s13, 1
        %s212 = scalar_select %p211, %s13, 1
        %s213 = smul.addr %s212, 16
        %s214 = smul.addr %s213, 8
        %s215 = scalar_lea.vmem %s0, %s214
      $region32: #{time_variant_filter.2} parent=27 // pred_fallthru
        _
      // Predicated region
      $region33: #{time_variant_filter.2} parent=27 // pred_check
        %p216 = pneg %p59
      $region34: #{time_variant_filter.2} parent=27 // pred_check_branch
        %218 = sbr.rel (%p216) target = $region36
      $region35: #{time_variant_filter.2} parent=27 // pred_region
        %p219 = scmp.lt.s32.totalorder %s13, 1
        %s220 = scalar_select %p219, %s13, 1
        %s221 = smul.addr %s220, 16
        %s222 = smul.addr %s221, 8
        %s223 = scalar_lea.vmem %s1, %s222
      $region36: #{time_variant_filter.2} parent=27 // pred_fallthru
        _
    $region28: #{time_variant_filter.2} parent=5 // pred_fallthru
      _
    %p224 = scmp.le.s32.totalorder 1, %s13
    %p225 = scmp.lt.s32.totalorder %s13, 3
    %p226 = pnand %p224, %p225
    %p227 = pneg %p226
    // Predicated region
    $region37: #{time_variant_filter.2} parent=5 // pred_check
      _
    $region38: #{time_variant_filter.2} parent=5 // pred_check_branch
      %229 = sbr.rel (%p226) target = $region40
    $region39: #{time_variant_filter.2} parent=5 // pred_region
      %s230 = ssub.s32 %s13, 1
      %p231 = scmp.lt.s32.totalorder %s18, 1
      %s232 = scalar_select %p231, %s18, 1
      %s233 = smul.addr %s232, 16
      %s234 = smul.addr %s233, 8
      %s235 = scalar_lea.vmem %s0, %s234
      %p236 = pneg %p39
      %p237 = pneg %p36
      %p238 = scmp.lt.s32.totalorder %s18, 1
      %s239 = scalar_select %p238, %s18, 1
      %s240 = smul.addr %s239, 16
      %s241 = smul.addr %s240, 8
      %s242 = scalar_lea.vmem %s1, %s241
      %p243 = pneg %p65
      %p244 = pneg %p62
      %p245 = pneg %p86
      %p246 = pneg %p83
      %p247 = pneg %p107
      %p248 = pneg %p104
      %p249 = pneg %p128
      %p250 = pneg %p125
      %p251 = pneg %p154
      %p252 = pneg %p151
      %p253 = scmp.lt.s32.totalorder %s18, 1
      %s254 = scalar_select %p253, %s18, 1
      %s255 = smul.addr %s254, 64
      %s256 = smul.addr %s255, 8
      %s257 = scalar_lea.vmem %s5, %s256
      %p258 = pneg %p180
      %p259 = pneg %p177
      %p260 = scmp.lt.s32.totalorder %s18, 1
      %s261 = scalar_select %p260, %s18, 1
      %s262 = smul.addr %s261, 4
      %s263 = smul.addr %s262, 8
      %s264 = scalar_lea.vmem %s6, %s263
      %p265 = scmp.lt.s32.totalorder %s18, 1
      %s266 = scalar_select %p265, %s18, 1
      %s267 = smul.addr %s266, 16
      %s268 = smul.addr %s267, 8
      %s269 = scalar_lea.vmem %s0, %s268
      %p270 = scmp.lt.s32.totalorder %s18, 1
      %s271 = scalar_select %p270, %s18, 1
      %s272 = smul.addr %s271, 16
      %s273 = smul.addr %s272, 8
      %s274 = scalar_lea.vmem %s1, %s273
      %p275 = scmp.lt.s32.totalorder %s18, 1
      %s276 = scalar_select %p275, %s18, 1
      %s277 = smul.addr %s276, 64
      %s278 = smul.addr %s277, 8
      %s279 = scalar_lea.vmem %s5, %s278
      %p280 = scmp.lt.s32.totalorder %s18, 1
      %s281 = scalar_select %p280, %s18, 1
      %s282 = smul.addr %s281, 4
      %s283 = smul.addr %s282, 8
      %s284 = scalar_lea.vmem %s6, %s283
      %vm285 = vcmask 15360
      %286 = vst.msk [vmem:[#allocation2] sm:$0xff] %vm285, 0.0
      %287 = vst.msk [vmem:[#allocation2 + $0x10] sm:$0xff] %vm285, 0.0
      %288 = vst.msk [vmem:[#allocation2 + $0x20] sm:$0xff] %vm285, 0.0
      %289 = vst.msk [vmem:[#allocation2 + $0x30] sm:$0xff] %vm285, 0.0
      %290 = vst.msk [vmem:[#allocation2 + $0x40] sm:$0xff] %vm285, 0.0
      %291 = vst.msk [vmem:[#allocation2 + $0x50] sm:$0xff] %vm285, 0.0
      %292 = vst.msk [vmem:[#allocation2 + $0x60] sm:$0xff] %vm285, 0.0
      %293 = vst.msk [vmem:[#allocation2 + $0x70] sm:$0xff] %vm285, 0.0
      %294 = vst.msk [vmem:[#allocation3] sm:$0xff] %vm285, 0.0
      %295 = vst.msk [vmem:[#allocation3 + $0x10] sm:$0xff] %vm285, 0.0
      %296 = vst.msk [vmem:[#allocation3 + $0x20] sm:$0xff] %vm285, 0.0
      %297 = vst.msk [vmem:[#allocation3 + $0x30] sm:$0xff] %vm285, 0.0
      %298 = vst.msk [vmem:[#allocation3 + $0x40] sm:$0xff] %vm285, 0.0
      %299 = vst.msk [vmem:[#allocation3 + $0x50] sm:$0xff] %vm285, 0.0
      %300 = vst.msk [vmem:[#allocation3 + $0x60] sm:$0xff] %vm285, 0.0
      %301 = vst.msk [vmem:[#allocation3 + $0x70] sm:$0xff] %vm285, 0.0
      %v302 = vld [vmem:[%s269] sm:$0xff]
      %v303 = vld [vmem:[%s269 + $0x8] sm:$0xff]
      %v304 = vld [vmem:[%s269 + $0x10] sm:$0xff]
      %v305 = vld [vmem:[%s269 + $0x18] sm:$0xff]
      %v306 = vld [vmem:[%s269 + $0x20] sm:$0xff]
      %v307 = vld [vmem:[%s269 + $0x28] sm:$0xff]
      %v308 = vld [vmem:[%s269 + $0x30] sm:$0xff]
      %v309 = vld [vmem:[%s269 + $0x38] sm:$0xff]
      %v310 = vld [vmem:[%s269 + $0x40] sm:$0xff]
      %v311 = vld [vmem:[%s269 + $0x48] sm:$0xff]
      %v312 = vld [vmem:[%s269 + $0x50] sm:$0xff]
      %v313 = vld [vmem:[%s269 + $0x58] sm:$0xff]
      %v314 = vld [vmem:[%s269 + $0x60] sm:$0xff]
      %v315 = vld [vmem:[%s269 + $0x68] sm:$0xff]
      %v316 = vld [vmem:[%s269 + $0x70] sm:$0xff]
      %v317 = vld [vmem:[%s269 + $0x78] sm:$0xff]
      %334 = vrot.lane.b32.xlu0 %v302, 2
      %v335 = vpop.permute.xlu0 %334
      %336 = vrot.lane.b32.xlu0 %v303, 2
      %v337 = vpop.permute.xlu0 %336
      %338 = vrot.lane.b32.xlu0 %v304, 2
      %v339 = vpop.permute.xlu0 %338
      %340 = vrot.lane.b32.xlu0 %v305, 2
      %v341 = vpop.permute.xlu0 %340
      %342 = vrot.lane.b32.xlu0 %v306, 2
      %v343 = vpop.permute.xlu0 %342
      %344 = vrot.lane.b32.xlu0 %v307, 2
      %v345 = vpop.permute.xlu0 %344
      %346 = vrot.lane.b32.xlu0 %v308, 2
      %v347 = vpop.permute.xlu0 %346
      %348 = vrot.lane.b32.xlu0 %v309, 2
      %v349 = vpop.permute.xlu0 %348
      %350 = vrot.lane.b32.xlu0 %v310, 2
      %v351 = vpop.permute.xlu0 %350
      %352 = vrot.lane.b32.xlu0 %v311, 2
      %v353 = vpop.permute.xlu0 %352
      %354 = vrot.lane.b32.xlu0 %v312, 2
      %v355 = vpop.permute.xlu0 %354
      %356 = vrot.lane.b32.xlu0 %v313, 2
      %v357 = vpop.permute.xlu0 %356
      %358 = vrot.lane.b32.xlu0 %v314, 2
      %v359 = vpop.permute.xlu0 %358
      %360 = vrot.lane.b32.xlu0 %v315, 2
      %v361 = vpop.permute.xlu0 %360
      %362 = vrot.lane.b32.xlu0 %v316, 2
      %v363 = vpop.permute.xlu0 %362
      %364 = vrot.lane.b32.xlu0 %v317, 2
      %v365 = vpop.permute.xlu0 %364
      %v366 = vsel %vm285, %v335, %v337
      %v367 = vsel %vm285, %v339, %v341
      %v368 = vsel %vm285, %v343, %v345
      %v369 = vsel %vm285, %v347, %v349
      %v370 = vsel %vm285, %v351, %v353
      %v371 = vsel %vm285, %v355, %v357
      %v372 = vsel %vm285, %v359, %v361
      %v373 = vsel %vm285, %v363, %v365
      %vm390 = vcmask 1047568
      %391 = vst.msk [vmem:[#allocation2] sm:$0xff] %vm390, %v335
      %392 = vst [vmem:[#allocation2 + $0x8] sm:$0xff] %v366
      %393 = vst.msk [vmem:[#allocation2 + $0x10] sm:$0xff] %vm390, %v339
      %394 = vst [vmem:[#allocation2 + $0x18] sm:$0xff] %v367
      %395 = vst.msk [vmem:[#allocation2 + $0x20] sm:$0xff] %vm390, %v343
      %396 = vst [vmem:[#allocation2 + $0x28] sm:$0xff] %v368
      %397 = vst.msk [vmem:[#allocation2 + $0x30] sm:$0xff] %vm390, %v347
      %398 = vst [vmem:[#allocation2 + $0x38] sm:$0xff] %v369
      %399 = vst.msk [vmem:[#allocation2 + $0x40] sm:$0xff] %vm390, %v351
      %400 = vst [vmem:[#allocation2 + $0x48] sm:$0xff] %v370
      %401 = vst.msk [vmem:[#allocation2 + $0x50] sm:$0xff] %vm390, %v355
      %402 = vst [vmem:[#allocation2 + $0x58] sm:$0xff] %v371
      %403 = vst.msk [vmem:[#allocation2 + $0x60] sm:$0xff] %vm390, %v359
      %404 = vst [vmem:[#allocation2 + $0x68] sm:$0xff] %v372
      %405 = vst.msk [vmem:[#allocation2 + $0x70] sm:$0xff] %vm390, %v363
      %406 = vst [vmem:[#allocation2 + $0x78] sm:$0xff] %v373
      %v407 = vld [vmem:[%s274] sm:$0xff]
      %v408 = vld [vmem:[%s274 + $0x8] sm:$0xff]
      %v409 = vld [vmem:[%s274 + $0x10] sm:$0xff]
      %v410 = vld [vmem:[%s274 + $0x18] sm:$0xff]
      %v411 = vld [vmem:[%s274 + $0x20] sm:$0xff]
      %v412 = vld [vmem:[%s274 + $0x28] sm:$0xff]
      %v413 = vld [vmem:[%s274 + $0x30] sm:$0xff]
      %v414 = vld [vmem:[%s274 + $0x38] sm:$0xff]
      %v415 = vld [vmem:[%s274 + $0x40] sm:$0xff]
      %v416 = vld [vmem:[%s274 + $0x48] sm:$0xff]
      %v417 = vld [vmem:[%s274 + $0x50] sm:$0xff]
      %v418 = vld [vmem:[%s274 + $0x58] sm:$0xff]
      %v419 = vld [vmem:[%s274 + $0x60] sm:$0xff]
      %v420 = vld [vmem:[%s274 + $0x68] sm:$0xff]
      %v421 = vld [vmem:[%s274 + $0x70] sm:$0xff]
      %v422 = vld [vmem:[%s274 + $0x78] sm:$0xff]
      %439 = vrot.lane.b32.xlu0 %v407, 2
      %v440 = vpop.permute.xlu0 %439
      %441 = vrot.lane.b32.xlu0 %v408, 2
      %v442 = vpop.permute.xlu0 %441
      %443 = vrot.lane.b32.xlu0 %v409, 2
      %v444 = vpop.permute.xlu0 %443
      %445 = vrot.lane.b32.xlu0 %v410, 2
      %v446 = vpop.permute.xlu0 %445
      %447 = vrot.lane.b32.xlu0 %v411, 2
      %v448 = vpop.permute.xlu0 %447
      %449 = vrot.lane.b32.xlu0 %v412, 2
      %v450 = vpop.permute.xlu0 %449
      %451 = vrot.lane.b32.xlu0 %v413, 2
      %v452 = vpop.permute.xlu0 %451
      %453 = vrot.lane.b32.xlu0 %v414, 2
      %v454 = vpop.permute.xlu0 %453
      %455 = vrot.lane.b32.xlu0 %v415, 2
      %v456 = vpop.permute.xlu0 %455
      %457 = vrot.lane.b32.xlu0 %v416, 2
      %v458 = vpop.permute.xlu0 %457
      %459 = vrot.lane.b32.xlu0 %v417, 2
      %v460 = vpop.permute.xlu0 %459
      %461 = vrot.lane.b32.xlu0 %v418, 2
      %v462 = vpop.permute.xlu0 %461
      %463 = vrot.lane.b32.xlu0 %v419, 2
      %v464 = vpop.permute.xlu0 %463
      %465 = vrot.lane.b32.xlu0 %v420, 2
      %v466 = vpop.permute.xlu0 %465
      %467 = vrot.lane.b32.xlu0 %v421, 2
      %v468 = vpop.permute.xlu0 %467
      %469 = vrot.lane.b32.xlu0 %v422, 2
      %v470 = vpop.permute.xlu0 %469
      %v471 = vsel %vm285, %v440, %v442
      %v472 = vsel %vm285, %v444, %v446
      %v473 = vsel %vm285, %v448, %v450
      %v474 = vsel %vm285, %v452, %v454
      %v475 = vsel %vm285, %v456, %v458
      %v476 = vsel %vm285, %v460, %v462
      %v477 = vsel %vm285, %v464, %v466
      %v478 = vsel %vm285, %v468, %v470
      %495 = vst.msk [vmem:[#allocation3] sm:$0xff] %vm390, %v440
      %496 = vst [vmem:[#allocation3 + $0x8] sm:$0xff] %v471
      %497 = vst.msk [vmem:[#allocation3 + $0x10] sm:$0xff] %vm390, %v444
      %498 = vst [vmem:[#allocation3 + $0x18] sm:$0xff] %v472
      %499 = vst.msk [vmem:[#allocation3 + $0x20] sm:$0xff] %vm390, %v448
      %500 = vst [vmem:[#allocation3 + $0x28] sm:$0xff] %v473
      %501 = vst.msk [vmem:[#allocation3 + $0x30] sm:$0xff] %vm390, %v452
      %502 = vst [vmem:[#allocation3 + $0x38] sm:$0xff] %v474
      %503 = vst.msk [vmem:[#allocation3 + $0x40] sm:$0xff] %vm390, %v456
      %504 = vst [vmem:[#allocation3 + $0x48] sm:$0xff] %v475
      %505 = vst.msk [vmem:[#allocation3 + $0x50] sm:$0xff] %vm390, %v460
      %506 = vst [vmem:[#allocation3 + $0x58] sm:$0xff] %v476
      %507 = vst.msk [vmem:[#allocation3 + $0x60] sm:$0xff] %vm390, %v464
      %508 = vst [vmem:[#allocation3 + $0x68] sm:$0xff] %v477
      %509 = vst.msk [vmem:[#allocation3 + $0x70] sm:$0xff] %vm390, %v468
      %510 = vst [vmem:[#allocation3 + $0x78] sm:$0xff] %v478
      %s511 = scalar_lea.vmem [#allocation2], 128
      %vm512 = vcmask 7168
      %513 = vst.msk [vmem:[%s511] sm:$0xff] %vm512, 0.0
      %514 = vst.msk [vmem:[%s511 + $0x10] sm:$0xff] %vm512, 0.0
      %515 = vst.msk [vmem:[%s511 + $0x20] sm:$0xff] %vm512, 0.0
      %516 = vst.msk [vmem:[%s511 + $0x30] sm:$0xff] %vm512, 0.0
      %517 = vst.msk [vmem:[%s511 + $0x40] sm:$0xff] %vm512, 0.0
      %518 = vst.msk [vmem:[%s511 + $0x50] sm:$0xff] %vm512, 0.0
      %519 = vst.msk [vmem:[%s511 + $0x60] sm:$0xff] %vm512, 0.0
      %520 = vst.msk [vmem:[%s511 + $0x70] sm:$0xff] %vm512, 0.0
      %s521 = scalar_lea.vmem [#allocation3], 128
      %522 = vst.msk [vmem:[%s521] sm:$0xff] %vm512, 0.0
      %523 = vst.msk [vmem:[%s521 + $0x10] sm:$0xff] %vm512, 0.0
      %524 = vst.msk [vmem:[%s521 + $0x20] sm:$0xff] %vm512, 0.0
      %525 = vst.msk [vmem:[%s521 + $0x30] sm:$0xff] %vm512, 0.0
      %526 = vst.msk [vmem:[%s521 + $0x40] sm:$0xff] %vm512, 0.0
      %527 = vst.msk [vmem:[%s521 + $0x50] sm:$0xff] %vm512, 0.0
      %528 = vst.msk [vmem:[%s521 + $0x60] sm:$0xff] %vm512, 0.0
      %529 = vst.msk [vmem:[%s521 + $0x70] sm:$0xff] %vm512, 0.0
      %v530 = vld [vmem:[%s269] sm:$0xff]
      %v531 = vld [vmem:[%s269 + $0x8] sm:$0xff]
      %v532 = vld [vmem:[%s269 + $0x10] sm:$0xff]
      %v533 = vld [vmem:[%s269 + $0x18] sm:$0xff]
      %v534 = vld [vmem:[%s269 + $0x20] sm:$0xff]
      %v535 = vld [vmem:[%s269 + $0x28] sm:$0xff]
      %v536 = vld [vmem:[%s269 + $0x30] sm:$0xff]
      %v537 = vld [vmem:[%s269 + $0x38] sm:$0xff]
      %v538 = vld [vmem:[%s269 + $0x40] sm:$0xff]
      %v539 = vld [vmem:[%s269 + $0x48] sm:$0xff]
      %v540 = vld [vmem:[%s269 + $0x50] sm:$0xff]
      %v541 = vld [vmem:[%s269 + $0x58] sm:$0xff]
      %v542 = vld [vmem:[%s269 + $0x60] sm:$0xff]
      %v543 = vld [vmem:[%s269 + $0x68] sm:$0xff]
      %v544 = vld [vmem:[%s269 + $0x70] sm:$0xff]
      %v545 = vld [vmem:[%s269 + $0x78] sm:$0xff]
      %562 = vrot.lane.b32.xlu0 %v530, 1
      %v563 = vpop.permute.xlu0 %562
      %564 = vrot.lane.b32.xlu0 %v531, 1
      %v565 = vpop.permute.xlu0 %564
      %566 = vrot.lane.b32.xlu0 %v532, 1
      %v567 = vpop.permute.xlu0 %566
      %568 = vrot.lane.b32.xlu0 %v533, 1
      %v569 = vpop.permute.xlu0 %568
      %570 = vrot.lane.b32.xlu0 %v534, 1
      %v571 = vpop.permute.xlu0 %570
      %572 = vrot.lane.b32.xlu0 %v535, 1
      %v573 = vpop.permute.xlu0 %572
      %574 = vrot.lane.b32.xlu0 %v536, 1
      %v575 = vpop.permute.xlu0 %574
      %576 = vrot.lane.b32.xlu0 %v537, 1
      %v577 = vpop.permute.xlu0 %576
      %578 = vrot.lane.b32.xlu0 %v538, 1
      %v579 = vpop.permute.xlu0 %578
      %580 = vrot.lane.b32.xlu0 %v539, 1
      %v581 = vpop.permute.xlu0 %580
      %582 = vrot.lane.b32.xlu0 %v540, 1
      %v583 = vpop.permute.xlu0 %582
      %584 = vrot.lane.b32.xlu0 %v541, 1
      %v585 = vpop.permute.xlu0 %584
      %586 = vrot.lane.b32.xlu0 %v542, 1
      %v587 = vpop.permute.xlu0 %586
      %588 = vrot.lane.b32.xlu0 %v543, 1
      %v589 = vpop.permute.xlu0 %588
      %590 = vrot.lane.b32.xlu0 %v544, 1
      %v591 = vpop.permute.xlu0 %590
      %592 = vrot.lane.b32.xlu0 %v545, 1
      %v593 = vpop.permute.xlu0 %592
      %v594 = vsel %vm512, %v563, %v565
      %v595 = vsel %vm512, %v567, %v569
      %v596 = vsel %vm512, %v571, %v573
      %v597 = vsel %vm512, %v575, %v577
      %v598 = vsel %vm512, %v579, %v581
      %v599 = vsel %vm512, %v583, %v585
      %v600 = vsel %vm512, %v587, %v589
      %v601 = vsel %vm512, %v591, %v593
      %vm618 = vcmask 1047560
      %619 = vst.msk [vmem:[%s511] sm:$0xff] %vm618, %v563
      %620 = vst [vmem:[%s511 + $0x8] sm:$0xff] %v594
      %621 = vst.msk [vmem:[%s511 + $0x10] sm:$0xff] %vm618, %v567
      %622 = vst [vmem:[%s511 + $0x18] sm:$0xff] %v595
      %623 = vst.msk [vmem:[%s511 + $0x20] sm:$0xff] %vm618, %v571
      %624 = vst [vmem:[%s511 + $0x28] sm:$0xff] %v596
      %625 = vst.msk [vmem:[%s511 + $0x30] sm:$0xff] %vm618, %v575
      %626 = vst [vmem:[%s511 + $0x38] sm:$0xff] %v597
      %627 = vst.msk [vmem:[%s511 + $0x40] sm:$0xff] %vm618, %v579
      %628 = vst [vmem:[%s511 + $0x48] sm:$0xff] %v598
      %629 = vst.msk [vmem:[%s511 + $0x50] sm:$0xff] %vm618, %v583
      %630 = vst [vmem:[%s511 + $0x58] sm:$0xff] %v599
      %631 = vst.msk [vmem:[%s511 + $0x60] sm:$0xff] %vm618, %v587
      %632 = vst [vmem:[%s511 + $0x68] sm:$0xff] %v600
      %633 = vst.msk [vmem:[%s511 + $0x70] sm:$0xff] %vm618, %v591
      %634 = vst [vmem:[%s511 + $0x78] sm:$0xff] %v601
      %v635 = vld [vmem:[%s274] sm:$0xff]
      %v636 = vld [vmem:[%s274 + $0x8] sm:$0xff]
      %v637 = vld [vmem:[%s274 + $0x10] sm:$0xff]
      %v638 = vld [vmem:[%s274 + $0x18] sm:$0xff]
      %v639 = vld [vmem:[%s274 + $0x20] sm:$0xff]
      %v640 = vld [vmem:[%s274 + $0x28] sm:$0xff]
      %v641 = vld [vmem:[%s274 + $0x30] sm:$0xff]
      %v642 = vld [vmem:[%s274 + $0x38] sm:$0xff]
      %v643 = vld [vmem:[%s274 + $0x40] sm:$0xff]
      %v644 = vld [vmem:[%s274 + $0x48] sm:$0xff]
      %v645 = vld [vmem:[%s274 + $0x50] sm:$0xff]
      %v646 = vld [vmem:[%s274 + $0x58] sm:$0xff]
      %v647 = vld [vmem:[%s274 + $0x60] sm:$0xff]
      %v648 = vld [vmem:[%s274 + $0x68] sm:$0xff]
      %v649 = vld [vmem:[%s274 + $0x70] sm:$0xff]
      %v650 = vld [vmem:[%s274 + $0x78] sm:$0xff]
      %667 = vrot.lane.b32.xlu0 %v635, 1
      %v668 = vpop.permute.xlu0 %667
      %669 = vrot.lane.b32.xlu0 %v636, 1
      %v670 = vpop.permute.xlu0 %669
      %671 = vrot.lane.b32.xlu0 %v637, 1
      %v672 = vpop.permute.xlu0 %671
      %673 = vrot.lane.b32.xlu0 %v638, 1
      %v674 = vpop.permute.xlu0 %673
      %675 = vrot.lane.b32.xlu0 %v639, 1
      %v676 = vpop.permute.xlu0 %675
      %677 = vrot.lane.b32.xlu0 %v640, 1
      %v678 = vpop.permute.xlu0 %677
      %679 = vrot.lane.b32.xlu0 %v641, 1
      %v680 = vpop.permute.xlu0 %679
      %681 = vrot.lane.b32.xlu0 %v642, 1
      %v682 = vpop.permute.xlu0 %681
      %683 = vrot.lane.b32.xlu0 %v643, 1
      %v684 = vpop.permute.xlu0 %683
      %685 = vrot.lane.b32.xlu0 %v644, 1
      %v686 = vpop.permute.xlu0 %685
      %687 = vrot.lane.b32.xlu0 %v645, 1
      %v688 = vpop.permute.xlu0 %687
      %689 = vrot.lane.b32.xlu0 %v646, 1
      %v690 = vpop.permute.xlu0 %689
      %691 = vrot.lane.b32.xlu0 %v647, 1
      %v692 = vpop.permute.xlu0 %691
      %693 = vrot.lane.b32.xlu0 %v648, 1
      %v694 = vpop.permute.xlu0 %693
      %695 = vrot.lane.b32.xlu0 %v649, 1
      %v696 = vpop.permute.xlu0 %695
      %697 = vrot.lane.b32.xlu0 %v650, 1
      %v698 = vpop.permute.xlu0 %697
      %v699 = vsel %vm512, %v668, %v670
      %v700 = vsel %vm512, %v672, %v674
      %v701 = vsel %vm512, %v676, %v678
      %v702 = vsel %vm512, %v680, %v682
      %v703 = vsel %vm512, %v684, %v686
      %v704 = vsel %vm512, %v688, %v690
      %v705 = vsel %vm512, %v692, %v694
      %v706 = vsel %vm512, %v696, %v698
      %723 = vst.msk [vmem:[%s521] sm:$0xff] %vm618, %v668
      %724 = vst [vmem:[%s521 + $0x8] sm:$0xff] %v699
      %725 = vst.msk [vmem:[%s521 + $0x10] sm:$0xff] %vm618, %v672
      %726 = vst [vmem:[%s521 + $0x18] sm:$0xff] %v700
      %727 = vst.msk [vmem:[%s521 + $0x20] sm:$0xff] %vm618, %v676
      %728 = vst [vmem:[%s521 + $0x28] sm:$0xff] %v701
      %729 = vst.msk [vmem:[%s521 + $0x30] sm:$0xff] %vm618, %v680
      %730 = vst [vmem:[%s521 + $0x38] sm:$0xff] %v702
      %731 = vst.msk [vmem:[%s521 + $0x40] sm:$0xff] %vm618, %v684
      %732 = vst [vmem:[%s521 + $0x48] sm:$0xff] %v703
      %733 = vst.msk [vmem:[%s521 + $0x50] sm:$0xff] %vm618, %v688
      %734 = vst [vmem:[%s521 + $0x58] sm:$0xff] %v704
      %735 = vst.msk [vmem:[%s521 + $0x60] sm:$0xff] %vm618, %v692
      %736 = vst [vmem:[%s521 + $0x68] sm:$0xff] %v705
      %737 = vst.msk [vmem:[%s521 + $0x70] sm:$0xff] %vm618, %v696
      %738 = vst [vmem:[%s521 + $0x78] sm:$0xff] %v706
      %v739 = vld [vmem:[%s269] sm:$0xff]
      %v740 = vld [vmem:[%s269 + $0x8] sm:$0xff]
      %v741 = vld [vmem:[%s269 + $0x10] sm:$0xff]
      %v742 = vld [vmem:[%s269 + $0x18] sm:$0xff]
      %v743 = vld [vmem:[%s269 + $0x20] sm:$0xff]
      %v744 = vld [vmem:[%s269 + $0x28] sm:$0xff]
      %v745 = vld [vmem:[%s269 + $0x30] sm:$0xff]
      %v746 = vld [vmem:[%s269 + $0x38] sm:$0xff]
      %v747 = vld [vmem:[%s269 + $0x40] sm:$0xff]
      %v748 = vld [vmem:[%s269 + $0x48] sm:$0xff]
      %v749 = vld [vmem:[%s269 + $0x50] sm:$0xff]
      %v750 = vld [vmem:[%s269 + $0x58] sm:$0xff]
      %v751 = vld [vmem:[%s269 + $0x60] sm:$0xff]
      %v752 = vld [vmem:[%s269 + $0x68] sm:$0xff]
      %v753 = vld [vmem:[%s269 + $0x70] sm:$0xff]
      %v754 = vld [vmem:[%s269 + $0x78] sm:$0xff]
      %s755 = scalar_lea.vmem [#allocation2], 256
      %756 = vst [vmem:[%s755] sm:$0xff] %v739
      %757 = vst [vmem:[%s755 + $0x8] sm:$0xff] %v740
      %758 = vst [vmem:[%s755 + $0x10] sm:$0xff] %v741
      %759 = vst [vmem:[%s755 + $0x18] sm:$0xff] %v742
      %760 = vst [vmem:[%s755 + $0x20] sm:$0xff] %v743
      %761 = vst [vmem:[%s755 + $0x28] sm:$0xff] %v744
      %762 = vst [vmem:[%s755 + $0x30] sm:$0xff] %v745
      %763 = vst [vmem:[%s755 + $0x38] sm:$0xff] %v746
      %764 = vst [vmem:[%s755 + $0x40] sm:$0xff] %v747
      %765 = vst [vmem:[%s755 + $0x48] sm:$0xff] %v748
      %766 = vst [vmem:[%s755 + $0x50] sm:$0xff] %v749
      %767 = vst [vmem:[%s755 + $0x58] sm:$0xff] %v750
      %768 = vst [vmem:[%s755 + $0x60] sm:$0xff] %v751
      %769 = vst [vmem:[%s755 + $0x68] sm:$0xff] %v752
      %770 = vst [vmem:[%s755 + $0x70] sm:$0xff] %v753
      %771 = vst [vmem:[%s755 + $0x78] sm:$0xff] %v754
      %v772 = vld [vmem:[%s274] sm:$0xff]
      %v773 = vld [vmem:[%s274 + $0x8] sm:$0xff]
      %v774 = vld [vmem:[%s274 + $0x10] sm:$0xff]
      %v775 = vld [vmem:[%s274 + $0x18] sm:$0xff]
      %v776 = vld [vmem:[%s274 + $0x20] sm:$0xff]
      %v777 = vld [vmem:[%s274 + $0x28] sm:$0xff]
      %v778 = vld [vmem:[%s274 + $0x30] sm:$0xff]
      %v779 = vld [vmem:[%s274 + $0x38] sm:$0xff]
      %v780 = vld [vmem:[%s274 + $0x40] sm:$0xff]
      %v781 = vld [vmem:[%s274 + $0x48] sm:$0xff]
      %v782 = vld [vmem:[%s274 + $0x50] sm:$0xff]
      %v783 = vld [vmem:[%s274 + $0x58] sm:$0xff]
      %v784 = vld [vmem:[%s274 + $0x60] sm:$0xff]
      %v785 = vld [vmem:[%s274 + $0x68] sm:$0xff]
      %v786 = vld [vmem:[%s274 + $0x70] sm:$0xff]
      %v787 = vld [vmem:[%s274 + $0x78] sm:$0xff]
      %s788 = scalar_lea.vmem [#allocation3], 256
      %789 = vst [vmem:[%s788] sm:$0xff] %v772
      %790 = vst [vmem:[%s788 + $0x8] sm:$0xff] %v773
      %791 = vst [vmem:[%s788 + $0x10] sm:$0xff] %v774
      %792 = vst [vmem:[%s788 + $0x18] sm:$0xff] %v775
      %793 = vst [vmem:[%s788 + $0x20] sm:$0xff] %v776
      %794 = vst [vmem:[%s788 + $0x28] sm:$0xff] %v777
      %795 = vst [vmem:[%s788 + $0x30] sm:$0xff] %v778
      %796 = vst [vmem:[%s788 + $0x38] sm:$0xff] %v779
      %797 = vst [vmem:[%s788 + $0x40] sm:$0xff] %v780
      %798 = vst [vmem:[%s788 + $0x48] sm:$0xff] %v781
      %799 = vst [vmem:[%s788 + $0x50] sm:$0xff] %v782
      %800 = vst [vmem:[%s788 + $0x58] sm:$0xff] %v783
      %801 = vst [vmem:[%s788 + $0x60] sm:$0xff] %v784
      %802 = vst [vmem:[%s788 + $0x68] sm:$0xff] %v785
      %803 = vst [vmem:[%s788 + $0x70] sm:$0xff] %v786
      %804 = vst [vmem:[%s788 + $0x78] sm:$0xff] %v787
      %s805 = scalar_lea.vmem [#allocation2], 384
      %vm806 = vcmask 1048568
      %807 = vst.msk [vmem:[%s805 + $0x8] sm:$0xff] %vm806, 0.0
      %808 = vst.msk [vmem:[%s805 + $0x18] sm:$0xff] %vm806, 0.0
      %809 = vst.msk [vmem:[%s805 + $0x28] sm:$0xff] %vm806, 0.0
      %810 = vst.msk [vmem:[%s805 + $0x38] sm:$0xff] %vm806, 0.0
      %811 = vst.msk [vmem:[%s805 + $0x48] sm:$0xff] %vm806, 0.0
      %812 = vst.msk [vmem:[%s805 + $0x58] sm:$0xff] %vm806, 0.0
      %813 = vst.msk [vmem:[%s805 + $0x68] sm:$0xff] %vm806, 0.0
      %814 = vst.msk [vmem:[%s805 + $0x78] sm:$0xff] %vm806, 0.0
      %s815 = scalar_lea.vmem [#allocation3], 384
      %816 = vst.msk [vmem:[%s815 + $0x8] sm:$0xff] %vm806, 0.0
      %817 = vst.msk [vmem:[%s815 + $0x18] sm:$0xff] %vm806, 0.0
      %818 = vst.msk [vmem:[%s815 + $0x28] sm:$0xff] %vm806, 0.0
      %819 = vst.msk [vmem:[%s815 + $0x38] sm:$0xff] %vm806, 0.0
      %820 = vst.msk [vmem:[%s815 + $0x48] sm:$0xff] %vm806, 0.0
      %821 = vst.msk [vmem:[%s815 + $0x58] sm:$0xff] %vm806, 0.0
      %822 = vst.msk [vmem:[%s815 + $0x68] sm:$0xff] %vm806, 0.0
      %823 = vst.msk [vmem:[%s815 + $0x78] sm:$0xff] %vm806, 0.0
      %v824 = vld [vmem:[%s269] sm:$0xff]
      %v825 = vld [vmem:[%s269 + $0x8] sm:$0xff]
      %v826 = vld [vmem:[%s269 + $0x10] sm:$0xff]
      %v827 = vld [vmem:[%s269 + $0x18] sm:$0xff]
      %v828 = vld [vmem:[%s269 + $0x20] sm:$0xff]
      %v829 = vld [vmem:[%s269 + $0x28] sm:$0xff]
      %v830 = vld [vmem:[%s269 + $0x30] sm:$0xff]
      %v831 = vld [vmem:[%s269 + $0x38] sm:$0xff]
      %v832 = vld [vmem:[%s269 + $0x40] sm:$0xff]
      %v833 = vld [vmem:[%s269 + $0x48] sm:$0xff]
      %v834 = vld [vmem:[%s269 + $0x50] sm:$0xff]
      %v835 = vld [vmem:[%s269 + $0x58] sm:$0xff]
      %v836 = vld [vmem:[%s269 + $0x60] sm:$0xff]
      %v837 = vld [vmem:[%s269 + $0x68] sm:$0xff]
      %v838 = vld [vmem:[%s269 + $0x70] sm:$0xff]
      %v839 = vld [vmem:[%s269 + $0x78] sm:$0xff]
      %856 = vrot.lane.b32.xlu0 %v824, 127
      %v857 = vpop.permute.xlu0 %856
      %858 = vrot.lane.b32.xlu0 %v825, 127
      %v859 = vpop.permute.xlu0 %858
      %860 = vrot.lane.b32.xlu0 %v826, 127
      %v861 = vpop.permute.xlu0 %860
      %862 = vrot.lane.b32.xlu0 %v827, 127
      %v863 = vpop.permute.xlu0 %862
      %864 = vrot.lane.b32.xlu0 %v828, 127
      %v865 = vpop.permute.xlu0 %864
      %866 = vrot.lane.b32.xlu0 %v829, 127
      %v867 = vpop.permute.xlu0 %866
      %868 = vrot.lane.b32.xlu0 %v830, 127
      %v869 = vpop.permute.xlu0 %868
      %870 = vrot.lane.b32.xlu0 %v831, 127
      %v871 = vpop.permute.xlu0 %870
      %872 = vrot.lane.b32.xlu0 %v832, 127
      %v873 = vpop.permute.xlu0 %872
      %874 = vrot.lane.b32.xlu0 %v833, 127
      %v875 = vpop.permute.xlu0 %874
      %876 = vrot.lane.b32.xlu0 %v834, 127
      %v877 = vpop.permute.xlu0 %876
      %878 = vrot.lane.b32.xlu0 %v835, 127
      %v879 = vpop.permute.xlu0 %878
      %880 = vrot.lane.b32.xlu0 %v836, 127
      %v881 = vpop.permute.xlu0 %880
      %882 = vrot.lane.b32.xlu0 %v837, 127
      %v883 = vpop.permute.xlu0 %882
      %884 = vrot.lane.b32.xlu0 %v838, 127
      %v885 = vpop.permute.xlu0 %884
      %886 = vrot.lane.b32.xlu0 %v839, 127
      %v887 = vpop.permute.xlu0 %886
      %vm888 = vcmask 1039360
      %v889 = vsel %vm888, %v857, %v859
      %v890 = vsel %vm888, %v861, %v863
      %v891 = vsel %vm888, %v865, %v867
      %v892 = vsel %vm888, %v869, %v871
      %v893 = vsel %vm888, %v873, %v875
      %v894 = vsel %vm888, %v877, %v879
      %v895 = vsel %vm888, %v881, %v883
      %v896 = vsel %vm888, %v885, %v887
      %913 = vst [vmem:[%s805] sm:$0xff] %v889
      %914 = vst.msk [vmem:[%s805 + $0x8] sm:$0xff] %vm888, %v859
      %915 = vst [vmem:[%s805 + $0x10] sm:$0xff] %v890
      %916 = vst.msk [vmem:[%s805 + $0x18] sm:$0xff] %vm888, %v863
      %917 = vst [vmem:[%s805 + $0x20] sm:$0xff] %v891
      %918 = vst.msk [vmem:[%s805 + $0x28] sm:$0xff] %vm888, %v867
      %919 = vst [vmem:[%s805 + $0x30] sm:$0xff] %v892
      %920 = vst.msk [vmem:[%s805 + $0x38] sm:$0xff] %vm888, %v871
      %921 = vst [vmem:[%s805 + $0x40] sm:$0xff] %v893
      %922 = vst.msk [vmem:[%s805 + $0x48] sm:$0xff] %vm888, %v875
      %923 = vst [vmem:[%s805 + $0x50] sm:$0xff] %v894
      %924 = vst.msk [vmem:[%s805 + $0x58] sm:$0xff] %vm888, %v879
      %925 = vst [vmem:[%s805 + $0x60] sm:$0xff] %v895
      %926 = vst.msk [vmem:[%s805 + $0x68] sm:$0xff] %vm888, %v883
      %927 = vst [vmem:[%s805 + $0x70] sm:$0xff] %v896
      %928 = vst.msk [vmem:[%s805 + $0x78] sm:$0xff] %vm888, %v887
      %v929 = vld [vmem:[%s274] sm:$0xff]
      %v930 = vld [vmem:[%s274 + $0x8] sm:$0xff]
      %v931 = vld [vmem:[%s274 + $0x10] sm:$0xff]
      %v932 = vld [vmem:[%s274 + $0x18] sm:$0xff]
      %v933 = vld [vmem:[%s274 + $0x20] sm:$0xff]
      %v934 = vld [vmem:[%s274 + $0x28] sm:$0xff]
      %v935 = vld [vmem:[%s274 + $0x30] sm:$0xff]
      %v936 = vld [vmem:[%s274 + $0x38] sm:$0xff]
      %v937 = vld [vmem:[%s274 + $0x40] sm:$0xff]
      %v938 = vld [vmem:[%s274 + $0x48] sm:$0xff]
      %v939 = vld [vmem:[%s274 + $0x50] sm:$0xff]
      %v940 = vld [vmem:[%s274 + $0x58] sm:$0xff]
      %v941 = vld [vmem:[%s274 + $0x60] sm:$0xff]
      %v942 = vld [vmem:[%s274 + $0x68] sm:$0xff]
      %v943 = vld [vmem:[%s274 + $0x70] sm:$0xff]
      %v944 = vld [vmem:[%s274 + $0x78] sm:$0xff]
      %961 = vrot.lane.b32.xlu0 %v929, 127
      %v962 = vpop.permute.xlu0 %961
      %963 = vrot.lane.b32.xlu0 %v930, 127
      %v964 = vpop.permute.xlu0 %963
      %965 = vrot.lane.b32.xlu0 %v931, 127
      %v966 = vpop.permute.xlu0 %965
      %967 = vrot.lane.b32.xlu0 %v932, 127
      %v968 = vpop.permute.xlu0 %967
      %969 = vrot.lane.b32.xlu0 %v933, 127
      %v970 = vpop.permute.xlu0 %969
      %971 = vrot.lane.b32.xlu0 %v934, 127
      %v972 = vpop.permute.xlu0 %971
      %973 = vrot.lane.b32.xlu0 %v935, 127
      %v974 = vpop.permute.xlu0 %973
      %975 = vrot.lane.b32.xlu0 %v936, 127
      %v976 = vpop.permute.xlu0 %975
      %977 = vrot.lane.b32.xlu0 %v937, 127
      %v978 = vpop.permute.xlu0 %977
      %979 = vrot.lane.b32.xlu0 %v938, 127
      %v980 = vpop.permute.xlu0 %979
      %981 = vrot.lane.b32.xlu0 %v939, 127
      %v982 = vpop.permute.xlu0 %981
      %983 = vrot.lane.b32.xlu0 %v940, 127
      %v984 = vpop.permute.xlu0 %983
      %985 = vrot.lane.b32.xlu0 %v941, 127
      %v986 = vpop.permute.xlu0 %985
      %987 = vrot.lane.b32.xlu0 %v942, 127
      %v988 = vpop.permute.xlu0 %987
      %989 = vrot.lane.b32.xlu0 %v943, 127
      %v990 = vpop.permute.xlu0 %989
      %991 = vrot.lane.b32.xlu0 %v944, 127
      %v992 = vpop.permute.xlu0 %991
      %v993 = vsel %vm888, %v962, %v964
      %v994 = vsel %vm888, %v966, %v968
      %v995 = vsel %vm888, %v970, %v972
      %v996 = vsel %vm888, %v974, %v976
      %v997 = vsel %vm888, %v978, %v980
      %v998 = vsel %vm888, %v982, %v984
      %v999 = vsel %vm888, %v986, %v988
      %v1000 = vsel %vm888, %v990, %v992
      %1017 = vst [vmem:[%s815] sm:$0xff] %v993
      %1018 = vst.msk [vmem:[%s815 + $0x8] sm:$0xff] %vm888, %v964
      %1019 = vst [vmem:[%s815 + $0x10] sm:$0xff] %v994
      %1020 = vst.msk [vmem:[%s815 + $0x18] sm:$0xff] %vm888, %v968
      %1021 = vst [vmem:[%s815 + $0x20] sm:$0xff] %v995
      %1022 = vst.msk [vmem:[%s815 + $0x28] sm:$0xff] %vm888, %v972
      %1023 = vst [vmem:[%s815 + $0x30] sm:$0xff] %v996
      %1024 = vst.msk [vmem:[%s815 + $0x38] sm:$0xff] %vm888, %v976
      %1025 = vst [vmem:[%s815 + $0x40] sm:$0xff] %v997
      %1026 = vst.msk [vmem:[%s815 + $0x48] sm:$0xff] %vm888, %v980
      %1027 = vst [vmem:[%s815 + $0x50] sm:$0xff] %v998
      %1028 = vst.msk [vmem:[%s815 + $0x58] sm:$0xff] %vm888, %v984
      %1029 = vst [vmem:[%s815 + $0x60] sm:$0xff] %v999
      %1030 = vst.msk [vmem:[%s815 + $0x68] sm:$0xff] %vm888, %v988
      %1031 = vst [vmem:[%s815 + $0x70] sm:$0xff] %v1000
      %1032 = vst.msk [vmem:[%s815 + $0x78] sm:$0xff] %vm888, %v992
      %s1033 = scalar_lea.vmem [#allocation2], 512
      %vm1034 = vcmask 1048560
      %1035 = vst.msk [vmem:[%s1033 + $0x8] sm:$0xff] %vm1034, 0.0
      %1036 = vst.msk [vmem:[%s1033 + $0x18] sm:$0xff] %vm1034, 0.0
      %1037 = vst.msk [vmem:[%s1033 + $0x28] sm:$0xff] %vm1034, 0.0
      %1038 = vst.msk [vmem:[%s1033 + $0x38] sm:$0xff] %vm1034, 0.0
      %1039 = vst.msk [vmem:[%s1033 + $0x48] sm:$0xff] %vm1034, 0.0
      %1040 = vst.msk [vmem:[%s1033 + $0x58] sm:$0xff] %vm1034, 0.0
      %1041 = vst.msk [vmem:[%s1033 + $0x68] sm:$0xff] %vm1034, 0.0
      %1042 = vst.msk [vmem:[%s1033 + $0x78] sm:$0xff] %vm1034, 0.0
      %s1043 = scalar_lea.vmem [#allocation3], 512
      %1044 = vst.msk [vmem:[%s1043 + $0x8] sm:$0xff] %vm1034, 0.0
      %1045 = vst.msk [vmem:[%s1043 + $0x18] sm:$0xff] %vm1034, 0.0
      %1046 = vst.msk [vmem:[%s1043 + $0x28] sm:$0xff] %vm1034, 0.0
      %1047 = vst.msk [vmem:[%s1043 + $0x38] sm:$0xff] %vm1034, 0.0
      %1048 = vst.msk [vmem:[%s1043 + $0x48] sm:$0xff] %vm1034, 0.0
      %1049 = vst.msk [vmem:[%s1043 + $0x58] sm:$0xff] %vm1034, 0.0
      %1050 = vst.msk [vmem:[%s1043 + $0x68] sm:$0xff] %vm1034, 0.0
      %1051 = vst.msk [vmem:[%s1043 + $0x78] sm:$0xff] %vm1034, 0.0
      %v1052 = vld [vmem:[%s269] sm:$0xff]
      %v1053 = vld [vmem:[%s269 + $0x8] sm:$0xff]
      %v1054 = vld [vmem:[%s269 + $0x10] sm:$0xff]
      %v1055 = vld [vmem:[%s269 + $0x18] sm:$0xff]
      %v1056 = vld [vmem:[%s269 + $0x20] sm:$0xff]
      %v1057 = vld [vmem:[%s269 + $0x28] sm:$0xff]
      %v1058 = vld [vmem:[%s269 + $0x30] sm:$0xff]
      %v1059 = vld [vmem:[%s269 + $0x38] sm:$0xff]
      %v1060 = vld [vmem:[%s269 + $0x40] sm:$0xff]
      %v1061 = vld [vmem:[%s269 + $0x48] sm:$0xff]
      %v1062 = vld [vmem:[%s269 + $0x50] sm:$0xff]
      %v1063 = vld [vmem:[%s269 + $0x58] sm:$0xff]
      %v1064 = vld [vmem:[%s269 + $0x60] sm:$0xff]
      %v1065 = vld [vmem:[%s269 + $0x68] sm:$0xff]
      %v1066 = vld [vmem:[%s269 + $0x70] sm:$0xff]
      %v1067 = vld [vmem:[%s269 + $0x78] sm:$0xff]
      %1084 = vrot.lane.b32.xlu0 %v1052, 126
      %v1085 = vpop.permute.xlu0 %1084
      %1086 = vrot.lane.b32.xlu0 %v1053, 126
      %v1087 = vpop.permute.xlu0 %1086
      %1088 = vrot.lane.b32.xlu0 %v1054, 126
      %v1089 = vpop.permute.xlu0 %1088
      %1090 = vrot.lane.b32.xlu0 %v1055, 126
      %v1091 = vpop.permute.xlu0 %1090
      %1092 = vrot.lane.b32.xlu0 %v1056, 126
      %v1093 = vpop.permute.xlu0 %1092
      %1094 = vrot.lane.b32.xlu0 %v1057, 126
      %v1095 = vpop.permute.xlu0 %1094
      %1096 = vrot.lane.b32.xlu0 %v1058, 126
      %v1097 = vpop.permute.xlu0 %1096
      %1098 = vrot.lane.b32.xlu0 %v1059, 126
      %v1099 = vpop.permute.xlu0 %1098
      %1100 = vrot.lane.b32.xlu0 %v1060, 126
      %v1101 = vpop.permute.xlu0 %1100
      %1102 = vrot.lane.b32.xlu0 %v1061, 126
      %v1103 = vpop.permute.xlu0 %1102
      %1104 = vrot.lane.b32.xlu0 %v1062, 126
      %v1105 = vpop.permute.xlu0 %1104
      %1106 = vrot.lane.b32.xlu0 %v1063, 126
      %v1107 = vpop.permute.xlu0 %1106
      %1108 = vrot.lane.b32.xlu0 %v1064, 126
      %v1109 = vpop.permute.xlu0 %1108
      %1110 = vrot.lane.b32.xlu0 %v1065, 126
      %v1111 = vpop.permute.xlu0 %1110
      %1112 = vrot.lane.b32.xlu0 %v1066, 126
      %v1113 = vpop.permute.xlu0 %1112
      %1114 = vrot.lane.b32.xlu0 %v1067, 126
      %v1115 = vpop.permute.xlu0 %1114
      %vm1116 = vcmask 1031168
      %v1117 = vsel %vm1116, %v1085, %v1087
      %v1118 = vsel %vm1116, %v1089, %v1091
      %v1119 = vsel %vm1116, %v1093, %v1095
      %v1120 = vsel %vm1116, %v1097, %v1099
      %v1121 = vsel %vm1116, %v1101, %v1103
      %v1122 = vsel %vm1116, %v1105, %v1107
      %v1123 = vsel %vm1116, %v1109, %v1111
      %v1124 = vsel %vm1116, %v1113, %v1115
      %1141 = vst [vmem:[%s1033] sm:$0xff] %v1117
      %1142 = vst.msk [vmem:[%s1033 + $0x8] sm:$0xff] %vm1116, %v1087
      %1143 = vst [vmem:[%s1033 + $0x10] sm:$0xff] %v1118
      %1144 = vst.msk [vmem:[%s1033 + $0x18] sm:$0xff] %vm1116, %v1091
      %1145 = vst [vmem:[%s1033 + $0x20] sm:$0xff] %v1119
      %1146 = vst.msk [vmem:[%s1033 + $0x28] sm:$0xff] %vm1116, %v1095
      %1147 = vst [vmem:[%s1033 + $0x30] sm:$0xff] %v1120
      %1148 = vst.msk [vmem:[%s1033 + $0x38] sm:$0xff] %vm1116, %v1099
      %1149 = vst [vmem:[%s1033 + $0x40] sm:$0xff] %v1121
      %1150 = vst.msk [vmem:[%s1033 + $0x48] sm:$0xff] %vm1116, %v1103
      %1151 = vst [vmem:[%s1033 + $0x50] sm:$0xff] %v1122
      %1152 = vst.msk [vmem:[%s1033 + $0x58] sm:$0xff] %vm1116, %v1107
      %1153 = vst [vmem:[%s1033 + $0x60] sm:$0xff] %v1123
      %1154 = vst.msk [vmem:[%s1033 + $0x68] sm:$0xff] %vm1116, %v1111
      %1155 = vst [vmem:[%s1033 + $0x70] sm:$0xff] %v1124
      %1156 = vst.msk [vmem:[%s1033 + $0x78] sm:$0xff] %vm1116, %v1115
      %v1157 = vld [vmem:[%s274] sm:$0xff]
      %v1158 = vld [vmem:[%s274 + $0x8] sm:$0xff]
      %v1159 = vld [vmem:[%s274 + $0x10] sm:$0xff]
      %v1160 = vld [vmem:[%s274 + $0x18] sm:$0xff]
      %v1161 = vld [vmem:[%s274 + $0x20] sm:$0xff]
      %v1162 = vld [vmem:[%s274 + $0x28] sm:$0xff]
      %v1163 = vld [vmem:[%s274 + $0x30] sm:$0xff]
      %v1164 = vld [vmem:[%s274 + $0x38] sm:$0xff]
      %v1165 = vld [vmem:[%s274 + $0x40] sm:$0xff]
      %v1166 = vld [vmem:[%s274 + $0x48] sm:$0xff]
      %v1167 = vld [vmem:[%s274 + $0x50] sm:$0xff]
      %v1168 = vld [vmem:[%s274 + $0x58] sm:$0xff]
      %v1169 = vld [vmem:[%s274 + $0x60] sm:$0xff]
      %v1170 = vld [vmem:[%s274 + $0x68] sm:$0xff]
      %v1171 = vld [vmem:[%s274 + $0x70] sm:$0xff]
      %v1172 = vld [vmem:[%s274 + $0x78] sm:$0xff]
      %1189 = vrot.lane.b32.xlu0 %v1157, 126
      %v1190 = vpop.permute.xlu0 %1189
      %1191 = vrot.lane.b32.xlu0 %v1158, 126
      %v1192 = vpop.permute.xlu0 %1191
      %1193 = vrot.lane.b32.xlu0 %v1159, 126
      %v1194 = vpop.permute.xlu0 %1193
      %1195 = vrot.lane.b32.xlu0 %v1160, 126
      %v1196 = vpop.permute.xlu0 %1195
      %1197 = vrot.lane.b32.xlu0 %v1161, 126
      %v1198 = vpop.permute.xlu0 %1197
      %1199 = vrot.lane.b32.xlu0 %v1162, 126
      %v1200 = vpop.permute.xlu0 %1199
      %1201 = vrot.lane.b32.xlu0 %v1163, 126
      %v1202 = vpop.permute.xlu0 %1201
      %1203 = vrot.lane.b32.xlu0 %v1164, 126
      %v1204 = vpop.permute.xlu0 %1203
      %1205 = vrot.lane.b32.xlu0 %v1165, 126
      %v1206 = vpop.permute.xlu0 %1205
      %1207 = vrot.lane.b32.xlu0 %v1166, 126
      %v1208 = vpop.permute.xlu0 %1207
      %1209 = vrot.lane.b32.xlu0 %v1167, 126
      %v1210 = vpop.permute.xlu0 %1209
      %1211 = vrot.lane.b32.xlu0 %v1168, 126
      %v1212 = vpop.permute.xlu0 %1211
      %1213 = vrot.lane.b32.xlu0 %v1169, 126
      %v1214 = vpop.permute.xlu0 %1213
      %1215 = vrot.lane.b32.xlu0 %v1170, 126
      %v1216 = vpop.permute.xlu0 %1215
      %1217 = vrot.lane.b32.xlu0 %v1171, 126
      %v1218 = vpop.permute.xlu0 %1217
      %1219 = vrot.lane.b32.xlu0 %v1172, 126
      %v1220 = vpop.permute.xlu0 %1219
      %v1221 = vsel %vm1116, %v1190, %v1192
      %v1222 = vsel %vm1116, %v1194, %v1196
      %v1223 = vsel %vm1116, %v1198, %v1200
      %v1224 = vsel %vm1116, %v1202, %v1204
      %v1225 = vsel %vm1116, %v1206, %v1208
      %v1226 = vsel %vm1116, %v1210, %v1212
      %v1227 = vsel %vm1116, %v1214, %v1216
      %v1228 = vsel %vm1116, %v1218, %v1220
      %1245 = vst [vmem:[%s1043] sm:$0xff] %v1221
      %1246 = vst.msk [vmem:[%s1043 + $0x8] sm:$0xff] %vm1116, %v1192
      %1247 = vst [vmem:[%s1043 + $0x10] sm:$0xff] %v1222
      %1248 = vst.msk [vmem:[%s1043 + $0x18] sm:$0xff] %vm1116, %v1196
      %1249 = vst [vmem:[%s1043 + $0x20] sm:$0xff] %v1223
      %1250 = vst.msk [vmem:[%s1043 + $0x28] sm:$0xff] %vm1116, %v1200
      %1251 = vst [vmem:[%s1043 + $0x30] sm:$0xff] %v1224
      %1252 = vst.msk [vmem:[%s1043 + $0x38] sm:$0xff] %vm1116, %v1204
      %1253 = vst [vmem:[%s1043 + $0x40] sm:$0xff] %v1225
      %1254 = vst.msk [vmem:[%s1043 + $0x48] sm:$0xff] %vm1116, %v1208
      %1255 = vst [vmem:[%s1043 + $0x50] sm:$0xff] %v1226
      %1256 = vst.msk [vmem:[%s1043 + $0x58] sm:$0xff] %vm1116, %v1212
      %1257 = vst [vmem:[%s1043 + $0x60] sm:$0xff] %v1227
      %1258 = vst.msk [vmem:[%s1043 + $0x68] sm:$0xff] %vm1116, %v1216
      %1259 = vst [vmem:[%s1043 + $0x70] sm:$0xff] %v1228
      %1260 = vst.msk [vmem:[%s1043 + $0x78] sm:$0xff] %vm1116, %v1220
      %v1261 = vld [vmem:[%s4] sm:$0xff]
      %v1262 = vld [vmem:[%s4 + $0x8] sm:$0xff]
      %v1263 = vld [vmem:[%s4 + $0x10] sm:$0xff]
      %v1264 = vld [vmem:[%s4 + $0x18] sm:$0xff]
      loop: start=0, step=1, limit=8
      $region41: #{time_variant_filter.2} parent=39 // loop_pre_header
        _
      $region42: #{time_variant_filter.2} parent=39 // loop_header
        %s1266 = sphi 0, %s1270
        %p1267 = scmp.ge.s32.totalorder %s1266, 8
      $region43: #{time_variant_filter.2} parent=39 // loop_header_branch
        %1269 = sbr.rel (%p1267) target = $region47
      $region44: #{time_variant_filter.2} parent=39 // loop_body
        %s1271 = smul.u32 %s1266, 16
        %s1272 = scalar_lea.vmem %s2, %s1271
        %v1273 = vld [vmem:[%s1272] sm:$0xff]
        %v1274 = vld [vmem:[%s1272 + $0x8] sm:$0xff]
        %s1275 = scalar_lea.vmem %s3, %s1271
        %v1276 = vld [vmem:[%s1275] sm:$0xff]
        %v1277 = vld [vmem:[%s1275 + $0x8] sm:$0xff]
        %v1278 = vld [vmem:[#allocation2] sm:$0xff]
        %v1279 = vld [vmem:[#allocation2 + $0x8] sm:$0xff]
        %v1280 = vld [vmem:[#allocation2 + $0x10] sm:$0xff]
        %v1281 = vld [vmem:[#allocation2 + $0x18] sm:$0xff]
        %v1282 = vld [vmem:[#allocation3] sm:$0xff]
        %v1283 = vld [vmem:[#allocation3 + $0x8] sm:$0xff]
        %v1284 = vld [vmem:[#allocation3 + $0x10] sm:$0xff]
        %v1285 = vld [vmem:[#allocation3 + $0x18] sm:$0xff]
        %1287 = vset.pattern.permute.xlu0 0
        %1288 = vperm.xlu0 %1287, %v1273
        %v1289 = vpop.permute.xlu0 %1288
        %1292 = vset.pattern.permute.xlu0 0
        %1293 = vperm.xlu0 %1292, %v1274
        %v1294 = vpop.permute.xlu0 %1293
        %v1296 = vmul.f32 %v1289, %v1278
        %v1297 = vmul.f32 %v1289, %v1279
        %v1298 = vmul.f32 %v1294, %v1280
        %v1299 = vmul.f32 %v1294, %v1281
        %v1300 = vadd.f32 %v1296, 0.0
        %v1301 = vadd.f32 %v1297, 0.0
        %v1302 = vadd.f32 %v1298, 0.0
        %v1303 = vadd.f32 %v1299, 0.0
        %1305 = vset.pattern.permute.xlu0 0
        %1306 = vperm.xlu0 %1305, %v1276
        %v1307 = vpop.permute.xlu0 %1306
        %1310 = vset.pattern.permute.xlu0 0
        %1311 = vperm.xlu0 %1310, %v1277
        %v1312 = vpop.permute.xlu0 %1311
        %v1314 = vmul.f32 %v1307, %v1282
        %v1315 = vmul.f32 %v1307, %v1283
        %v1316 = vmul.f32 %v1312, %v1284
        %v1317 = vmul.f32 %v1312, %v1285
        %v1318 = vsub.f32 %v1300, %v1314
        %v1319 = vsub.f32 %v1301, %v1315
        %v1320 = vsub.f32 %v1302, %v1316
        %v1321 = vsub.f32 %v1303, %v1317
        %v1322 = vmul.f32 %v1289, %v1282
        %v1323 = vmul.f32 %v1289, %v1283
        %v1324 = vmul.f32 %v1294, %v1284
        %v1325 = vmul.f32 %v1294, %v1285
        %v1326 = vadd.f32 %v1322, 0.0
        %v1327 = vadd.f32 %v1323, 0.0
        %v1328 = vadd.f32 %v1324, 0.0
        %v1329 = vadd.f32 %v1325, 0.0
        %v1330 = vmul.f32 %v1307, %v1278
        %v1331 = vmul.f32 %v1307, %v1279
        %v1332 = vmul.f32 %v1312, %v1280
        %v1333 = vmul.f32 %v1312, %v1281
        %v1334 = vadd.f32 %v1326, %v1330
        %v1335 = vadd.f32 %v1327, %v1331
        %v1336 = vadd.f32 %v1328, %v1332
        %v1337 = vadd.f32 %v1329, %v1333
        %s1338 = scalar_lea.vmem [#allocation2], 32
        %v1339 = vld [vmem:[%s1338] sm:$0xff]
        %v1340 = vld [vmem:[%s1338 + $0x8] sm:$0xff]
        %v1341 = vld [vmem:[%s1338 + $0x10] sm:$0xff]
        %v1342 = vld [vmem:[%s1338 + $0x18] sm:$0xff]
        %s1343 = scalar_lea.vmem [#allocation3], 32
        %v1344 = vld [vmem:[%s1343] sm:$0xff]
        %v1345 = vld [vmem:[%s1343 + $0x8] sm:$0xff]
        %v1346 = vld [vmem:[%s1343 + $0x10] sm:$0xff]
        %v1347 = vld [vmem:[%s1343 + $0x18] sm:$0xff]
        %1348 = vset.pattern.permute.xlu0 1
        %1349 = vperm.xlu0 %1348, %v1273
        %v1350 = vpop.permute.xlu0 %1349
        %1352 = vset.pattern.permute.xlu0 1
        %1353 = vperm.xlu0 %1352, %v1274
        %v1354 = vpop.permute.xlu0 %1353
        %v1356 = vmul.f32 %v1350, %v1339
        %v1357 = vmul.f32 %v1350, %v1340
        %v1358 = vmul.f32 %v1354, %v1341
        %v1359 = vmul.f32 %v1354, %v1342
        %v1360 = vadd.f32 %v1318, %v1356
        %v1361 = vadd.f32 %v1319, %v1357
        %v1362 = vadd.f32 %v1320, %v1358
        %v1363 = vadd.f32 %v1321, %v1359
        %1364 = vset.pattern.permute.xlu0 1
        %1365 = vperm.xlu0 %1364, %v1276
        %v1366 = vpop.permute.xlu0 %1365
        %1368 = vset.pattern.permute.xlu0 1
        %1369 = vperm.xlu0 %1368, %v1277
        %v1370 = vpop.permute.xlu0 %1369
        %v1372 = vmul.f32 %v1366, %v1344
        %v1373 = vmul.f32 %v1366, %v1345
        %v1374 = vmul.f32 %v1370, %v1346
        %v1375 = vmul.f32 %v1370, %v1347
        %v1376 = vsub.f32 %v1360, %v1372
        %v1377 = vsub.f32 %v1361, %v1373
        %v1378 = vsub.f32 %v1362, %v1374
        %v1379 = vsub.f32 %v1363, %v1375
        %v1380 = vmul.f32 %v1350, %v1344
        %v1381 = vmul.f32 %v1350, %v1345
        %v1382 = vmul.f32 %v1354, %v1346
        %v1383 = vmul.f32 %v1354, %v1347
        %v1384 = vadd.f32 %v1334, %v1380
        %v1385 = vadd.f32 %v1335, %v1381
        %v1386 = vadd.f32 %v1336, %v1382
        %v1387 = vadd.f32 %v1337, %v1383
        %v1388 = vmul.f32 %v1366, %v1339
        %v1389 = vmul.f32 %v1366, %v1340
        %v1390 = vmul.f32 %v1370, %v1341
        %v1391 = vmul.f32 %v1370, %v1342
        %v1392 = vadd.f32 %v1384, %v1388
        %v1393 = vadd.f32 %v1385, %v1389
        %v1394 = vadd.f32 %v1386, %v1390
        %v1395 = vadd.f32 %v1387, %v1391
        %s1396 = scalar_lea.vmem [#allocation2], 64
        %v1397 = vld [vmem:[%s1396] sm:$0xff]
        %v1398 = vld [vmem:[%s1396 + $0x8] sm:$0xff]
        %v1399 = vld [vmem:[%s1396 + $0x10] sm:$0xff]
        %v1400 = vld [vmem:[%s1396 + $0x18] sm:$0xff]
        %s1401 = scalar_lea.vmem [#allocation3], 64
        %v1402 = vld [vmem:[%s1401] sm:$0xff]
        %v1403 = vld [vmem:[%s1401 + $0x8] sm:$0xff]
        %v1404 = vld [vmem:[%s1401 + $0x10] sm:$0xff]
        %v1405 = vld [vmem:[%s1401 + $0x18] sm:$0xff]
        %1406 = vset.pattern.permute.xlu0 2
        %1407 = vperm.xlu0 %1406, %v1273
        %v1408 = vpop.permute.xlu0 %1407
        %1410 = vset.pattern.permute.xlu0 2
        %1411 = vperm.xlu0 %1410, %v1274
        %v1412 = vpop.permute.xlu0 %1411
        %v1414 = vmul.f32 %v1408, %v1397
        %v1415 = vmul.f32 %v1408, %v1398
        %v1416 = vmul.f32 %v1412, %v1399
        %v1417 = vmul.f32 %v1412, %v1400
        %v1418 = vadd.f32 %v1376, %v1414
        %v1419 = vadd.f32 %v1377, %v1415
        %v1420 = vadd.f32 %v1378, %v1416
        %v1421 = vadd.f32 %v1379, %v1417
        %1422 = vset.pattern.permute.xlu0 2
        %1423 = vperm.xlu0 %1422, %v1276
        %v1424 = vpop.permute.xlu0 %1423
        %1426 = vset.pattern.permute.xlu0 2
        %1427 = vperm.xlu0 %1426, %v1277
        %v1428 = vpop.permute.xlu0 %1427
        %v1430 = vmul.f32 %v1424, %v1402
        %v1431 = vmul.f32 %v1424, %v1403
        %v1432 = vmul.f32 %v1428, %v1404
        %v1433 = vmul.f32 %v1428, %v1405
        %v1434 = vsub.f32 %v1418, %v1430
        %v1435 = vsub.f32 %v1419, %v1431
        %v1436 = vsub.f32 %v1420, %v1432
        %v1437 = vsub.f32 %v1421, %v1433
        %v1438 = vmul.f32 %v1408, %v1402
        %v1439 = vmul.f32 %v1408, %v1403
        %v1440 = vmul.f32 %v1412, %v1404
        %v1441 = vmul.f32 %v1412, %v1405
        %v1442 = vadd.f32 %v1392, %v1438
        %v1443 = vadd.f32 %v1393, %v1439
        %v1444 = vadd.f32 %v1394, %v1440
        %v1445 = vadd.f32 %v1395, %v1441
        %v1446 = vmul.f32 %v1424, %v1397
        %v1447 = vmul.f32 %v1424, %v1398
        %v1448 = vmul.f32 %v1428, %v1399
        %v1449 = vmul.f32 %v1428, %v1400
        %v1450 = vadd.f32 %v1442, %v1446
        %v1451 = vadd.f32 %v1443, %v1447
        %v1452 = vadd.f32 %v1444, %v1448
        %v1453 = vadd.f32 %v1445, %v1449
        %s1454 = scalar_lea.vmem [#allocation2], 96
        %v1455 = vld [vmem:[%s1454] sm:$0xff]
        %v1456 = vld [vmem:[%s1454 + $0x8] sm:$0xff]
        %v1457 = vld [vmem:[%s1454 + $0x10] sm:$0xff]
        %v1458 = vld [vmem:[%s1454 + $0x18] sm:$0xff]
        %s1459 = scalar_lea.vmem [#allocation3], 96
        %v1460 = vld [vmem:[%s1459] sm:$0xff]
        %v1461 = vld [vmem:[%s1459 + $0x8] sm:$0xff]
        %v1462 = vld [vmem:[%s1459 + $0x10] sm:$0xff]
        %v1463 = vld [vmem:[%s1459 + $0x18] sm:$0xff]
        %1464 = vset.pattern.permute.xlu0 3
        %1465 = vperm.xlu0 %1464, %v1273
        %v1466 = vpop.permute.xlu0 %1465
        %1468 = vset.pattern.permute.xlu0 3
        %1469 = vperm.xlu0 %1468, %v1274
        %v1470 = vpop.permute.xlu0 %1469
        %v1472 = vmul.f32 %v1466, %v1455
        %v1473 = vmul.f32 %v1466, %v1456
        %v1474 = vmul.f32 %v1470, %v1457
        %v1475 = vmul.f32 %v1470, %v1458
        %v1476 = vadd.f32 %v1434, %v1472
        %v1477 = vadd.f32 %v1435, %v1473
        %v1478 = vadd.f32 %v1436, %v1474
        %v1479 = vadd.f32 %v1437, %v1475
        %1480 = vset.pattern.permute.xlu0 3
        %1481 = vperm.xlu0 %1480, %v1276
        %v1482 = vpop.permute.xlu0 %1481
        %1484 = vset.pattern.permute.xlu0 3
        %1485 = vperm.xlu0 %1484, %v1277
        %v1486 = vpop.permute.xlu0 %1485
        %v1488 = vmul.f32 %v1482, %v1460
        %v1489 = vmul.f32 %v1482, %v1461
        %v1490 = vmul.f32 %v1486, %v1462
        %v1491 = vmul.f32 %v1486, %v1463
        %v1492 = vsub.f32 %v1476, %v1488
        %v1493 = vsub.f32 %v1477, %v1489
        %v1494 = vsub.f32 %v1478, %v1490
        %v1495 = vsub.f32 %v1479, %v1491
        %v1496 = vmul.f32 %v1466, %v1460
        %v1497 = vmul.f32 %v1466, %v1461
        %v1498 = vmul.f32 %v1470, %v1462
        %v1499 = vmul.f32 %v1470, %v1463
        %v1500 = vadd.f32 %v1450, %v1496
        %v1501 = vadd.f32 %v1451, %v1497
        %v1502 = vadd.f32 %v1452, %v1498
        %v1503 = vadd.f32 %v1453, %v1499
        %v1504 = vmul.f32 %v1482, %v1455
        %v1505 = vmul.f32 %v1482, %v1456
        %v1506 = vmul.f32 %v1486, %v1457
        %v1507 = vmul.f32 %v1486, %v1458
        %v1508 = vadd.f32 %v1500, %v1504
        %v1509 = vadd.f32 %v1501, %v1505
        %v1510 = vadd.f32 %v1502, %v1506
        %v1511 = vadd.f32 %v1503, %v1507
        %v1512 = vld [vmem:[%s511] sm:$0xff]
        %v1513 = vld [vmem:[%s511 + $0x8] sm:$0xff]
        %v1514 = vld [vmem:[%s511 + $0x10] sm:$0xff]
        %v1515 = vld [vmem:[%s511 + $0x18] sm:$0xff]
        %v1516 = vld [vmem:[%s521] sm:$0xff]
        %v1517 = vld [vmem:[%s521 + $0x8] sm:$0xff]
        %v1518 = vld [vmem:[%s521 + $0x10] sm:$0xff]
        %v1519 = vld [vmem:[%s521 + $0x18] sm:$0xff]
        %1520 = vset.pattern.permute.xlu0 4
        %1521 = vperm.xlu0 %1520, %v1273
        %v1522 = vpop.permute.xlu0 %1521
        %1524 = vset.pattern.permute.xlu0 4
        %1525 = vperm.xlu0 %1524, %v1274
        %v1526 = vpop.permute.xlu0 %1525
        %v1528 = vmul.f32 %v1522, %v1512
        %v1529 = vmul.f32 %v1522, %v1513
        %v1530 = vmul.f32 %v1526, %v1514
        %v1531 = vmul.f32 %v1526, %v1515
        %v1532 = vadd.f32 %v1492, %v1528
        %v1533 = vadd.f32 %v1493, %v1529
        %v1534 = vadd.f32 %v1494, %v1530
        %v1535 = vadd.f32 %v1495, %v1531
        %1536 = vset.pattern.permute.xlu0 4
        %1537 = vperm.xlu0 %1536, %v1276
        %v1538 = vpop.permute.xlu0 %1537
        %1540 = vset.pattern.permute.xlu0 4
        %1541 = vperm.xlu0 %1540, %v1277
        %v1542 = vpop.permute.xlu0 %1541
        %v1544 = vmul.f32 %v1538, %v1516
        %v1545 = vmul.f32 %v1538, %v1517
        %v1546 = vmul.f32 %v1542, %v1518
        %v1547 = vmul.f32 %v1542, %v1519
        %v1548 = vsub.f32 %v1532, %v1544
        %v1549 = vsub.f32 %v1533, %v1545
        %v1550 = vsub.f32 %v1534, %v1546
        %v1551 = vsub.f32 %v1535, %v1547
        %v1552 = vmul.f32 %v1522, %v1516
        %v1553 = vmul.f32 %v1522, %v1517
        %v1554 = vmul.f32 %v1526, %v1518
        %v1555 = vmul.f32 %v1526, %v1519
        %v1556 = vadd.f32 %v1508, %v1552
        %v1557 = vadd.f32 %v1509, %v1553
        %v1558 = vadd.f32 %v1510, %v1554
        %v1559 = vadd.f32 %v1511, %v1555
        %v1560 = vmul.f32 %v1538, %v1512
        %v1561 = vmul.f32 %v1538, %v1513
        %v1562 = vmul.f32 %v1542, %v1514
        %v1563 = vmul.f32 %v1542, %v1515
        %v1564 = vadd.f32 %v1556, %v1560
        %v1565 = vadd.f32 %v1557, %v1561
        %v1566 = vadd.f32 %v1558, %v1562
        %v1567 = vadd.f32 %v1559, %v1563
        %s1568 = scalar_lea.vmem [#allocation2], 160
        %v1569 = vld [vmem:[%s1568] sm:$0xff]
        %v1570 = vld [vmem:[%s1568 + $0x8] sm:$0xff]
        %v1571 = vld [vmem:[%s1568 + $0x10] sm:$0xff]
        %v1572 = vld [vmem:[%s1568 + $0x18] sm:$0xff]
        %s1573 = scalar_lea.vmem [#allocation3], 160
        %v1574 = vld [vmem:[%s1573] sm:$0xff]
        %v1575 = vld [vmem:[%s1573 + $0x8] sm:$0xff]
        %v1576 = vld [vmem:[%s1573 + $0x10] sm:$0xff]
        %v1577 = vld [vmem:[%s1573 + $0x18] sm:$0xff]
        %1578 = vset.pattern.permute.xlu0 5
        %1579 = vperm.xlu0 %1578, %v1273
        %v1580 = vpop.permute.xlu0 %1579
        %1582 = vset.pattern.permute.xlu0 5
        %1583 = vperm.xlu0 %1582, %v1274
        %v1584 = vpop.permute.xlu0 %1583
        %v1586 = vmul.f32 %v1580, %v1569
        %v1587 = vmul.f32 %v1580, %v1570
        %v1588 = vmul.f32 %v1584, %v1571
        %v1589 = vmul.f32 %v1584, %v1572
        %v1590 = vadd.f32 %v1548, %v1586
        %v1591 = vadd.f32 %v1549, %v1587
        %v1592 = vadd.f32 %v1550, %v1588
        %v1593 = vadd.f32 %v1551, %v1589
        %1594 = vset.pattern.permute.xlu0 5
        %1595 = vperm.xlu0 %1594, %v1276
        %v1596 = vpop.permute.xlu0 %1595
        %1598 = vset.pattern.permute.xlu0 5
        %1599 = vperm.xlu0 %1598, %v1277
        %v1600 = vpop.permute.xlu0 %1599
        %v1602 = vmul.f32 %v1596, %v1574
        %v1603 = vmul.f32 %v1596, %v1575
        %v1604 = vmul.f32 %v1600, %v1576
        %v1605 = vmul.f32 %v1600, %v1577
        %v1606 = vsub.f32 %v1590, %v1602
        %v1607 = vsub.f32 %v1591, %v1603
        %v1608 = vsub.f32 %v1592, %v1604
        %v1609 = vsub.f32 %v1593, %v1605
        %v1610 = vmul.f32 %v1580, %v1574
        %v1611 = vmul.f32 %v1580, %v1575
        %v1612 = vmul.f32 %v1584, %v1576
        %v1613 = vmul.f32 %v1584, %v1577
        %v1614 = vadd.f32 %v1564, %v1610
        %v1615 = vadd.f32 %v1565, %v1611
        %v1616 = vadd.f32 %v1566, %v1612
        %v1617 = vadd.f32 %v1567, %v1613
        %v1618 = vmul.f32 %v1596, %v1569
        %v1619 = vmul.f32 %v1596, %v1570
        %v1620 = vmul.f32 %v1600, %v1571
        %v1621 = vmul.f32 %v1600, %v1572
        %v1622 = vadd.f32 %v1614, %v1618
        %v1623 = vadd.f32 %v1615, %v1619
        %v1624 = vadd.f32 %v1616, %v1620
        %v1625 = vadd.f32 %v1617, %v1621
        %s1626 = scalar_lea.vmem [#allocation2], 192
        %v1627 = vld [vmem:[%s1626] sm:$0xff]
        %v1628 = vld [vmem:[%s1626 + $0x8] sm:$0xff]
        %v1629 = vld [vmem:[%s1626 + $0x10] sm:$0xff]
        %v1630 = vld [vmem:[%s1626 + $0x18] sm:$0xff]
        %s1631 = scalar_lea.vmem [#allocation3], 192
        %v1632 = vld [vmem:[%s1631] sm:$0xff]
        %v1633 = vld [vmem:[%s1631 + $0x8] sm:$0xff]
        %v1634 = vld [vmem:[%s1631 + $0x10] sm:$0xff]
        %v1635 = vld [vmem:[%s1631 + $0x18] sm:$0xff]
        %1636 = vset.pattern.permute.xlu0 6
        %1637 = vperm.xlu0 %1636, %v1273
        %v1638 = vpop.permute.xlu0 %1637
        %1640 = vset.pattern.permute.xlu0 6
        %1641 = vperm.xlu0 %1640, %v1274
        %v1642 = vpop.permute.xlu0 %1641
        %v1644 = vmul.f32 %v1638, %v1627
        %v1645 = vmul.f32 %v1638, %v1628
        %v1646 = vmul.f32 %v1642, %v1629
        %v1647 = vmul.f32 %v1642, %v1630
        %v1648 = vadd.f32 %v1606, %v1644
        %v1649 = vadd.f32 %v1607, %v1645
        %v1650 = vadd.f32 %v1608, %v1646
        %v1651 = vadd.f32 %v1609, %v1647
        %1652 = vset.pattern.permute.xlu0 6
        %1653 = vperm.xlu0 %1652, %v1276
        %v1654 = vpop.permute.xlu0 %1653
        %1656 = vset.pattern.permute.xlu0 6
        %1657 = vperm.xlu0 %1656, %v1277
        %v1658 = vpop.permute.xlu0 %1657
        %v1660 = vmul.f32 %v1654, %v1632
        %v1661 = vmul.f32 %v1654, %v1633
        %v1662 = vmul.f32 %v1658, %v1634
        %v1663 = vmul.f32 %v1658, %v1635
        %v1664 = vsub.f32 %v1648, %v1660
        %v1665 = vsub.f32 %v1649, %v1661
        %v1666 = vsub.f32 %v1650, %v1662
        %v1667 = vsub.f32 %v1651, %v1663
        %v1668 = vmul.f32 %v1638, %v1632
        %v1669 = vmul.f32 %v1638, %v1633
        %v1670 = vmul.f32 %v1642, %v1634
        %v1671 = vmul.f32 %v1642, %v1635
        %v1672 = vadd.f32 %v1622, %v1668
        %v1673 = vadd.f32 %v1623, %v1669
        %v1674 = vadd.f32 %v1624, %v1670
        %v1675 = vadd.f32 %v1625, %v1671
        %v1676 = vmul.f32 %v1654, %v1627
        %v1677 = vmul.f32 %v1654, %v1628
        %v1678 = vmul.f32 %v1658, %v1629
        %v1679 = vmul.f32 %v1658, %v1630
        %v1680 = vadd.f32 %v1672, %v1676
        %v1681 = vadd.f32 %v1673, %v1677
        %v1682 = vadd.f32 %v1674, %v1678
        %v1683 = vadd.f32 %v1675, %v1679
        %s1684 = scalar_lea.vmem [#allocation2], 224
        %v1685 = vld [vmem:[%s1684] sm:$0xff]
        %v1686 = vld [vmem:[%s1684 + $0x8] sm:$0xff]
        %v1687 = vld [vmem:[%s1684 + $0x10] sm:$0xff]
        %v1688 = vld [vmem:[%s1684 + $0x18] sm:$0xff]
        %s1689 = scalar_lea.vmem [#allocation3], 224
        %v1690 = vld [vmem:[%s1689] sm:$0xff]
        %v1691 = vld [vmem:[%s1689 + $0x8] sm:$0xff]
        %v1692 = vld [vmem:[%s1689 + $0x10] sm:$0xff]
        %v1693 = vld [vmem:[%s1689 + $0x18] sm:$0xff]
        %1694 = vset.pattern.permute.xlu0 7
        %1695 = vperm.xlu0 %1694, %v1273
        %v1696 = vpop.permute.xlu0 %1695
        %1698 = vset.pattern.permute.xlu0 7
        %1699 = vperm.xlu0 %1698, %v1274
        %v1700 = vpop.permute.xlu0 %1699
        %v1702 = vmul.f32 %v1696, %v1685
        %v1703 = vmul.f32 %v1696, %v1686
        %v1704 = vmul.f32 %v1700, %v1687
        %v1705 = vmul.f32 %v1700, %v1688
        %v1706 = vadd.f32 %v1664, %v1702
        %v1707 = vadd.f32 %v1665, %v1703
        %v1708 = vadd.f32 %v1666, %v1704
        %v1709 = vadd.f32 %v1667, %v1705
        %1710 = vset.pattern.permute.xlu0 7
        %1711 = vperm.xlu0 %1710, %v1276
        %v1712 = vpop.permute.xlu0 %1711
        %1714 = vset.pattern.permute.xlu0 7
        %1715 = vperm.xlu0 %1714, %v1277
        %v1716 = vpop.permute.xlu0 %1715
        %v1718 = vmul.f32 %v1712, %v1690
        %v1719 = vmul.f32 %v1712, %v1691
        %v1720 = vmul.f32 %v1716, %v1692
        %v1721 = vmul.f32 %v1716, %v1693
        %v1722 = vsub.f32 %v1706, %v1718
        %v1723 = vsub.f32 %v1707, %v1719
        %v1724 = vsub.f32 %v1708, %v1720
        %v1725 = vsub.f32 %v1709, %v1721
        %v1726 = vmul.f32 %v1696, %v1690
        %v1727 = vmul.f32 %v1696, %v1691
        %v1728 = vmul.f32 %v1700, %v1692
        %v1729 = vmul.f32 %v1700, %v1693
        %v1730 = vadd.f32 %v1680, %v1726
        %v1731 = vadd.f32 %v1681, %v1727
        %v1732 = vadd.f32 %v1682, %v1728
        %v1733 = vadd.f32 %v1683, %v1729
        %v1734 = vmul.f32 %v1712, %v1685
        %v1735 = vmul.f32 %v1712, %v1686
        %v1736 = vmul.f32 %v1716, %v1687
        %v1737 = vmul.f32 %v1716, %v1688
        %v1738 = vadd.f32 %v1730, %v1734
        %v1739 = vadd.f32 %v1731, %v1735
        %v1740 = vadd.f32 %v1732, %v1736
        %v1741 = vadd.f32 %v1733, %v1737
        %v1742 = vld [vmem:[%s755] sm:$0xff]
        %v1743 = vld [vmem:[%s755 + $0x8] sm:$0xff]
        %v1744 = vld [vmem:[%s755 + $0x10] sm:$0xff]
        %v1745 = vld [vmem:[%s755 + $0x18] sm:$0xff]
        %v1746 = vld [vmem:[%s788] sm:$0xff]
        %v1747 = vld [vmem:[%s788 + $0x8] sm:$0xff]
        %v1748 = vld [vmem:[%s788 + $0x10] sm:$0xff]
        %v1749 = vld [vmem:[%s788 + $0x18] sm:$0xff]
        %1750 = vset.pattern.permute.xlu0 8
        %1751 = vperm.xlu0 %1750, %v1273
        %v1752 = vpop.permute.xlu0 %1751
        %1754 = vset.pattern.permute.xlu0 8
        %1755 = vperm.xlu0 %1754, %v1274
        %v1756 = vpop.permute.xlu0 %1755
        %v1758 = vmul.f32 %v1752, %v1742
        %v1759 = vmul.f32 %v1752, %v1743
        %v1760 = vmul.f32 %v1756, %v1744
        %v1761 = vmul.f32 %v1756, %v1745
        %v1762 = vadd.f32 %v1722, %v1758
        %v1763 = vadd.f32 %v1723, %v1759
        %v1764 = vadd.f32 %v1724, %v1760
        %v1765 = vadd.f32 %v1725, %v1761
        %1766 = vset.pattern.permute.xlu0 8
        %1767 = vperm.xlu0 %1766, %v1276
        %v1768 = vpop.permute.xlu0 %1767
        %1770 = vset.pattern.permute.xlu0 8
        %1771 = vperm.xlu0 %1770, %v1277
        %v1772 = vpop.permute.xlu0 %1771
        %v1774 = vmul.f32 %v1768, %v1746
        %v1775 = vmul.f32 %v1768, %v1747
        %v1776 = vmul.f32 %v1772, %v1748
        %v1777 = vmul.f32 %v1772, %v1749
        %v1778 = vsub.f32 %v1762, %v1774
        %v1779 = vsub.f32 %v1763, %v1775
        %v1780 = vsub.f32 %v1764, %v1776
        %v1781 = vsub.f32 %v1765, %v1777
        %v1782 = vmul.f32 %v1752, %v1746
        %v1783 = vmul.f32 %v1752, %v1747
        %v1784 = vmul.f32 %v1756, %v1748
        %v1785 = vmul.f32 %v1756, %v1749
        %v1786 = vadd.f32 %v1738, %v1782
        %v1787 = vadd.f32 %v1739, %v1783
        %v1788 = vadd.f32 %v1740, %v1784
        %v1789 = vadd.f32 %v1741, %v1785
        %v1790 = vmul.f32 %v1768, %v1742
        %v1791 = vmul.f32 %v1768, %v1743
        %v1792 = vmul.f32 %v1772, %v1744
        %v1793 = vmul.f32 %v1772, %v1745
        %v1794 = vadd.f32 %v1786, %v1790
        %v1795 = vadd.f32 %v1787, %v1791
        %v1796 = vadd.f32 %v1788, %v1792
        %v1797 = vadd.f32 %v1789, %v1793
        %s1798 = scalar_lea.vmem [#allocation2], 288
        %v1799 = vld [vmem:[%s1798] sm:$0xff]
        %v1800 = vld [vmem:[%s1798 + $0x8] sm:$0xff]
        %v1801 = vld [vmem:[%s1798 + $0x10] sm:$0xff]
        %v1802 = vld [vmem:[%s1798 + $0x18] sm:$0xff]
        %s1803 = scalar_lea.vmem [#allocation3], 288
        %v1804 = vld [vmem:[%s1803] sm:$0xff]
        %v1805 = vld [vmem:[%s1803 + $0x8] sm:$0xff]
        %v1806 = vld [vmem:[%s1803 + $0x10] sm:$0xff]
        %v1807 = vld [vmem:[%s1803 + $0x18] sm:$0xff]
        %1808 = vset.pattern.permute.xlu0 9
        %1809 = vperm.xlu0 %1808, %v1273
        %v1810 = vpop.permute.xlu0 %1809
        %1812 = vset.pattern.permute.xlu0 9
        %1813 = vperm.xlu0 %1812, %v1274
        %v1814 = vpop.permute.xlu0 %1813
        %v1816 = vmul.f32 %v1810, %v1799
        %v1817 = vmul.f32 %v1810, %v1800
        %v1818 = vmul.f32 %v1814, %v1801
        %v1819 = vmul.f32 %v1814, %v1802
        %v1820 = vadd.f32 %v1778, %v1816
        %v1821 = vadd.f32 %v1779, %v1817
        %v1822 = vadd.f32 %v1780, %v1818
        %v1823 = vadd.f32 %v1781, %v1819
        %1824 = vset.pattern.permute.xlu0 9
        %1825 = vperm.xlu0 %1824, %v1276
        %v1826 = vpop.permute.xlu0 %1825
        %1828 = vset.pattern.permute.xlu0 9
        %1829 = vperm.xlu0 %1828, %v1277
        %v1830 = vpop.permute.xlu0 %1829
        %v1832 = vmul.f32 %v1826, %v1804
        %v1833 = vmul.f32 %v1826, %v1805
        %v1834 = vmul.f32 %v1830, %v1806
        %v1835 = vmul.f32 %v1830, %v1807
        %v1836 = vsub.f32 %v1820, %v1832
        %v1837 = vsub.f32 %v1821, %v1833
        %v1838 = vsub.f32 %v1822, %v1834
        %v1839 = vsub.f32 %v1823, %v1835
        %v1840 = vmul.f32 %v1810, %v1804
        %v1841 = vmul.f32 %v1810, %v1805
        %v1842 = vmul.f32 %v1814, %v1806
        %v1843 = vmul.f32 %v1814, %v1807
        %v1844 = vadd.f32 %v1794, %v1840
        %v1845 = vadd.f32 %v1795, %v1841
        %v1846 = vadd.f32 %v1796, %v1842
        %v1847 = vadd.f32 %v1797, %v1843
        %v1848 = vmul.f32 %v1826, %v1799
        %v1849 = vmul.f32 %v1826, %v1800
        %v1850 = vmul.f32 %v1830, %v1801
        %v1851 = vmul.f32 %v1830, %v1802
        %v1852 = vadd.f32 %v1844, %v1848
        %v1853 = vadd.f32 %v1845, %v1849
        %v1854 = vadd.f32 %v1846, %v1850
        %v1855 = vadd.f32 %v1847, %v1851
        %s1856 = scalar_lea.vmem [#allocation2], 320
        %v1857 = vld [vmem:[%s1856] sm:$0xff]
        %v1858 = vld [vmem:[%s1856 + $0x8] sm:$0xff]
        %v1859 = vld [vmem:[%s1856 + $0x10] sm:$0xff]
        %v1860 = vld [vmem:[%s1856 + $0x18] sm:$0xff]
        %s1861 = scalar_lea.vmem [#allocation3], 320
        %v1862 = vld [vmem:[%s1861] sm:$0xff]
        %v1863 = vld [vmem:[%s1861 + $0x8] sm:$0xff]
        %v1864 = vld [vmem:[%s1861 + $0x10] sm:$0xff]
        %v1865 = vld [vmem:[%s1861 + $0x18] sm:$0xff]
        %1866 = vset.pattern.permute.xlu0 10
        %1867 = vperm.xlu0 %1866, %v1273
        %v1868 = vpop.permute.xlu0 %1867
        %1870 = vset.pattern.permute.xlu0 10
        %1871 = vperm.xlu0 %1870, %v1274
        %v1872 = vpop.permute.xlu0 %1871
        %v1874 = vmul.f32 %v1868, %v1857
        %v1875 = vmul.f32 %v1868, %v1858
        %v1876 = vmul.f32 %v1872, %v1859
        %v1877 = vmul.f32 %v1872, %v1860
        %v1878 = vadd.f32 %v1836, %v1874
        %v1879 = vadd.f32 %v1837, %v1875
        %v1880 = vadd.f32 %v1838, %v1876
        %v1881 = vadd.f32 %v1839, %v1877
        %1882 = vset.pattern.permute.xlu0 10
        %1883 = vperm.xlu0 %1882, %v1276
        %v1884 = vpop.permute.xlu0 %1883
        %1886 = vset.pattern.permute.xlu0 10
        %1887 = vperm.xlu0 %1886, %v1277
        %v1888 = vpop.permute.xlu0 %1887
        %v1890 = vmul.f32 %v1884, %v1862
        %v1891 = vmul.f32 %v1884, %v1863
        %v1892 = vmul.f32 %v1888, %v1864
        %v1893 = vmul.f32 %v1888, %v1865
        %v1894 = vsub.f32 %v1878, %v1890
        %v1895 = vsub.f32 %v1879, %v1891
        %v1896 = vsub.f32 %v1880, %v1892
        %v1897 = vsub.f32 %v1881, %v1893
        %v1898 = vmul.f32 %v1868, %v1862
        %v1899 = vmul.f32 %v1868, %v1863
        %v1900 = vmul.f32 %v1872, %v1864
        %v1901 = vmul.f32 %v1872, %v1865
        %v1902 = vadd.f32 %v1852, %v1898
        %v1903 = vadd.f32 %v1853, %v1899
        %v1904 = vadd.f32 %v1854, %v1900
        %v1905 = vadd.f32 %v1855, %v1901
        %v1906 = vmul.f32 %v1884, %v1857
        %v1907 = vmul.f32 %v1884, %v1858
        %v1908 = vmul.f32 %v1888, %v1859
        %v1909 = vmul.f32 %v1888, %v1860
        %v1910 = vadd.f32 %v1902, %v1906
        %v1911 = vadd.f32 %v1903, %v1907
        %v1912 = vadd.f32 %v1904, %v1908
        %v1913 = vadd.f32 %v1905, %v1909
        %s1914 = scalar_lea.vmem [#allocation2], 352
        %v1915 = vld [vmem:[%s1914] sm:$0xff]
        %v1916 = vld [vmem:[%s1914 + $0x8] sm:$0xff]
        %v1917 = vld [vmem:[%s1914 + $0x10] sm:$0xff]
        %v1918 = vld [vmem:[%s1914 + $0x18] sm:$0xff]
        %s1919 = scalar_lea.vmem [#allocation3], 352
        %v1920 = vld [vmem:[%s1919] sm:$0xff]
        %v1921 = vld [vmem:[%s1919 + $0x8] sm:$0xff]
        %v1922 = vld [vmem:[%s1919 + $0x10] sm:$0xff]
        %v1923 = vld [vmem:[%s1919 + $0x18] sm:$0xff]
        %1924 = vset.pattern.permute.xlu0 11
        %1925 = vperm.xlu0 %1924, %v1273
        %v1926 = vpop.permute.xlu0 %1925
        %1928 = vset.pattern.permute.xlu0 11
        %1929 = vperm.xlu0 %1928, %v1274
        %v1930 = vpop.permute.xlu0 %1929
        %v1932 = vmul.f32 %v1926, %v1915
        %v1933 = vmul.f32 %v1926, %v1916
        %v1934 = vmul.f32 %v1930, %v1917
        %v1935 = vmul.f32 %v1930, %v1918
        %v1936 = vadd.f32 %v1894, %v1932
        %v1937 = vadd.f32 %v1895, %v1933
        %v1938 = vadd.f32 %v1896, %v1934
        %v1939 = vadd.f32 %v1897, %v1935
        %1940 = vset.pattern.permute.xlu0 11
        %1941 = vperm.xlu0 %1940, %v1276
        %v1942 = vpop.permute.xlu0 %1941
        %1944 = vset.pattern.permute.xlu0 11
        %1945 = vperm.xlu0 %1944, %v1277
        %v1946 = vpop.permute.xlu0 %1945
        %v1948 = vmul.f32 %v1942, %v1920
        %v1949 = vmul.f32 %v1942, %v1921
        %v1950 = vmul.f32 %v1946, %v1922
        %v1951 = vmul.f32 %v1946, %v1923
        %v1952 = vsub.f32 %v1936, %v1948
        %v1953 = vsub.f32 %v1937, %v1949
        %v1954 = vsub.f32 %v1938, %v1950
        %v1955 = vsub.f32 %v1939, %v1951
        %v1956 = vmul.f32 %v1926, %v1920
        %v1957 = vmul.f32 %v1926, %v1921
        %v1958 = vmul.f32 %v1930, %v1922
        %v1959 = vmul.f32 %v1930, %v1923
        %v1960 = vadd.f32 %v1910, %v1956
        %v1961 = vadd.f32 %v1911, %v1957
        %v1962 = vadd.f32 %v1912, %v1958
        %v1963 = vadd.f32 %v1913, %v1959
        %v1964 = vmul.f32 %v1942, %v1915
        %v1965 = vmul.f32 %v1942, %v1916
        %v1966 = vmul.f32 %v1946, %v1917
        %v1967 = vmul.f32 %v1946, %v1918
        %v1968 = vadd.f32 %v1960, %v1964
        %v1969 = vadd.f32 %v1961, %v1965
        %v1970 = vadd.f32 %v1962, %v1966
        %v1971 = vadd.f32 %v1963, %v1967
        %v1972 = vld [vmem:[%s805] sm:$0xff]
        %v1973 = vld [vmem:[%s805 + $0x8] sm:$0xff]
        %v1974 = vld [vmem:[%s805 + $0x10] sm:$0xff]
        %v1975 = vld [vmem:[%s805 + $0x18] sm:$0xff]
        %v1976 = vld [vmem:[%s815] sm:$0xff]
        %v1977 = vld [vmem:[%s815 + $0x8] sm:$0xff]
        %v1978 = vld [vmem:[%s815 + $0x10] sm:$0xff]
        %v1979 = vld [vmem:[%s815 + $0x18] sm:$0xff]
        %1980 = vset.pattern.permute.xlu0 12
        %1981 = vperm.xlu0 %1980, %v1273
        %v1982 = vpop.permute.xlu0 %1981
        %1984 = vset.pattern.permute.xlu0 12
        %1985 = vperm.xlu0 %1984, %v1274
        %v1986 = vpop.permute.xlu0 %1985
        %v1988 = vmul.f32 %v1982, %v1972
        %v1989 = vmul.f32 %v1982, %v1973
        %v1990 = vmul.f32 %v1986, %v1974
        %v1991 = vmul.f32 %v1986, %v1975
        %v1992 = vadd.f32 %v1952, %v1988
        %v1993 = vadd.f32 %v1953, %v1989
        %v1994 = vadd.f32 %v1954, %v1990
        %v1995 = vadd.f32 %v1955, %v1991
        %1996 = vset.pattern.permute.xlu0 12
        %1997 = vperm.xlu0 %1996, %v1276
        %v1998 = vpop.permute.xlu0 %1997
        %2000 = vset.pattern.permute.xlu0 12
        %2001 = vperm.xlu0 %2000, %v1277
        %v2002 = vpop.permute.xlu0 %2001
        %v2004 = vmul.f32 %v1998, %v1976
        %v2005 = vmul.f32 %v1998, %v1977
        %v2006 = vmul.f32 %v2002, %v1978
        %v2007 = vmul.f32 %v2002, %v1979
        %v2008 = vsub.f32 %v1992, %v2004
        %v2009 = vsub.f32 %v1993, %v2005
        %v2010 = vsub.f32 %v1994, %v2006
        %v2011 = vsub.f32 %v1995, %v2007
        %v2012 = vmul.f32 %v1982, %v1976
        %v2013 = vmul.f32 %v1982, %v1977
        %v2014 = vmul.f32 %v1986, %v1978
        %v2015 = vmul.f32 %v1986, %v1979
        %v2016 = vadd.f32 %v1968, %v2012
        %v2017 = vadd.f32 %v1969, %v2013
        %v2018 = vadd.f32 %v1970, %v2014
        %v2019 = vadd.f32 %v1971, %v2015
        %v2020 = vmul.f32 %v1998, %v1972
        %v2021 = vmul.f32 %v1998, %v1973
        %v2022 = vmul.f32 %v2002, %v1974
        %v2023 = vmul.f32 %v2002, %v1975
        %v2024 = vadd.f32 %v2016, %v2020
        %v2025 = vadd.f32 %v2017, %v2021
        %v2026 = vadd.f32 %v2018, %v2022
        %v2027 = vadd.f32 %v2019, %v2023
        %s2028 = scalar_lea.vmem [#allocation2], 416
        %v2029 = vld [vmem:[%s2028] sm:$0xff]
        %v2030 = vld [vmem:[%s2028 + $0x8] sm:$0xff]
        %v2031 = vld [vmem:[%s2028 + $0x10] sm:$0xff]
        %v2032 = vld [vmem:[%s2028 + $0x18] sm:$0xff]
        %s2033 = scalar_lea.vmem [#allocation3], 416
        %v2034 = vld [vmem:[%s2033] sm:$0xff]
        %v2035 = vld [vmem:[%s2033 + $0x8] sm:$0xff]
        %v2036 = vld [vmem:[%s2033 + $0x10] sm:$0xff]
        %v2037 = vld [vmem:[%s2033 + $0x18] sm:$0xff]
        %2038 = vset.pattern.permute.xlu0 13
        %2039 = vperm.xlu0 %2038, %v1273
        %v2040 = vpop.permute.xlu0 %2039
        %2042 = vset.pattern.permute.xlu0 13
        %2043 = vperm.xlu0 %2042, %v1274
        %v2044 = vpop.permute.xlu0 %2043
        %v2046 = vmul.f32 %v2040, %v2029
        %v2047 = vmul.f32 %v2040, %v2030
        %v2048 = vmul.f32 %v2044, %v2031
        %v2049 = vmul.f32 %v2044, %v2032
        %v2050 = vadd.f32 %v2008, %v2046
        %v2051 = vadd.f32 %v2009, %v2047
        %v2052 = vadd.f32 %v2010, %v2048
        %v2053 = vadd.f32 %v2011, %v2049
        %2054 = vset.pattern.permute.xlu0 13
        %2055 = vperm.xlu0 %2054, %v1276
        %v2056 = vpop.permute.xlu0 %2055
        %2058 = vset.pattern.permute.xlu0 13
        %2059 = vperm.xlu0 %2058, %v1277
        %v2060 = vpop.permute.xlu0 %2059
        %v2062 = vmul.f32 %v2056, %v2034
        %v2063 = vmul.f32 %v2056, %v2035
        %v2064 = vmul.f32 %v2060, %v2036
        %v2065 = vmul.f32 %v2060, %v2037
        %v2066 = vsub.f32 %v2050, %v2062
        %v2067 = vsub.f32 %v2051, %v2063
        %v2068 = vsub.f32 %v2052, %v2064
        %v2069 = vsub.f32 %v2053, %v2065
        %v2070 = vmul.f32 %v2040, %v2034
        %v2071 = vmul.f32 %v2040, %v2035
        %v2072 = vmul.f32 %v2044, %v2036
        %v2073 = vmul.f32 %v2044, %v2037
        %v2074 = vadd.f32 %v2024, %v2070
        %v2075 = vadd.f32 %v2025, %v2071
        %v2076 = vadd.f32 %v2026, %v2072
        %v2077 = vadd.f32 %v2027, %v2073
        %v2078 = vmul.f32 %v2056, %v2029
        %v2079 = vmul.f32 %v2056, %v2030
        %v2080 = vmul.f32 %v2060, %v2031
        %v2081 = vmul.f32 %v2060, %v2032
        %v2082 = vadd.f32 %v2074, %v2078
        %v2083 = vadd.f32 %v2075, %v2079
        %v2084 = vadd.f32 %v2076, %v2080
        %v2085 = vadd.f32 %v2077, %v2081
        %s2086 = scalar_lea.vmem [#allocation2], 448
        %v2087 = vld [vmem:[%s2086] sm:$0xff]
        %v2088 = vld [vmem:[%s2086 + $0x8] sm:$0xff]
        %v2089 = vld [vmem:[%s2086 + $0x10] sm:$0xff]
        %v2090 = vld [vmem:[%s2086 + $0x18] sm:$0xff]
        %s2091 = scalar_lea.vmem [#allocation3], 448
        %v2092 = vld [vmem:[%s2091] sm:$0xff]
        %v2093 = vld [vmem:[%s2091 + $0x8] sm:$0xff]
        %v2094 = vld [vmem:[%s2091 + $0x10] sm:$0xff]
        %v2095 = vld [vmem:[%s2091 + $0x18] sm:$0xff]
        %2096 = vset.pattern.permute.xlu0 14
        %2097 = vperm.xlu0 %2096, %v1273
        %v2098 = vpop.permute.xlu0 %2097
        %2100 = vset.pattern.permute.xlu0 14
        %2101 = vperm.xlu0 %2100, %v1274
        %v2102 = vpop.permute.xlu0 %2101
        %v2104 = vmul.f32 %v2098, %v2087
        %v2105 = vmul.f32 %v2098, %v2088
        %v2106 = vmul.f32 %v2102, %v2089
        %v2107 = vmul.f32 %v2102, %v2090
        %v2108 = vadd.f32 %v2066, %v2104
        %v2109 = vadd.f32 %v2067, %v2105
        %v2110 = vadd.f32 %v2068, %v2106
        %v2111 = vadd.f32 %v2069, %v2107
        %2112 = vset.pattern.permute.xlu0 14
        %2113 = vperm.xlu0 %2112, %v1276
        %v2114 = vpop.permute.xlu0 %2113
        %2116 = vset.pattern.permute.xlu0 14
        %2117 = vperm.xlu0 %2116, %v1277
        %v2118 = vpop.permute.xlu0 %2117
        %v2120 = vmul.f32 %v2114, %v2092
        %v2121 = vmul.f32 %v2114, %v2093
        %v2122 = vmul.f32 %v2118, %v2094
        %v2123 = vmul.f32 %v2118, %v2095
        %v2124 = vsub.f32 %v2108, %v2120
        %v2125 = vsub.f32 %v2109, %v2121
        %v2126 = vsub.f32 %v2110, %v2122
        %v2127 = vsub.f32 %v2111, %v2123
        %v2128 = vmul.f32 %v2098, %v2092
        %v2129 = vmul.f32 %v2098, %v2093
        %v2130 = vmul.f32 %v2102, %v2094
        %v2131 = vmul.f32 %v2102, %v2095
        %v2132 = vadd.f32 %v2082, %v2128
        %v2133 = vadd.f32 %v2083, %v2129
        %v2134 = vadd.f32 %v2084, %v2130
        %v2135 = vadd.f32 %v2085, %v2131
        %v2136 = vmul.f32 %v2114, %v2087
        %v2137 = vmul.f32 %v2114, %v2088
        %v2138 = vmul.f32 %v2118, %v2089
        %v2139 = vmul.f32 %v2118, %v2090
        %v2140 = vadd.f32 %v2132, %v2136
        %v2141 = vadd.f32 %v2133, %v2137
        %v2142 = vadd.f32 %v2134, %v2138
        %v2143 = vadd.f32 %v2135, %v2139
        %s2144 = scalar_lea.vmem [#allocation2], 480
        %v2145 = vld [vmem:[%s2144] sm:$0xff]
        %v2146 = vld [vmem:[%s2144 + $0x8] sm:$0xff]
        %v2147 = vld [vmem:[%s2144 + $0x10] sm:$0xff]
        %v2148 = vld [vmem:[%s2144 + $0x18] sm:$0xff]
        %s2149 = scalar_lea.vmem [#allocation3], 480
        %v2150 = vld [vmem:[%s2149] sm:$0xff]
        %v2151 = vld [vmem:[%s2149 + $0x8] sm:$0xff]
        %v2152 = vld [vmem:[%s2149 + $0x10] sm:$0xff]
        %v2153 = vld [vmem:[%s2149 + $0x18] sm:$0xff]
        %2154 = vset.pattern.permute.xlu0 15
        %2155 = vperm.xlu0 %2154, %v1273
        %v2156 = vpop.permute.xlu0 %2155
        %2158 = vset.pattern.permute.xlu0 15
        %2159 = vperm.xlu0 %2158, %v1274
        %v2160 = vpop.permute.xlu0 %2159
        %v2162 = vmul.f32 %v2156, %v2145
        %v2163 = vmul.f32 %v2156, %v2146
        %v2164 = vmul.f32 %v2160, %v2147
        %v2165 = vmul.f32 %v2160, %v2148
        %v2166 = vadd.f32 %v2124, %v2162
        %v2167 = vadd.f32 %v2125, %v2163
        %v2168 = vadd.f32 %v2126, %v2164
        %v2169 = vadd.f32 %v2127, %v2165
        %2170 = vset.pattern.permute.xlu0 15
        %2171 = vperm.xlu0 %2170, %v1276
        %v2172 = vpop.permute.xlu0 %2171
        %2174 = vset.pattern.permute.xlu0 15
        %2175 = vperm.xlu0 %2174, %v1277
        %v2176 = vpop.permute.xlu0 %2175
        %v2178 = vmul.f32 %v2172, %v2150
        %v2179 = vmul.f32 %v2172, %v2151
        %v2180 = vmul.f32 %v2176, %v2152
        %v2181 = vmul.f32 %v2176, %v2153
        %v2182 = vsub.f32 %v2166, %v2178
        %v2183 = vsub.f32 %v2167, %v2179
        %v2184 = vsub.f32 %v2168, %v2180
        %v2185 = vsub.f32 %v2169, %v2181
        %v2186 = vmul.f32 %v2156, %v2150
        %v2187 = vmul.f32 %v2156, %v2151
        %v2188 = vmul.f32 %v2160, %v2152
        %v2189 = vmul.f32 %v2160, %v2153
        %v2190 = vadd.f32 %v2140, %v2186
        %v2191 = vadd.f32 %v2141, %v2187
        %v2192 = vadd.f32 %v2142, %v2188
        %v2193 = vadd.f32 %v2143, %v2189
        %v2194 = vmul.f32 %v2172, %v2145
        %v2195 = vmul.f32 %v2172, %v2146
        %v2196 = vmul.f32 %v2176, %v2147
        %v2197 = vmul.f32 %v2176, %v2148
        %v2198 = vadd.f32 %v2190, %v2194
        %v2199 = vadd.f32 %v2191, %v2195
        %v2200 = vadd.f32 %v2192, %v2196
        %v2201 = vadd.f32 %v2193, %v2197
        %v2202 = vld [vmem:[%s1033] sm:$0xff]
        %v2203 = vld [vmem:[%s1033 + $0x8] sm:$0xff]
        %v2204 = vld [vmem:[%s1033 + $0x10] sm:$0xff]
        %v2205 = vld [vmem:[%s1033 + $0x18] sm:$0xff]
        %v2206 = vld [vmem:[%s1043] sm:$0xff]
        %v2207 = vld [vmem:[%s1043 + $0x8] sm:$0xff]
        %v2208 = vld [vmem:[%s1043 + $0x10] sm:$0xff]
        %v2209 = vld [vmem:[%s1043 + $0x18] sm:$0xff]
        %2210 = vset.pattern.permute.xlu0 16
        %2211 = vperm.xlu0 %2210, %v1273
        %v2212 = vpop.permute.xlu0 %2211
        %2214 = vset.pattern.permute.xlu0 16
        %2215 = vperm.xlu0 %2214, %v1274
        %v2216 = vpop.permute.xlu0 %2215
        %v2218 = vmul.f32 %v2212, %v2202
        %v2219 = vmul.f32 %v2212, %v2203
        %v2220 = vmul.f32 %v2216, %v2204
        %v2221 = vmul.f32 %v2216, %v2205
        %v2222 = vadd.f32 %v2182, %v2218
        %v2223 = vadd.f32 %v2183, %v2219
        %v2224 = vadd.f32 %v2184, %v2220
        %v2225 = vadd.f32 %v2185, %v2221
        %2226 = vset.pattern.permute.xlu0 16
        %2227 = vperm.xlu0 %2226, %v1276
        %v2228 = vpop.permute.xlu0 %2227
        %2230 = vset.pattern.permute.xlu0 16
        %2231 = vperm.xlu0 %2230, %v1277
        %v2232 = vpop.permute.xlu0 %2231
        %v2234 = vmul.f32 %v2228, %v2206
        %v2235 = vmul.f32 %v2228, %v2207
        %v2236 = vmul.f32 %v2232, %v2208
        %v2237 = vmul.f32 %v2232, %v2209
        %v2238 = vsub.f32 %v2222, %v2234
        %v2239 = vsub.f32 %v2223, %v2235
        %v2240 = vsub.f32 %v2224, %v2236
        %v2241 = vsub.f32 %v2225, %v2237
        %v2242 = vmul.f32 %v2212, %v2206
        %v2243 = vmul.f32 %v2212, %v2207
        %v2244 = vmul.f32 %v2216, %v2208
        %v2245 = vmul.f32 %v2216, %v2209
        %v2246 = vadd.f32 %v2198, %v2242
        %v2247 = vadd.f32 %v2199, %v2243
        %v2248 = vadd.f32 %v2200, %v2244
        %v2249 = vadd.f32 %v2201, %v2245
        %v2250 = vmul.f32 %v2228, %v2202
        %v2251 = vmul.f32 %v2228, %v2203
        %v2252 = vmul.f32 %v2232, %v2204
        %v2253 = vmul.f32 %v2232, %v2205
        %v2254 = vadd.f32 %v2246, %v2250
        %v2255 = vadd.f32 %v2247, %v2251
        %v2256 = vadd.f32 %v2248, %v2252
        %v2257 = vadd.f32 %v2249, %v2253
        %s2258 = scalar_lea.vmem [#allocation2], 544
        %v2259 = vld [vmem:[%s2258] sm:$0xff]
        %v2260 = vld [vmem:[%s2258 + $0x8] sm:$0xff]
        %v2261 = vld [vmem:[%s2258 + $0x10] sm:$0xff]
        %v2262 = vld [vmem:[%s2258 + $0x18] sm:$0xff]
        %s2263 = scalar_lea.vmem [#allocation3], 544
        %v2264 = vld [vmem:[%s2263] sm:$0xff]
        %v2265 = vld [vmem:[%s2263 + $0x8] sm:$0xff]
        %v2266 = vld [vmem:[%s2263 + $0x10] sm:$0xff]
        %v2267 = vld [vmem:[%s2263 + $0x18] sm:$0xff]
        %2268 = vset.pattern.permute.xlu0 17
        %2269 = vperm.xlu0 %2268, %v1273
        %v2270 = vpop.permute.xlu0 %2269
        %2272 = vset.pattern.permute.xlu0 17
        %2273 = vperm.xlu0 %2272, %v1274
        %v2274 = vpop.permute.xlu0 %2273
        %v2276 = vmul.f32 %v2270, %v2259
        %v2277 = vmul.f32 %v2270, %v2260
        %v2278 = vmul.f32 %v2274, %v2261
        %v2279 = vmul.f32 %v2274, %v2262
        %v2280 = vadd.f32 %v2238, %v2276
        %v2281 = vadd.f32 %v2239, %v2277
        %v2282 = vadd.f32 %v2240, %v2278
        %v2283 = vadd.f32 %v2241, %v2279
        %2284 = vset.pattern.permute.xlu0 17
        %2285 = vperm.xlu0 %2284, %v1276
        %v2286 = vpop.permute.xlu0 %2285
        %2288 = vset.pattern.permute.xlu0 17
        %2289 = vperm.xlu0 %2288, %v1277
        %v2290 = vpop.permute.xlu0 %2289
        %v2292 = vmul.f32 %v2286, %v2264
        %v2293 = vmul.f32 %v2286, %v2265
        %v2294 = vmul.f32 %v2290, %v2266
        %v2295 = vmul.f32 %v2290, %v2267
        %v2296 = vsub.f32 %v2280, %v2292
        %v2297 = vsub.f32 %v2281, %v2293
        %v2298 = vsub.f32 %v2282, %v2294
        %v2299 = vsub.f32 %v2283, %v2295
        %v2300 = vmul.f32 %v2270, %v2264
        %v2301 = vmul.f32 %v2270, %v2265
        %v2302 = vmul.f32 %v2274, %v2266
        %v2303 = vmul.f32 %v2274, %v2267
        %v2304 = vadd.f32 %v2254, %v2300
        %v2305 = vadd.f32 %v2255, %v2301
        %v2306 = vadd.f32 %v2256, %v2302
        %v2307 = vadd.f32 %v2257, %v2303
        %v2308 = vmul.f32 %v2286, %v2259
        %v2309 = vmul.f32 %v2286, %v2260
        %v2310 = vmul.f32 %v2290, %v2261
        %v2311 = vmul.f32 %v2290, %v2262
        %v2312 = vadd.f32 %v2304, %v2308
        %v2313 = vadd.f32 %v2305, %v2309
        %v2314 = vadd.f32 %v2306, %v2310
        %v2315 = vadd.f32 %v2307, %v2311
        %s2316 = scalar_lea.vmem [#allocation2], 576
        %v2317 = vld [vmem:[%s2316] sm:$0xff]
        %v2318 = vld [vmem:[%s2316 + $0x8] sm:$0xff]
        %v2319 = vld [vmem:[%s2316 + $0x10] sm:$0xff]
        %v2320 = vld [vmem:[%s2316 + $0x18] sm:$0xff]
        %s2321 = scalar_lea.vmem [#allocation3], 576
        %v2322 = vld [vmem:[%s2321] sm:$0xff]
        %v2323 = vld [vmem:[%s2321 + $0x8] sm:$0xff]
        %v2324 = vld [vmem:[%s2321 + $0x10] sm:$0xff]
        %v2325 = vld [vmem:[%s2321 + $0x18] sm:$0xff]
        %2326 = vset.pattern.permute.xlu0 18
        %2327 = vperm.xlu0 %2326, %v1273
        %v2328 = vpop.permute.xlu0 %2327
        %2330 = vset.pattern.permute.xlu0 18
        %2331 = vperm.xlu0 %2330, %v1274
        %v2332 = vpop.permute.xlu0 %2331
        %v2334 = vmul.f32 %v2328, %v2317
        %v2335 = vmul.f32 %v2328, %v2318
        %v2336 = vmul.f32 %v2332, %v2319
        %v2337 = vmul.f32 %v2332, %v2320
        %v2338 = vadd.f32 %v2296, %v2334
        %v2339 = vadd.f32 %v2297, %v2335
        %v2340 = vadd.f32 %v2298, %v2336
        %v2341 = vadd.f32 %v2299, %v2337
        %2342 = vset.pattern.permute.xlu0 18
        %2343 = vperm.xlu0 %2342, %v1276
        %v2344 = vpop.permute.xlu0 %2343
        %2346 = vset.pattern.permute.xlu0 18
        %2347 = vperm.xlu0 %2346, %v1277
        %v2348 = vpop.permute.xlu0 %2347
        %v2350 = vmul.f32 %v2344, %v2322
        %v2351 = vmul.f32 %v2344, %v2323
        %v2352 = vmul.f32 %v2348, %v2324
        %v2353 = vmul.f32 %v2348, %v2325
        %v2354 = vsub.f32 %v2338, %v2350
        %v2355 = vsub.f32 %v2339, %v2351
        %v2356 = vsub.f32 %v2340, %v2352
        %v2357 = vsub.f32 %v2341, %v2353
        %v2358 = vmul.f32 %v2328, %v2322
        %v2359 = vmul.f32 %v2328, %v2323
        %v2360 = vmul.f32 %v2332, %v2324
        %v2361 = vmul.f32 %v2332, %v2325
        %v2362 = vadd.f32 %v2312, %v2358
        %v2363 = vadd.f32 %v2313, %v2359
        %v2364 = vadd.f32 %v2314, %v2360
        %v2365 = vadd.f32 %v2315, %v2361
        %v2366 = vmul.f32 %v2344, %v2317
        %v2367 = vmul.f32 %v2344, %v2318
        %v2368 = vmul.f32 %v2348, %v2319
        %v2369 = vmul.f32 %v2348, %v2320
        %v2370 = vadd.f32 %v2362, %v2366
        %v2371 = vadd.f32 %v2363, %v2367
        %v2372 = vadd.f32 %v2364, %v2368
        %v2373 = vadd.f32 %v2365, %v2369
        %s2374 = scalar_lea.vmem [#allocation2], 608
        %v2375 = vld [vmem:[%s2374] sm:$0xff]
        %v2376 = vld [vmem:[%s2374 + $0x8] sm:$0xff]
        %v2377 = vld [vmem:[%s2374 + $0x10] sm:$0xff]
        %v2378 = vld [vmem:[%s2374 + $0x18] sm:$0xff]
        %s2379 = scalar_lea.vmem [#allocation3], 608
        %v2380 = vld [vmem:[%s2379] sm:$0xff]
        %v2381 = vld [vmem:[%s2379 + $0x8] sm:$0xff]
        %v2382 = vld [vmem:[%s2379 + $0x10] sm:$0xff]
        %v2383 = vld [vmem:[%s2379 + $0x18] sm:$0xff]
        %2384 = vset.pattern.permute.xlu0 19
        %2385 = vperm.xlu0 %2384, %v1273
        %v2386 = vpop.permute.xlu0 %2385
        %2388 = vset.pattern.permute.xlu0 19
        %2389 = vperm.xlu0 %2388, %v1274
        %v2390 = vpop.permute.xlu0 %2389
        %v2392 = vmul.f32 %v2386, %v2375
        %v2393 = vmul.f32 %v2386, %v2376
        %v2394 = vmul.f32 %v2390, %v2377
        %v2395 = vmul.f32 %v2390, %v2378
        %v2396 = vadd.f32 %v2354, %v2392
        %v2397 = vadd.f32 %v2355, %v2393
        %v2398 = vadd.f32 %v2356, %v2394
        %v2399 = vadd.f32 %v2357, %v2395
        %2400 = vset.pattern.permute.xlu0 19
        %2401 = vperm.xlu0 %2400, %v1276
        %v2402 = vpop.permute.xlu0 %2401
        %2404 = vset.pattern.permute.xlu0 19
        %2405 = vperm.xlu0 %2404, %v1277
        %v2406 = vpop.permute.xlu0 %2405
        %v2408 = vmul.f32 %v2402, %v2380
        %v2409 = vmul.f32 %v2402, %v2381
        %v2410 = vmul.f32 %v2406, %v2382
        %v2411 = vmul.f32 %v2406, %v2383
        %v2412 = vsub.f32 %v2396, %v2408
        %v2413 = vsub.f32 %v2397, %v2409
        %v2414 = vsub.f32 %v2398, %v2410
        %v2415 = vsub.f32 %v2399, %v2411
        %v2416 = vmul.f32 %v2386, %v2380
        %v2417 = vmul.f32 %v2386, %v2381
        %v2418 = vmul.f32 %v2390, %v2382
        %v2419 = vmul.f32 %v2390, %v2383
        %v2420 = vadd.f32 %v2370, %v2416
        %v2421 = vadd.f32 %v2371, %v2417
        %v2422 = vadd.f32 %v2372, %v2418
        %v2423 = vadd.f32 %v2373, %v2419
        %v2424 = vmul.f32 %v2402, %v2375
        %v2425 = vmul.f32 %v2402, %v2376
        %v2426 = vmul.f32 %v2406, %v2377
        %v2427 = vmul.f32 %v2406, %v2378
        %v2428 = vadd.f32 %v2420, %v2424
        %v2429 = vadd.f32 %v2421, %v2425
        %v2430 = vadd.f32 %v2422, %v2426
        %v2431 = vadd.f32 %v2423, %v2427
        %v2432 = vmul.f32 %v2412, %v2412
        %v2433 = vmul.f32 %v2413, %v2413
        %v2434 = vmul.f32 %v2414, %v2414
        %v2435 = vmul.f32 %v2415, %v2415
        %v2436 = vmul.f32 %v2428, %v2428
        %v2437 = vmul.f32 %v2429, %v2429
        %v2438 = vmul.f32 %v2430, %v2430
        %v2439 = vmul.f32 %v2431, %v2431
        %v2440 = vadd.f32 %v2432, %v2436
        %v2441 = vadd.f32 %v2433, %v2437
        %v2442 = vadd.f32 %v2434, %v2438
        %v2443 = vadd.f32 %v2435, %v2439
        %v2444 = vadd.f32 %v2440, 1e-05
        %v2445 = vadd.f32 %v2441, 1e-05
        %v2446 = vadd.f32 %v2442, 1e-05
        %v2447 = vadd.f32 %v2443, 1e-05
        %v2448 = vrsqrt.pop %v2444
        %v2449 = vmul.f32 %v2444, %v2448
        %vm2450 = vcmp.eq.f32.partialorder %v2444, inf
        %v2451 = vsel %vm2450, %v2444, %v2449
        %vm2452 = vcmp.eq.f32.partialorder %v2444, 0.0
        %v2453 = vand.u32 %v2444, 2147483648
        %v2454 = vsel %vm2452, %v2453, %v2451
        %v2455 = vrsqrt.pop %v2445
        %v2456 = vmul.f32 %v2445, %v2455
        %vm2457 = vcmp.eq.f32.partialorder %v2445, inf
        %v2458 = vsel %vm2457, %v2445, %v2456
        %vm2459 = vcmp.eq.f32.partialorder %v2445, 0.0
        %v2460 = vand.u32 %v2445, 2147483648
        %v2461 = vsel %vm2459, %v2460, %v2458
        %v2462 = vrsqrt.pop %v2446
        %v2463 = vmul.f32 %v2446, %v2462
        %vm2464 = vcmp.eq.f32.partialorder %v2446, inf
        %v2465 = vsel %vm2464, %v2446, %v2463
        %vm2466 = vcmp.eq.f32.partialorder %v2446, 0.0
        %v2467 = vand.u32 %v2446, 2147483648
        %v2468 = vsel %vm2466, %v2467, %v2465
        %v2469 = vrsqrt.pop %v2447
        %v2470 = vmul.f32 %v2447, %v2469
        %vm2471 = vcmp.eq.f32.partialorder %v2447, inf
        %v2472 = vsel %vm2471, %v2447, %v2470
        %vm2473 = vcmp.eq.f32.partialorder %v2447, 0.0
        %v2474 = vand.u32 %v2447, 2147483648
        %v2475 = vsel %vm2473, %v2474, %v2472
        %vm2476 = vcmask 130048
        %v2478 = vsel %vm2476, %v1261, 0
        %v2481 = vsel %vm2476, %v1262, 0
        %v2484 = vsel %vm2476, %v1263, 0
        %v2487 = vsel %vm2476, %v1264, 0
        %2489 = vmatprep.subr.mxu0 0.0
        %2490 = vmatpush1.msra.mxu0 0.0
        %2491 = vmatprep.subr.mxu0 0.0
        %2492 = vmatpush1.msra.mxu0 0.0
        %2493 = vmatprep.subr.mxu0 0.0
        %2494 = vmatpush1.msra.mxu0 0.0
        %2495 = vmatprep.subr.mxu0 0.0
        %2496 = vmatpush1.msra.mxu0 0.0
        %2497 = vmatprep.subr.mxu0 0.0
        %2498 = vmatpush1.msra.mxu0 0.0
        %2499 = vmatprep.subr.mxu0 0.0
        %2500 = vmatpush1.msra.mxu0 0.0
        %2501 = vmatprep.subr.mxu0 0.0
        %2502 = vmatpush1.msra.mxu0 0.0
        %2503 = vmatprep.subr.mxu0 0.0
        %2504 = vmatpush1.msra.mxu0 0.0
        %2505 = vmatprep.subr.mxu0 0.0
        %2506 = vmatpush1.msra.mxu0 0.0
        %2507 = vmatprep.subr.mxu0 0.0
        %2508 = vmatpush1.msra.mxu0 0.0
        %2509 = vmatprep.subr.mxu0 0.0
        %2510 = vmatpush1.msra.mxu0 0.0
        %2511 = vmatprep.subr.mxu0 0.0
        %2512 = vmatpush1.msra.mxu0 0.0
        %2513 = vmatprep.subr.mxu0 0.0
        %2514 = vmatpush1.msra.mxu0 0.0
        %2515 = vmatprep.subr.mxu0 0.0
        %2516 = vmatpush1.msra.mxu0 0.0
        %2517 = vmatprep.subr.mxu0 %v2475
        %2518 = vmatpush1.msra.mxu0 %v2468
        %2519 = vmatprep.subr.mxu0 %v2461
        %2520 = vmatpush1.msra.mxu0 %v2454
        %2521 = vmatprep.subr.mxu0 0.0
        %2522 = vmatpush2.msra.mxu0 0.0
        %2523 = vmatprep.subr.mxu0 0.0
        %2524 = vmatpush2.msra.mxu0 0.0
        %2525 = vmatprep.subr.mxu0 0.0
        %2526 = vmatpush2.msra.mxu0 0.0
        %2527 = vmatprep.subr.mxu0 0.0
        %2528 = vmatpush2.msra.mxu0 0.0
        %2529 = vmatprep.subr.mxu0 0.0
        %2530 = vmatpush2.msra.mxu0 0.0
        %2531 = vmatprep.subr.mxu0 0.0
        %2532 = vmatpush2.msra.mxu0 0.0
        %2533 = vmatprep.subr.mxu0 0.0
        %2534 = vmatpush2.msra.mxu0 0.0
        %2535 = vmatprep.subr.mxu0 0.0
        %2536 = vmatpush2.msra.mxu0 0.0
        %2537 = vmatprep.subr.mxu0 0.0
        %2538 = vmatpush2.msra.mxu0 0.0
        %2539 = vmatprep.subr.mxu0 0.0
        %2540 = vmatpush2.msra.mxu0 0.0
        %2541 = vmatprep.subr.mxu0 0.0
        %2542 = vmatpush2.msra.mxu0 0.0
        %2543 = vmatprep.subr.mxu0 0.0
        %2544 = vmatpush2.msra.mxu0 0.0
        %2545 = vmatprep.subr.mxu0 0.0
        %2546 = vmatpush2.msra.mxu0 0.0
        %2547 = vmatprep.subr.mxu0 0.0
        %2548 = vmatpush2.msra.mxu0 0.0
        %2549 = vmatprep.subr.mxu0 0.0
        %2550 = vmatpush2.msra.mxu0 0.0
        %2551 = vmatprep.subr.mxu0 0.0
        %2552 = vmatpush2.msra.mxu0 0.0
        %2553 = vmatprep.mubr.f32.mxu0 0.0
        %2554 = vmatmul.mubr.f32.gmra.mxu0 %v2478
        %v2555 = vpop.f32.mrf.mxu0
        %v2556 = vadd.f32 0.0, %v2555
        %v2557 = vpop.f32.mrf.mxu0
        %v2558 = vadd.f32 0.0, %v2557
        %2559 = vmatprep.mubr.f32.mxu0 0.0
        %2560 = vmatmul.mubr.f32.gmra.mxu0 %v2481
        %v2561 = vpop.f32.mrf.mxu0
        %v2562 = vadd.f32 0.0, %v2561
        %v2563 = vpop.f32.mrf.mxu0
        %v2564 = vadd.f32 0.0, %v2563
        %2565 = vmatprep.mubr.f32.mxu0 0.0
        %2566 = vmatmul.mubr.f32.gmra.mxu0 %v2484
        %v2567 = vpop.f32.mrf.mxu0
        %v2568 = vadd.f32 0.0, %v2567
        %v2569 = vpop.f32.mrf.mxu0
        %v2570 = vadd.f32 0.0, %v2569
        %2571 = vmatprep.mubr.f32.mxu0 0.0
        %2572 = vmatmul.mubr.f32.gmra.mxu0 %v2487
        %v2573 = vpop.f32.mrf.mxu0
        %v2574 = vadd.f32 0.0, %v2573
        %v2575 = vpop.f32.mrf.mxu0
        %v2576 = vadd.f32 0.0, %v2575
        %2577 = vdwg.mxu0
        %v2578 = vmax.f32 %v2556, 0.0
        %v2579 = vmax.f32 %v2558, 0.0
        %v2580 = vmax.f32 %v2562, 0.0
        %v2581 = vmax.f32 %v2564, 0.0
        %v2582 = vmax.f32 %v2568, 0.0
        %v2583 = vmax.f32 %v2570, 0.0
        %v2584 = vmax.f32 %v2574, 0.0
        %v2585 = vmax.f32 %v2576, 0.0
        %v2586 = vadd.f32 %v2578, 1e-05
        %v2587 = vadd.f32 %v2579, 1e-05
        %v2588 = vadd.f32 %v2580, 1e-05
        %v2589 = vadd.f32 %v2581, 1e-05
        %v2590 = vadd.f32 %v2582, 1e-05
        %v2591 = vadd.f32 %v2583, 1e-05
        %v2592 = vadd.f32 %v2584, 1e-05
        %v2593 = vadd.f32 %v2585, 1e-05
        %v2594 = vlog2.pop %v2586
        %v2595 = vmul.f32 %v2594, 0.6931472
        %v2596 = vlog2.pop %v2587
        %v2597 = vmul.f32 %v2596, 0.6931472
        %v2598 = vlog2.pop %v2588
        %v2599 = vmul.f32 %v2598, 0.6931472
        %v2600 = vlog2.pop %v2589
        %v2601 = vmul.f32 %v2600, 0.6931472
        %v2602 = vlog2.pop %v2590
        %v2603 = vmul.f32 %v2602, 0.6931472
        %v2604 = vlog2.pop %v2591
        %v2605 = vmul.f32 %v2604, 0.6931472
        %v2606 = vlog2.pop %v2592
        %v2607 = vmul.f32 %v2606, 0.6931472
        %v2608 = vlog2.pop %v2593
        %v2609 = vmul.f32 %v2608, 0.6931472
        %s2610 = smul.u32 %s1266, 8
        %s2611 = smul.addr %s2610, 8
        %s2612 = scalar_lea.vmem %s279, %s2611
        %2613 = vst [vmem:[%s2612] sm:$0xff] %v2595
        %2614 = vst [vmem:[%s2612 + $0x8] sm:$0xff] %v2597
        %2615 = vst [vmem:[%s2612 + $0x10] sm:$0xff] %v2599
        %2616 = vst [vmem:[%s2612 + $0x18] sm:$0xff] %v2601
        %2617 = vst [vmem:[%s2612 + $0x20] sm:$0xff] %v2603
        %2618 = vst [vmem:[%s2612 + $0x28] sm:$0xff] %v2605
        %2619 = vst [vmem:[%s2612 + $0x30] sm:$0xff] %v2607
        %2620 = vst [vmem:[%s2612 + $0x38] sm:$0xff] %v2609
      $region45: #{time_variant_filter.2} parent=39 // loop_footer
        %s1270 = sadd.s32 1, %s1266
      $region46: #{time_variant_filter.2} parent=39 // loop_footer_branch
        %1265 = sbr.rel target = $region42
      $region47: #{time_variant_filter.2} parent=39 // loop_exit
        _
      %v2621 = vld [vmem:[%s279] sm:$0xff]
      %v2622 = vld [vmem:[%s279 + $0x8] sm:$0xff]
      %v2623 = vld [vmem:[%s279 + $0x10] sm:$0xff]
      %v2624 = vld [vmem:[%s279 + $0x18] sm:$0xff]
      %v2625 = vld [vmem:[%s279 + $0x20] sm:$0xff]
      %v2626 = vld [vmem:[%s279 + $0x28] sm:$0xff]
      %v2627 = vld [vmem:[%s279 + $0x30] sm:$0xff]
      %v2628 = vld [vmem:[%s279 + $0x38] sm:$0xff]
      %v2629 = vld [vmem:[%s279 + $0x40] sm:$0xff]
      %v2630 = vld [vmem:[%s279 + $0x48] sm:$0xff]
      %v2631 = vld [vmem:[%s279 + $0x50] sm:$0xff]
      %v2632 = vld [vmem:[%s279 + $0x58] sm:$0xff]
      %v2633 = vld [vmem:[%s279 + $0x60] sm:$0xff]
      %v2634 = vld [vmem:[%s279 + $0x68] sm:$0xff]
      %v2635 = vld [vmem:[%s279 + $0x70] sm:$0xff]
      %v2636 = vld [vmem:[%s279 + $0x78] sm:$0xff]
      %v2637 = vld [vmem:[%s279 + $0x80] sm:$0xff]
      %v2638 = vld [vmem:[%s279 + $0x88] sm:$0xff]
      %v2639 = vld [vmem:[%s279 + $0x90] sm:$0xff]
      %v2640 = vld [vmem:[%s279 + $0x98] sm:$0xff]
      %v2641 = vld [vmem:[%s279 + $0xa0] sm:$0xff]
      %v2642 = vld [vmem:[%s279 + $0xa8] sm:$0xff]
      %v2643 = vld [vmem:[%s279 + $0xb0] sm:$0xff]
      %v2644 = vld [vmem:[%s279 + $0xb8] sm:$0xff]
      %v2645 = vld [vmem:[%s279 + $0xc0] sm:$0xff]
      %v2646 = vld [vmem:[%s279 + $0xc8] sm:$0xff]
      %v2647 = vld [vmem:[%s279 + $0xd0] sm:$0xff]
      %v2648 = vld [vmem:[%s279 + $0xd8] sm:$0xff]
      %v2649 = vld [vmem:[%s279 + $0xe0] sm:$0xff]
      %v2650 = vld [vmem:[%s279 + $0xe8] sm:$0xff]
      %v2651 = vld [vmem:[%s279 + $0xf0] sm:$0xff]
      %v2652 = vld [vmem:[%s279 + $0xf8] sm:$0xff]
      %v2653 = vld [vmem:[%s279 + $0x100] sm:$0xff]
      %v2654 = vld [vmem:[%s279 + $0x108] sm:$0xff]
      %v2655 = vld [vmem:[%s279 + $0x110] sm:$0xff]
      %v2656 = vld [vmem:[%s279 + $0x118] sm:$0xff]
      %v2657 = vld [vmem:[%s279 + $0x120] sm:$0xff]
      %v2658 = vld [vmem:[%s279 + $0x128] sm:$0xff]
      %v2659 = vld [vmem:[%s279 + $0x130] sm:$0xff]
      %v2660 = vld [vmem:[%s279 + $0x138] sm:$0xff]
      %v2661 = vld [vmem:[%s279 + $0x140] sm:$0xff]
      %v2662 = vld [vmem:[%s279 + $0x148] sm:$0xff]
      %v2663 = vld [vmem:[%s279 + $0x150] sm:$0xff]
      %v2664 = vld [vmem:[%s279 + $0x158] sm:$0xff]
      %v2665 = vld [vmem:[%s279 + $0x160] sm:$0xff]
      %v2666 = vld [vmem:[%s279 + $0x168] sm:$0xff]
      %v2667 = vld [vmem:[%s279 + $0x170] sm:$0xff]
      %v2668 = vld [vmem:[%s279 + $0x178] sm:$0xff]
      %v2669 = vld [vmem:[%s279 + $0x180] sm:$0xff]
      %v2670 = vld [vmem:[%s279 + $0x188] sm:$0xff]
      %v2671 = vld [vmem:[%s279 + $0x190] sm:$0xff]
      %v2672 = vld [vmem:[%s279 + $0x198] sm:$0xff]
      %v2673 = vld [vmem:[%s279 + $0x1a0] sm:$0xff]
      %v2674 = vld [vmem:[%s279 + $0x1a8] sm:$0xff]
      %v2675 = vld [vmem:[%s279 + $0x1b0] sm:$0xff]
      %v2676 = vld [vmem:[%s279 + $0x1b8] sm:$0xff]
      %v2677 = vld [vmem:[%s279 + $0x1c0] sm:$0xff]
      %v2678 = vld [vmem:[%s279 + $0x1c8] sm:$0xff]
      %v2679 = vld [vmem:[%s279 + $0x1d0] sm:$0xff]
      %v2680 = vld [vmem:[%s279 + $0x1d8] sm:$0xff]
      %v2681 = vld [vmem:[%s279 + $0x1e0] sm:$0xff]
      %v2682 = vld [vmem:[%s279 + $0x1e8] sm:$0xff]
      %v2683 = vld [vmem:[%s279 + $0x1f0] sm:$0xff]
      %v2684 = vld [vmem:[%s279 + $0x1f8] sm:$0xff]
      %v2685 = vadd.f32 %v2621, %v2623
      %v2686 = vadd.f32 %v2685, %v2625
      %v2687 = vadd.f32 %v2686, %v2627
      %v2688 = vrot.slane %v2687, 4
      %v2689 = vadd.f32 %v2687, %v2688
      %v2690 = vrot.slane %v2689, 2
      %v2691 = vadd.f32 %v2689, %v2690
      %v2692 = vrot.slane %v2691, 1
      %v2693 = vadd.f32 %v2691, %v2692
      %v2694 = vadd.f32 %v2622, %v2624
      %v2695 = vadd.f32 %v2694, %v2626
      %v2696 = vadd.f32 %v2695, %v2628
      %v2697 = vrot.slane %v2696, 4
      %v2698 = vadd.f32 %v2696, %v2697
      %v2699 = vrot.slane %v2698, 2
      %v2700 = vadd.f32 %v2698, %v2699
      %v2701 = vrot.slane %v2700, 1
      %v2702 = vadd.f32 %v2700, %v2701
      %v2703 = vadd.f32 %v2629, %v2631
      %v2704 = vadd.f32 %v2703, %v2633
      %v2705 = vadd.f32 %v2704, %v2635
      %v2706 = vrot.slane %v2705, 4
      %v2707 = vadd.f32 %v2705, %v2706
      %v2708 = vrot.slane %v2707, 2
      %v2709 = vadd.f32 %v2707, %v2708
      %v2710 = vrot.slane %v2709, 1
      %v2711 = vadd.f32 %v2709, %v2710
      %v2712 = vadd.f32 %v2630, %v2632
      %v2713 = vadd.f32 %v2712, %v2634
      %v2714 = vadd.f32 %v2713, %v2636
      %v2715 = vrot.slane %v2714, 4
      %v2716 = vadd.f32 %v2714, %v2715
      %v2717 = vrot.slane %v2716, 2
      %v2718 = vadd.f32 %v2716, %v2717
      %v2719 = vrot.slane %v2718, 1
      %v2720 = vadd.f32 %v2718, %v2719
      %v2721 = vadd.f32 %v2637, %v2639
      %v2722 = vadd.f32 %v2721, %v2641
      %v2723 = vadd.f32 %v2722, %v2643
      %v2724 = vrot.slane %v2723, 4
      %v2725 = vadd.f32 %v2723, %v2724
      %v2726 = vrot.slane %v2725, 2
      %v2727 = vadd.f32 %v2725, %v2726
      %v2728 = vrot.slane %v2727, 1
      %v2729 = vadd.f32 %v2727, %v2728
      %v2730 = vadd.f32 %v2638, %v2640
      %v2731 = vadd.f32 %v2730, %v2642
      %v2732 = vadd.f32 %v2731, %v2644
      %v2733 = vrot.slane %v2732, 4
      %v2734 = vadd.f32 %v2732, %v2733
      %v2735 = vrot.slane %v2734, 2
      %v2736 = vadd.f32 %v2734, %v2735
      %v2737 = vrot.slane %v2736, 1
      %v2738 = vadd.f32 %v2736, %v2737
      %v2739 = vadd.f32 %v2645, %v2647
      %v2740 = vadd.f32 %v2739, %v2649
      %v2741 = vadd.f32 %v2740, %v2651
      %v2742 = vrot.slane %v2741, 4
      %v2743 = vadd.f32 %v2741, %v2742
      %v2744 = vrot.slane %v2743, 2
      %v2745 = vadd.f32 %v2743, %v2744
      %v2746 = vrot.slane %v2745, 1
      %v2747 = vadd.f32 %v2745, %v2746
      %v2748 = vadd.f32 %v2646, %v2648
      %v2749 = vadd.f32 %v2748, %v2650
      %v2750 = vadd.f32 %v2749, %v2652
      %v2751 = vrot.slane %v2750, 4
      %v2752 = vadd.f32 %v2750, %v2751
      %v2753 = vrot.slane %v2752, 2
      %v2754 = vadd.f32 %v2752, %v2753
      %v2755 = vrot.slane %v2754, 1
      %v2756 = vadd.f32 %v2754, %v2755
      %v2757 = vadd.f32 %v2653, %v2655
      %v2758 = vadd.f32 %v2757, %v2657
      %v2759 = vadd.f32 %v2758, %v2659
      %v2760 = vrot.slane %v2759, 4
      %v2761 = vadd.f32 %v2759, %v2760
      %v2762 = vrot.slane %v2761, 2
      %v2763 = vadd.f32 %v2761, %v2762
      %v2764 = vrot.slane %v2763, 1
      %v2765 = vadd.f32 %v2763, %v2764
      %v2766 = vadd.f32 %v2654, %v2656
      %v2767 = vadd.f32 %v2766, %v2658
      %v2768 = vadd.f32 %v2767, %v2660
      %v2769 = vrot.slane %v2768, 4
      %v2770 = vadd.f32 %v2768, %v2769
      %v2771 = vrot.slane %v2770, 2
      %v2772 = vadd.f32 %v2770, %v2771
      %v2773 = vrot.slane %v2772, 1
      %v2774 = vadd.f32 %v2772, %v2773
      %v2775 = vadd.f32 %v2661, %v2663
      %v2776 = vadd.f32 %v2775, %v2665
      %v2777 = vadd.f32 %v2776, %v2667
      %v2778 = vrot.slane %v2777, 4
      %v2779 = vadd.f32 %v2777, %v2778
      %v2780 = vrot.slane %v2779, 2
      %v2781 = vadd.f32 %v2779, %v2780
      %v2782 = vrot.slane %v2781, 1
      %v2783 = vadd.f32 %v2781, %v2782
      %v2784 = vadd.f32 %v2662, %v2664
      %v2785 = vadd.f32 %v2784, %v2666
      %v2786 = vadd.f32 %v2785, %v2668
      %v2787 = vrot.slane %v2786, 4
      %v2788 = vadd.f32 %v2786, %v2787
      %v2789 = vrot.slane %v2788, 2
      %v2790 = vadd.f32 %v2788, %v2789
      %v2791 = vrot.slane %v2790, 1
      %v2792 = vadd.f32 %v2790, %v2791
      %v2793 = vadd.f32 %v2669, %v2671
      %v2794 = vadd.f32 %v2793, %v2673
      %v2795 = vadd.f32 %v2794, %v2675
      %v2796 = vrot.slane %v2795, 4
      %v2797 = vadd.f32 %v2795, %v2796
      %v2798 = vrot.slane %v2797, 2
      %v2799 = vadd.f32 %v2797, %v2798
      %v2800 = vrot.slane %v2799, 1
      %v2801 = vadd.f32 %v2799, %v2800
      %v2802 = vadd.f32 %v2670, %v2672
      %v2803 = vadd.f32 %v2802, %v2674
      %v2804 = vadd.f32 %v2803, %v2676
      %v2805 = vrot.slane %v2804, 4
      %v2806 = vadd.f32 %v2804, %v2805
      %v2807 = vrot.slane %v2806, 2
      %v2808 = vadd.f32 %v2806, %v2807
      %v2809 = vrot.slane %v2808, 1
      %v2810 = vadd.f32 %v2808, %v2809
      %v2811 = vadd.f32 %v2677, %v2679
      %v2812 = vadd.f32 %v2811, %v2681
      %v2813 = vadd.f32 %v2812, %v2683
      %v2814 = vrot.slane %v2813, 4
      %v2815 = vadd.f32 %v2813, %v2814
      %v2816 = vrot.slane %v2815, 2
      %v2817 = vadd.f32 %v2815, %v2816
      %v2818 = vrot.slane %v2817, 1
      %v2819 = vadd.f32 %v2817, %v2818
      %v2820 = vadd.f32 %v2678, %v2680
      %v2821 = vadd.f32 %v2820, %v2682
      %v2822 = vadd.f32 %v2821, %v2684
      %v2823 = vrot.slane %v2822, 4
      %v2824 = vadd.f32 %v2822, %v2823
      %v2825 = vrot.slane %v2824, 2
      %v2826 = vadd.f32 %v2824, %v2825
      %v2827 = vrot.slane %v2826, 1
      %v2828 = vadd.f32 %v2826, %v2827
      %vm2845 = vcmask 1041409
      %v2846 = vsel %vm2845, %v2711, %v2693
      %vm2847 = vcmask 1042434
      %v2848 = vsel %vm2847, %v2729, %v2846
      %vm2849 = vcmask 1043459
      %v2850 = vsel %vm2849, %v2747, %v2848
      %vm2851 = vcmask 1044484
      %v2852 = vsel %vm2851, %v2765, %v2850
      %vm2853 = vcmask 1045509
      %v2854 = vsel %vm2853, %v2783, %v2852
      %vm2855 = vcmask 1046534
      %v2856 = vsel %vm2855, %v2801, %v2854
      %vm2857 = vcmask 1047559
      %v2858 = vsel %vm2857, %v2819, %v2856
      %v2859 = vsel %vm2845, %v2720, %v2702
      %v2860 = vsel %vm2847, %v2738, %v2859
      %v2861 = vsel %vm2849, %v2756, %v2860
      %v2862 = vsel %vm2851, %v2774, %v2861
      %v2863 = vsel %vm2853, %v2792, %v2862
      %v2864 = vsel %vm2855, %v2810, %v2863
      %v2865 = vsel %vm2857, %v2828, %v2864
      %2868 = vst [vmem:[%s284] sm:$0xff] %v2858
      %2869 = vst [vmem:[%s284 + $0x8] sm:$0xff] %v2865
      %v2870 = vmul.f32 %v2621, %v2621
      %v2871 = vmul.f32 %v2622, %v2622
      %v2872 = vmul.f32 %v2623, %v2623
      %v2873 = vmul.f32 %v2624, %v2624
      %v2874 = vmul.f32 %v2625, %v2625
      %v2875 = vmul.f32 %v2626, %v2626
      %v2876 = vmul.f32 %v2627, %v2627
      %v2877 = vmul.f32 %v2628, %v2628
      %v2878 = vmul.f32 %v2629, %v2629
      %v2879 = vmul.f32 %v2630, %v2630
      %v2880 = vmul.f32 %v2631, %v2631
      %v2881 = vmul.f32 %v2632, %v2632
      %v2882 = vmul.f32 %v2633, %v2633
      %v2883 = vmul.f32 %v2634, %v2634
      %v2884 = vmul.f32 %v2635, %v2635
      %v2885 = vmul.f32 %v2636, %v2636
      %v2886 = vmul.f32 %v2637, %v2637
      %v2887 = vmul.f32 %v2638, %v2638
      %v2888 = vmul.f32 %v2639, %v2639
      %v2889 = vmul.f32 %v2640, %v2640
      %v2890 = vmul.f32 %v2641, %v2641
      %v2891 = vmul.f32 %v2642, %v2642
      %v2892 = vmul.f32 %v2643, %v2643
      %v2893 = vmul.f32 %v2644, %v2644
      %v2894 = vmul.f32 %v2645, %v2645
      %v2895 = vmul.f32 %v2646, %v2646
      %v2896 = vmul.f32 %v2647, %v2647
      %v2897 = vmul.f32 %v2648, %v2648
      %v2898 = vmul.f32 %v2649, %v2649
      %v2899 = vmul.f32 %v2650, %v2650
      %v2900 = vmul.f32 %v2651, %v2651
      %v2901 = vmul.f32 %v2652, %v2652
      %v2902 = vmul.f32 %v2653, %v2653
      %v2903 = vmul.f32 %v2654, %v2654
      %v2904 = vmul.f32 %v2655, %v2655
      %v2905 = vmul.f32 %v2656, %v2656
      %v2906 = vmul.f32 %v2657, %v2657
      %v2907 = vmul.f32 %v2658, %v2658
      %v2908 = vmul.f32 %v2659, %v2659
      %v2909 = vmul.f32 %v2660, %v2660
      %v2910 = vmul.f32 %v2661, %v2661
      %v2911 = vmul.f32 %v2662, %v2662
      %v2912 = vmul.f32 %v2663, %v2663
      %v2913 = vmul.f32 %v2664, %v2664
      %v2914 = vmul.f32 %v2665, %v2665
      %v2915 = vmul.f32 %v2666, %v2666
      %v2916 = vmul.f32 %v2667, %v2667
      %v2917 = vmul.f32 %v2668, %v2668
      %v2918 = vmul.f32 %v2669, %v2669
      %v2919 = vmul.f32 %v2670, %v2670
      %v2920 = vmul.f32 %v2671, %v2671
      %v2921 = vmul.f32 %v2672, %v2672
      %v2922 = vmul.f32 %v2673, %v2673
      %v2923 = vmul.f32 %v2674, %v2674
      %v2924 = vmul.f32 %v2675, %v2675
      %v2925 = vmul.f32 %v2676, %v2676
      %v2926 = vmul.f32 %v2677, %v2677
      %v2927 = vmul.f32 %v2678, %v2678
      %v2928 = vmul.f32 %v2679, %v2679
      %v2929 = vmul.f32 %v2680, %v2680
      %v2930 = vmul.f32 %v2681, %v2681
      %v2931 = vmul.f32 %v2682, %v2682
      %v2932 = vmul.f32 %v2683, %v2683
      %v2933 = vmul.f32 %v2684, %v2684
      %v2934 = vadd.f32 %v2870, %v2872
      %v2935 = vadd.f32 %v2934, %v2874
      %v2936 = vadd.f32 %v2935, %v2876
      %v2937 = vrot.slane %v2936, 4
      %v2938 = vadd.f32 %v2936, %v2937
      %v2939 = vrot.slane %v2938, 2
      %v2940 = vadd.f32 %v2938, %v2939
      %v2941 = vrot.slane %v2940, 1
      %v2942 = vadd.f32 %v2940, %v2941
      %v2943 = vadd.f32 %v2871, %v2873
      %v2944 = vadd.f32 %v2943, %v2875
      %v2945 = vadd.f32 %v2944, %v2877
      %v2946 = vrot.slane %v2945, 4
      %v2947 = vadd.f32 %v2945, %v2946
      %v2948 = vrot.slane %v2947, 2
      %v2949 = vadd.f32 %v2947, %v2948
      %v2950 = vrot.slane %v2949, 1
      %v2951 = vadd.f32 %v2949, %v2950
      %v2952 = vadd.f32 %v2878, %v2880
      %v2953 = vadd.f32 %v2952, %v2882
      %v2954 = vadd.f32 %v2953, %v2884
      %v2955 = vrot.slane %v2954, 4
      %v2956 = vadd.f32 %v2954, %v2955
      %v2957 = vrot.slane %v2956, 2
      %v2958 = vadd.f32 %v2956, %v2957
      %v2959 = vrot.slane %v2958, 1
      %v2960 = vadd.f32 %v2958, %v2959
      %v2961 = vadd.f32 %v2879, %v2881
      %v2962 = vadd.f32 %v2961, %v2883
      %v2963 = vadd.f32 %v2962, %v2885
      %v2964 = vrot.slane %v2963, 4
      %v2965 = vadd.f32 %v2963, %v2964
      %v2966 = vrot.slane %v2965, 2
      %v2967 = vadd.f32 %v2965, %v2966
      %v2968 = vrot.slane %v2967, 1
      %v2969 = vadd.f32 %v2967, %v2968
      %v2970 = vadd.f32 %v2886, %v2888
      %v2971 = vadd.f32 %v2970, %v2890
      %v2972 = vadd.f32 %v2971, %v2892
      %v2973 = vrot.slane %v2972, 4
      %v2974 = vadd.f32 %v2972, %v2973
      %v2975 = vrot.slane %v2974, 2
      %v2976 = vadd.f32 %v2974, %v2975
      %v2977 = vrot.slane %v2976, 1
      %v2978 = vadd.f32 %v2976, %v2977
      %v2979 = vadd.f32 %v2887, %v2889
      %v2980 = vadd.f32 %v2979, %v2891
      %v2981 = vadd.f32 %v2980, %v2893
      %v2982 = vrot.slane %v2981, 4
      %v2983 = vadd.f32 %v2981, %v2982
      %v2984 = vrot.slane %v2983, 2
      %v2985 = vadd.f32 %v2983, %v2984
      %v2986 = vrot.slane %v2985, 1
      %v2987 = vadd.f32 %v2985, %v2986
      %v2988 = vadd.f32 %v2894, %v2896
      %v2989 = vadd.f32 %v2988, %v2898
      %v2990 = vadd.f32 %v2989, %v2900
      %v2991 = vrot.slane %v2990, 4
      %v2992 = vadd.f32 %v2990, %v2991
      %v2993 = vrot.slane %v2992, 2
      %v2994 = vadd.f32 %v2992, %v2993
      %v2995 = vrot.slane %v2994, 1
      %v2996 = vadd.f32 %v2994, %v2995
      %v2997 = vadd.f32 %v2895, %v2897
      %v2998 = vadd.f32 %v2997, %v2899
      %v2999 = vadd.f32 %v2998, %v2901
      %v3000 = vrot.slane %v2999, 4
      %v3001 = vadd.f32 %v2999, %v3000
      %v3002 = vrot.slane %v3001, 2
      %v3003 = vadd.f32 %v3001, %v3002
      %v3004 = vrot.slane %v3003, 1
      %v3005 = vadd.f32 %v3003, %v3004
      %v3006 = vadd.f32 %v2902, %v2904
      %v3007 = vadd.f32 %v3006, %v2906
      %v3008 = vadd.f32 %v3007, %v2908
      %v3009 = vrot.slane %v3008, 4
      %v3010 = vadd.f32 %v3008, %v3009
      %v3011 = vrot.slane %v3010, 2
      %v3012 = vadd.f32 %v3010, %v3011
      %v3013 = vrot.slane %v3012, 1
      %v3014 = vadd.f32 %v3012, %v3013
      %v3015 = vadd.f32 %v2903, %v2905
      %v3016 = vadd.f32 %v3015, %v2907
      %v3017 = vadd.f32 %v3016, %v2909
      %v3018 = vrot.slane %v3017, 4
      %v3019 = vadd.f32 %v3017, %v3018
      %v3020 = vrot.slane %v3019, 2
      %v3021 = vadd.f32 %v3019, %v3020
      %v3022 = vrot.slane %v3021, 1
      %v3023 = vadd.f32 %v3021, %v3022
      %v3024 = vadd.f32 %v2910, %v2912
      %v3025 = vadd.f32 %v3024, %v2914
      %v3026 = vadd.f32 %v3025, %v2916
      %v3027 = vrot.slane %v3026, 4
      %v3028 = vadd.f32 %v3026, %v3027
      %v3029 = vrot.slane %v3028, 2
      %v3030 = vadd.f32 %v3028, %v3029
      %v3031 = vrot.slane %v3030, 1
      %v3032 = vadd.f32 %v3030, %v3031
      %v3033 = vadd.f32 %v2911, %v2913
      %v3034 = vadd.f32 %v3033, %v2915
      %v3035 = vadd.f32 %v3034, %v2917
      %v3036 = vrot.slane %v3035, 4
      %v3037 = vadd.f32 %v3035, %v3036
      %v3038 = vrot.slane %v3037, 2
      %v3039 = vadd.f32 %v3037, %v3038
      %v3040 = vrot.slane %v3039, 1
      %v3041 = vadd.f32 %v3039, %v3040
      %v3042 = vadd.f32 %v2918, %v2920
      %v3043 = vadd.f32 %v3042, %v2922
      %v3044 = vadd.f32 %v3043, %v2924
      %v3045 = vrot.slane %v3044, 4
      %v3046 = vadd.f32 %v3044, %v3045
      %v3047 = vrot.slane %v3046, 2
      %v3048 = vadd.f32 %v3046, %v3047
      %v3049 = vrot.slane %v3048, 1
      %v3050 = vadd.f32 %v3048, %v3049
      %v3051 = vadd.f32 %v2919, %v2921
      %v3052 = vadd.f32 %v3051, %v2923
      %v3053 = vadd.f32 %v3052, %v2925
      %v3054 = vrot.slane %v3053, 4
      %v3055 = vadd.f32 %v3053, %v3054
      %v3056 = vrot.slane %v3055, 2
      %v3057 = vadd.f32 %v3055, %v3056
      %v3058 = vrot.slane %v3057, 1
      %v3059 = vadd.f32 %v3057, %v3058
      %v3060 = vadd.f32 %v2926, %v2928
      %v3061 = vadd.f32 %v3060, %v2930
      %v3062 = vadd.f32 %v3061, %v2932
      %v3063 = vrot.slane %v3062, 4
      %v3064 = vadd.f32 %v3062, %v3063
      %v3065 = vrot.slane %v3064, 2
      %v3066 = vadd.f32 %v3064, %v3065
      %v3067 = vrot.slane %v3066, 1
      %v3068 = vadd.f32 %v3066, %v3067
      %v3069 = vadd.f32 %v2927, %v2929
      %v3070 = vadd.f32 %v3069, %v2931
      %v3071 = vadd.f32 %v3070, %v2933
      %v3072 = vrot.slane %v3071, 4
      %v3073 = vadd.f32 %v3071, %v3072
      %v3074 = vrot.slane %v3073, 2
      %v3075 = vadd.f32 %v3073, %v3074
      %v3076 = vrot.slane %v3075, 1
      %v3077 = vadd.f32 %v3075, %v3076
      %v3094 = vsel %vm2845, %v2960, %v2942
      %v3095 = vsel %vm2847, %v2978, %v3094
      %v3096 = vsel %vm2849, %v2996, %v3095
      %v3097 = vsel %vm2851, %v3014, %v3096
      %v3098 = vsel %vm2853, %v3032, %v3097
      %v3099 = vsel %vm2855, %v3050, %v3098
      %v3100 = vsel %vm2857, %v3068, %v3099
      %v3101 = vsel %vm2845, %v2969, %v2951
      %v3102 = vsel %vm2847, %v2987, %v3101
      %v3103 = vsel %vm2849, %v3005, %v3102
      %v3104 = vsel %vm2851, %v3023, %v3103
      %v3105 = vsel %vm2853, %v3041, %v3104
      %v3106 = vsel %vm2855, %v3059, %v3105
      %v3107 = vsel %vm2857, %v3077, %v3106
      %s3110 = scalar_lea.vmem %s284, 16
      %3111 = vst [vmem:[%s3110] sm:$0xff] %v3100
      %3112 = vst [vmem:[%s3110 + $0x8] sm:$0xff] %v3107
      %p3113 = scmp.lt.s32.totalorder %s18, 1
      %s3114 = scalar_select %p3113, %s18, 1
      %s3115 = smul.addr %s3114, 64
      %s3116 = smul.addr %s3115, 8
      %s3117 = scalar_lea.vmem %s5, %s3116
      %p3118 = scmp.lt.s32.totalorder %s18, 1
      %s3119 = scalar_select %p3118, %s18, 1
      %s3120 = smul.addr %s3119, 4
      %s3121 = smul.addr %s3120, 8
      %s3122 = scalar_lea.vmem %s6, %s3121
      // Predicated region
      $region48: #{time_variant_filter.2} parent=39 // pred_check
        %p3123 = pneg %p151
      $region49: #{time_variant_filter.2} parent=39 // pred_check_branch
        %3125 = sbr.rel (%p3123) target = $region51
      $region50: #{time_variant_filter.2} parent=39 // pred_region
        _
      $region51: #{time_variant_filter.2} parent=39 // pred_fallthru
        _
      // Predicated region
      $region52: #{time_variant_filter.2} parent=39 // pred_check
        %p3126 = pneg %p177
      $region53: #{time_variant_filter.2} parent=39 // pred_check_branch
        %3128 = sbr.rel (%p3126) target = $region55
      $region54: #{time_variant_filter.2} parent=39 // pred_region
        _
      $region55: #{time_variant_filter.2} parent=39 // pred_fallthru
        _
    $region40: #{time_variant_filter.2} parent=5 // pred_fallthru
      _
    %p3129 = scmp.le.s32.totalorder 2, %s13
    // Predicated region
    $region56: #{time_variant_filter.2} parent=5 // pred_check
      %p3130 = pneg %p3129
    $region57: #{time_variant_filter.2} parent=5 // pred_check_branch
      %3132 = sbr.rel (%p3130) target = $region59
    $region58: #{time_variant_filter.2} parent=5 // pred_region
      %s3133 = ssub.s32 %s13, 2
      // Predicated region
      $region60: #{time_variant_filter.2} parent=58 // pred_check
        %p3134 = pneg %p157
      $region61: #{time_variant_filter.2} parent=58 // pred_check_branch
        %3136 = sbr.rel (%p3134) target = $region63
      $region62: #{time_variant_filter.2} parent=58 // pred_region
        %p3137 = scmp.lt.s32.totalorder %s19, 1
        %s3138 = scalar_select %p3137, %s19, 1
        %s3139 = smul.addr %s3138, 64
        %s3140 = smul.addr %s3139, 8
        %s3141 = scalar_lea.vmem %s5, %s3140
      $region63: #{time_variant_filter.2} parent=58 // pred_fallthru
        _
      // Predicated region
      $region64: #{time_variant_filter.2} parent=58 // pred_check
        %p3142 = pneg %p183
      $region65: #{time_variant_filter.2} parent=58 // pred_check_branch
        %3144 = sbr.rel (%p3142) target = $region67
      $region66: #{time_variant_filter.2} parent=58 // pred_region
        %p3145 = scmp.lt.s32.totalorder %s19, 1
        %s3146 = scalar_select %p3145, %s19, 1
        %s3147 = smul.addr %s3146, 4
        %s3148 = smul.addr %s3147, 8
        %s3149 = scalar_lea.vmem %s6, %s3148
      $region67: #{time_variant_filter.2} parent=58 // pred_fallthru
        _
    $region59: #{time_variant_filter.2} parent=5 // pred_fallthru
      _
  $region6: #{time_variant_filter.2} parent=0 // loop_footer
    %s17 = sadd.s32 1, %s13
  $region7: #{time_variant_filter.2} parent=0 // loop_footer_branch
    %12 = sbr.rel target = $region3
  $region8: #{time_variant_filter.2} parent=0 // loop_exit
    _

</llo_original>
